<compile_context>
chip_gen: v6e
topology: v6e:2x2x1
jax: 0.10.0
libtpu: 0.0.40
codegen_flags: <defaults>
</compile_context>

<pallas_src>
import jax
import jax.numpy as jnp
from jax import lax
from jax.experimental import pallas as pl
from jax.experimental.pallas import tpu as pltpu

HID = 64    # LSTM hidden size
F0 = 128    # fc0 output size
F1 = 32     # fc1 output size
BTILE = 256  # max batch rows per grid step (multiple of 8)


def energy_kernel(x_ref, w0_ref, b0_ref, w1big_ref, bgbig_ref, wrec_ref,
                  watt_ref, batt_ref, w1f_ref, b1f_ref, w2_ref, b2_ref,
                  out_ref, gates_ref):
    Bt = out_ref.shape[0]          # batch tile (multiple of 8)
    TB = x_ref.shape[1]            # T * Bt (time-major within the tile)
    T = TB // Bt
    H = HID

    # ---- hoisted non-recurrent precompute: fc0 + layer-1 input projection for
    #      ALL timesteps as two large matmuls; biases baked in once.  Gate
    #      columns are packed [i1,i2, f1,f2, o1,o2, g1,g2] (layer-2 input
    #      columns of w1big are zero; its bias lands via bgbig). -------------
    x2d = x_ref[0]                                                # (T*Bt, D)
    a0 = jnp.maximum(
        jnp.dot(x2d, w0_ref[...], preferred_element_type=jnp.float32)
        + b0_ref[...], 0.0)                                       # (T*Bt, 128)
    gates_ref[pl.ds(0, TB), :] = (
        jnp.dot(a0, w1big_ref[...], preferred_element_type=jnp.float32)
        + bgbig_ref[...])                                         # (T*Bt, 8H)
    # extra row-block T: bias only (drives layer-2's last wavefront step)
    gates_ref[pl.ds(TB, Bt), :] = jnp.broadcast_to(bgbig_ref[...], (Bt, 8 * H))
    # suppress layer-2's spurious step at k=0: zero its tanh-gate columns so
    # c2 = f2*0 + i2*tanh(0) = 0 and h2 = o2*tanh(0) = 0 after iteration 0.
    gates_ref[pl.ds(0, Bt), pl.ds(7 * H, H)] = jnp.zeros((Bt, H), jnp.float32)

    # ---- wavefront recurrent loop: iteration k = layer-1 step k AND layer-2
    #      step k-1, on packed (Bt, 2H) states.  One 128-deep dot + one
    #      full-lane cell per iteration; all slices are 128-lane aligned. ----
    def body(k, carry):
        hp, cp = carry                                            # (Bt, 2H)
        base = pl.multiple_of(k * Bt, Bt)
        g = (gates_ref[pl.ds(base, Bt), :]
             + jnp.dot(hp, wrec_ref[...],
                       preferred_element_type=jnp.float32))       # (Bt, 8H)
        sg = jax.nn.sigmoid(g[:, :6 * H])      # [i1,i2, f1,f2, o1,o2]
        tg = jnp.tanh(g[:, 6 * H:])            # [g1, g2]
        cp = sg[:, 2 * H:4 * H] * cp + sg[:, :2 * H] * tg
        hp = sg[:, 4 * H:] * jnp.tanh(cp)
        return hp, cp

    zeros = jnp.zeros((Bt, 2 * H), jnp.float32)
    unroll = T + 1 if T + 1 <= 12 else 4
    hp, _ = lax.fori_loop(0, T + 1, body, (zeros, zeros), unroll=unroll)
    h2 = hp[:, H:]                              # layer-2 hidden at last step

    # ---- attention (Linear + softmax over feature dim) on the last timestep
    #      only (softmax/mul are per-timestep independent in the reference) --
    scores = (jnp.dot(h2, watt_ref[...], preferred_element_type=jnp.float32)
              + batt_ref[...])
    scores = scores - jnp.max(scores, axis=-1, keepdims=True)
    e = jnp.exp(scores)
    attn = e / jnp.sum(e, axis=-1, keepdims=True)
    enh = attn * h2

    # dropout: inference -> identity.  BatchNorm folded into fc1 (wrapper).
    z1 = jnp.maximum(
        jnp.dot(enh, w1f_ref[...], preferred_element_type=jnp.float32)
        + b1f_ref[...], 0.0)
    out_ref[...] = (jnp.dot(z1, w2_ref[...], preferred_element_type=jnp.float32)
                    + b2_ref[...])


def energy_forward(x, params):
    """x: (B, T, D) float32, batch-first like PyTorch. Returns (B, 1)."""
    (w0, b0, wih1, whh1, bih1, bhh1, wih2, whh2, bih2, bhh2,
     watt, batt, gamma, beta, mean, var, w1, b1, w2, b2) = params
    B, T, D = x.shape
    H = HID

    # ---- batch padding / tiling ------------------------------------------
    Bp = max(8, ((B + 7) // 8) * 8)
    if Bp > BTILE:
        Bp = ((Bp + BTILE - 1) // BTILE) * BTILE
        bt = BTILE
    else:
        bt = Bp
    nb = Bp // bt
    if Bp != B:
        x = jnp.pad(x, ((0, Bp - B), (0, 0), (0, 0)))

    # per-batch-block contiguous, time-major within the block:
    # (Bp,T,D) -> (T,Bp,D) -> (T,nb,bt,D) -> (nb,T,bt,D) -> (nb,T*bt,D)
    xr = jnp.transpose(x, (1, 0, 2)).reshape(T, nb, bt, D)
    xr = jnp.transpose(xr, (1, 0, 2, 3)).reshape(nb, T * bt, D)

    # ---- pack LSTM weights: gate column order [i1,i2, f1,f2, o1,o2, g1,g2] -
    def gates_t(w):                 # PyTorch (4H, in) -> (in, H) blocks i,f,o,g
        wt = w.T
        return wt[:, :H], wt[:, H:2 * H], wt[:, 3 * H:], wt[:, 2 * H:3 * H]

    def gates_b(bi, bh):
        b = bi + bh
        return b[:H], b[H:2 * H], b[3 * H:], b[2 * H:3 * H]

    i1w, f1w, o1w, g1w = gates_t(wih1)        # (128, 64) each
    r1i, r1f, r1o, r1g = gates_t(whh1)        # (64, 64)
    i2w, f2w, o2w, g2w = gates_t(wih2)        # (64, 64)
    r2i, r2f, r2o, r2g = gates_t(whh2)        # (64, 64)
    zi = jnp.zeros((F0, H), jnp.float32)
    zh = jnp.zeros((H, H), jnp.float32)

    # input projection (only layer-1 columns non-zero)
    w1big = jnp.concatenate([i1w, zi, f1w, zi, o1w, zi, g1w, zi], axis=1)
    # packed recurrent weights: rows 0:H from h1, rows H:2H from h2
    wrec = jnp.concatenate([
        jnp.concatenate([r1i, i2w, r1f, f2w, r1o, o2w, r1g, g2w], axis=1),
        jnp.concatenate([zh, r2i, zh, r2f, zh, r2o, zh, r2g], axis=1)], axis=0)
    b1i, b1f_, b1o, b1g = gates_b(bih1, bhh1)
    b2i, b2f_, b2o, b2g = gates_b(bih2, bhh2)
    bgbig = jnp.concatenate(
        [b1i, b2i, b1f_, b2f_, b1o, b2o, b1g, b2g]).reshape(1, 8 * H)

    # ---- fold eval-mode BatchNorm into fc1 (exact) -------------------------
    s = gamma * lax.rsqrt(var + 1e-5)
    w1f = w1.T * s[:, None]                              # (64, 32)
    b1f = (b1 + (beta - mean * s) @ w1.T).reshape(1, -1)

    w0t = w0.T
    b0r = b0.reshape(1, -1)
    wattT = watt.T
    battr = batt.reshape(1, -1)
    w2t = w2.T
    b2r = b2.reshape(1, -1)

    vmem = pltpu.MemorySpace.VMEM

    def full(arr):
        nd = arr.ndim
        return pl.BlockSpec(arr.shape, lambda b, _n=nd: (0,) * _n,
                            memory_space=vmem)

    in_specs = [
        pl.BlockSpec((1, T * bt, D), lambda b: (b, 0, 0), memory_space=vmem),
        full(w0t), full(b0r), full(w1big), full(bgbig), full(wrec),
        full(wattT), full(battr), full(w1f), full(b1f), full(w2t), full(b2r),
    ]
    out_spec = pl.BlockSpec((bt, 1), lambda b: (b, 0), memory_space=vmem)

    out = pl.pallas_call(
        energy_kernel,
        out_shape=jax.ShapeDtypeStruct((Bp, 1), jnp.float32),
        grid=(nb,),
        in_specs=in_specs,
        out_specs=out_spec,
        scratch_shapes=[pltpu.VMEM(((T + 1) * bt, 8 * H), jnp.float32)],
        compiler_params=pltpu.CompilerParams(
            dimension_semantics=("parallel",),
            vmem_limit_bytes=32 * 1024 * 1024),
    )(xr, w0t, b0r, w1big, bgbig, wrec, wattT, battr, w1f, b1f, w2t, b2r)
    return out[:B]


def init_params(key, input_dim):
    H = HID
    ks = jax.random.split(key, 16)

    def u(k, shape, fan_in):
        bound = 1.0 / float(fan_in) ** 0.5
        return jax.random.uniform(k, shape, jnp.float32, -bound, bound)

    w0 = u(ks[0], (F0, input_dim), input_dim); b0 = u(ks[1], (F0,), input_dim)
    wih1 = u(ks[2], (4 * H, F0), H); whh1 = u(ks[3], (4 * H, H), H)
    bih1 = u(ks[4], (4 * H,), H);    bhh1 = u(ks[5], (4 * H,), H)
    wih2 = u(ks[6], (4 * H, H), H);  whh2 = u(ks[7], (4 * H, H), H)
    bih2 = u(ks[8], (4 * H,), H);    bhh2 = u(ks[9], (4 * H,), H)
    watt = u(ks[10], (H, H), H);     batt = u(ks[11], (H,), H)
    gamma = jnp.ones((H,), jnp.float32); beta = jnp.zeros((H,), jnp.float32)
    mean = jnp.zeros((H,), jnp.float32); var = jnp.ones((H,), jnp.float32)
    w1 = u(ks[12], (F1, H), H);      b1 = u(ks[13], (F1,), H)
    w2 = u(ks[14], (1, F1), F1);     b2 = u(ks[15], (1,), F1)
    return (w0, b0, wih1, whh1, bih1, bhh1, wih2, whh2, bih2, bhh2,
            watt, batt, gamma, beta, mean, var, w1, b1, w2, b2)


def reference_forward(x, params):
    """Pure-JAX mirror of the PyTorch forward (inference mode)."""
    (w0, b0, wih1, whh1, bih1, bhh1, wih2, whh2, bih2, bhh2,
     watt, batt, gamma, beta, mean, var, w1, b1, w2, b2) = params
    B, T, D = x.shape
    H = HID
    a0 = jax.nn.relu(x @ w0.T + b0)

    def run_lstm(inp, wih, whh, bih, bhh):
        def step(carry, x_t):
            h, c = carry
            g = x_t @ wih.T + bih + h @ whh.T + bhh
            i = jax.nn.sigmoid(g[:, :H]); f = jax.nn.sigmoid(g[:, H:2 * H])
            gg = jnp.tanh(g[:, 2 * H:3 * H]); o = jax.nn.sigmoid(g[:, 3 * H:])
            c = f * c + i * gg; h = o * jnp.tanh(c)
            return (h, c), h
        init = (jnp.zeros((B, H), jnp.float32), jnp.zeros((B, H), jnp.float32))
        _, hs = lax.scan(step, init, jnp.transpose(inp, (1, 0, 2)))
        return jnp.transpose(hs, (1, 0, 2))

    o1 = run_lstm(a0, wih1, whh1, bih1, bhh1)
    o2 = run_lstm(o1, wih2, whh2, bih2, bhh2)
    attn = jax.nn.softmax(o2 @ watt.T + batt, axis=-1)
    enh = (attn * o2)[:, -1, :]
    bn = (enh - mean) / jnp.sqrt(var + 1e-5) * gamma + beta
    z1 = jax.nn.relu(bn @ w1.T + b1)
    return z1 @ w2.T + b2


if __name__ == "__main__":
    key = jax.random.PRNGKey(0)
    k_x, k_p = jax.random.split(key)

    B, T, INPUT_DIM = 2, 8, 16
    x = jax.random.normal(k_x, (B, T, INPUT_DIM), jnp.float32)
    params = init_params(k_p, INPUT_DIM)

    out = energy_forward(x, params)
    out = jax.block_until_ready(out)

    ref = reference_forward(x, params)
    assert out.shape == (B, 1), out.shape
    assert jnp.allclose(out, ref, atol=1e-3, rtol=1e-3), (out, ref)

    print("KERNEL_OK")
</pallas_src>

<mosaic_0001>
module attributes {stable_mosaic.version = 11 : i64} {
  func.func @energy_kernel(%arg0: i32, %arg1: memref<1x64x16xf32, #tpu.memory_space<vmem>>, %arg2: memref<16x128xf32, #tpu.memory_space<vmem>>, %arg3: memref<1x128xf32, #tpu.memory_space<vmem>>, %arg4: memref<128x512xf32, #tpu.memory_space<vmem>>, %arg5: memref<1x512xf32, #tpu.memory_space<vmem>>, %arg6: memref<128x512xf32, #tpu.memory_space<vmem>>, %arg7: memref<64x64xf32, #tpu.memory_space<vmem>>, %arg8: memref<1x64xf32, #tpu.memory_space<vmem>>, %arg9: memref<64x32xf32, #tpu.memory_space<vmem>>, %arg10: memref<1x32xf32, #tpu.memory_space<vmem>>, %arg11: memref<32x1xf32, #tpu.memory_space<vmem>>, %arg12: memref<1x1xf32, #tpu.memory_space<vmem>>, %arg13: memref<8x1xf32, #tpu.memory_space<vmem>>, %arg14: memref<72x512xf32, #tpu.memory_space<vmem>>) attributes {dimension_semantics = [#tpu.dimension_semantics<parallel>], iteration_bounds = array<i64: 1>, scalar_prefetch = 0 : i64, scratch_operands = 1 : i64, tpu.core_type = #tpu.core_type<tc>, window_params = [{transform_indices = @transform_0, window_bounds = array<i64: 1, 64, 16>}, {pipeline_mode = #tpu.pipeline_mode<synchronous>, transform_indices = @transform_1, window_bounds = array<i64: 16, 128>}, {pipeline_mode = #tpu.pipeline_mode<synchronous>, transform_indices = @transform_2, window_bounds = array<i64: 1, 128>}, {pipeline_mode = #tpu.pipeline_mode<synchronous>, transform_indices = @transform_3, window_bounds = array<i64: 128, 512>}, {pipeline_mode = #tpu.pipeline_mode<synchronous>, transform_indices = @transform_4, window_bounds = array<i64: 1, 512>}, {pipeline_mode = #tpu.pipeline_mode<synchronous>, transform_indices = @transform_5, window_bounds = array<i64: 128, 512>}, {pipeline_mode = #tpu.pipeline_mode<synchronous>, transform_indices = @transform_6, window_bounds = array<i64: 64, 64>}, {pipeline_mode = #tpu.pipeline_mode<synchronous>, transform_indices = @transform_7, window_bounds = array<i64: 1, 64>}, {pipeline_mode = #tpu.pipeline_mode<synchronous>, transform_indices = @transform_8, window_bounds = array<i64: 64, 32>}, {pipeline_mode = #tpu.pipeline_mode<synchronous>, transform_indices = @transform_9, window_bounds = array<i64: 1, 32>}, {pipeline_mode = #tpu.pipeline_mode<synchronous>, transform_indices = @transform_10, window_bounds = array<i64: 32, 1>}, {pipeline_mode = #tpu.pipeline_mode<synchronous>, transform_indices = @transform_11, window_bounds = array<i64: 1, 1>}, {transform_indices = @transform_12, window_bounds = array<i64: 8, 1>}]} {
    %c0 = arith.constant 0 : index
    %c0_0 = arith.constant 0 : index
    %c0_1 = arith.constant 0 : index
    %0 = vector.load %arg1[%c0, %c0_0, %c0_1] : memref<1x64x16xf32, #tpu.memory_space<vmem>>, vector<1x64x16xf32>
    %1 = vector.shape_cast %0 : vector<1x64x16xf32> to vector<64x16xf32>
    %c0_2 = arith.constant 0 : index
    %c0_3 = arith.constant 0 : index
    %2 = vector.load %arg2[%c0_2, %c0_3] : memref<16x128xf32, #tpu.memory_space<vmem>>, vector<16x128xf32>
    %cst = arith.constant dense<0.000000e+00> : vector<64x128xf32>
    %3 = tpu.matmul %1, %2, %cst {dimension_numbers = #tpu.dot_dimension_numbers<[1], [0], [0], [1], [0, 0, 1, 1], [], []>} : vector<64x16xf32>, vector<16x128xf32>, vector<64x128xf32> -> vector<64x128xf32>
    %c0_4 = arith.constant 0 : index
    %c0_5 = arith.constant 0 : index
    %4 = vector.load %arg3[%c0_4, %c0_5] : memref<1x128xf32, #tpu.memory_space<vmem>>, vector<1x128xf32>
    %5 = vector.broadcast %4 : vector<1x128xf32> to vector<64x128xf32>
    %6 = arith.addf %3, %5 : vector<64x128xf32>
    %cst_6 = arith.constant 0.000000e+00 : f32
    %7 = vector.broadcast %cst_6 : f32 to vector<64x128xf32>
    %8 = arith.maximumf %6, %7 : vector<64x128xf32>
    %c0_7 = arith.constant 0 : index
    %c0_8 = arith.constant 0 : index
    %9 = vector.load %arg4[%c0_7, %c0_8] : memref<128x512xf32, #tpu.memory_space<vmem>>, vector<128x512xf32>
    %cst_9 = arith.constant dense<0.000000e+00> : vector<64x512xf32>
    %10 = tpu.matmul %8, %9, %cst_9 {dimension_numbers = #tpu.dot_dimension_numbers<[1], [0], [0], [1], [0, 0, 1, 1], [], []>} : vector<64x128xf32>, vector<128x512xf32>, vector<64x512xf32> -> vector<64x512xf32>
    %c0_10 = arith.constant 0 : index
    %c0_11 = arith.constant 0 : index
    %11 = vector.load %arg5[%c0_10, %c0_11] : memref<1x512xf32, #tpu.memory_space<vmem>>, vector<1x512xf32>
    %12 = vector.broadcast %11 : vector<1x512xf32> to vector<64x512xf32>
    %13 = arith.addf %10, %12 : vector<64x512xf32>
    %c0_12 = arith.constant 0 : index
    %c0_13 = arith.constant 0 : index
    %14 = vector.load %arg14[%c0_12, %c0_13] : memref<72x512xf32, #tpu.memory_space<vmem>>, vector<64x512xf32>
    tpu.vector_store %arg14[%c0_12, %c0_13], %13 {strides = array<i32>} : memref<72x512xf32, #tpu.memory_space<vmem>>, vector<64x512xf32>,
    %c0_14 = arith.constant 0 : index
    %c0_15 = arith.constant 0 : index
    %15 = vector.load %arg5[%c0_14, %c0_15] : memref<1x512xf32, #tpu.memory_space<vmem>>, vector<1x512xf32>
    %16 = vector.shape_cast %15 : vector<1x512xf32> to vector<1x512xf32>
    %17 = vector.broadcast %16 : vector<1x512xf32> to vector<8x512xf32>
    %c64 = arith.constant 64 : index
    %c0_16 = arith.constant 0 : index
    %18 = vector.load %arg14[%c64, %c0_16] : memref<72x512xf32, #tpu.memory_space<vmem>>, vector<8x512xf32>
    tpu.vector_store %arg14[%c64, %c0_16], %17 {strides = array<i32>} : memref<72x512xf32, #tpu.memory_space<vmem>>, vector<8x512xf32>,
    %cst_17 = arith.constant 0.000000e+00 : f32
    %19 = vector.broadcast %cst_17 : f32 to vector<8x64xf32>
    %c0_18 = arith.constant 0 : index
    %c448 = arith.constant 448 : index
    %20 = vector.load %arg14[%c0_18, %c448] : memref<72x512xf32, #tpu.memory_space<vmem>>, vector<8x64xf32>
    tpu.vector_store %arg14[%c0_18, %c448], %19 {strides = array<i32>} : memref<72x512xf32, #tpu.memory_space<vmem>>, vector<8x64xf32>,
    %cst_19 = arith.constant 0.000000e+00 : f32
    %21 = vector.broadcast %cst_19 : f32 to vector<8x128xf32>
    %c0_i32 = arith.constant 0 : i32
    %c8_i32 = arith.constant 8 : i32
    %22 = arith.muli %c0_i32, %c8_i32 : i32
    %23 = tpu.assume_multiple %22, 8 : i32
    %24 = arith.index_cast %23 : i32 to index
    %c0_20 = arith.constant 0 : index
    %25 = vector.load %arg14[%24, %c0_20] : memref<72x512xf32, #tpu.memory_space<vmem>>, vector<8x512xf32>
    %c0_21 = arith.constant 0 : index
    %c0_22 = arith.constant 0 : index
    %26 = vector.load %arg6[%c0_21, %c0_22] : memref<128x512xf32, #tpu.memory_space<vmem>>, vector<128x512xf32>
    %cst_23 = arith.constant dense<0.000000e+00> : vector<8x512xf32>
    %27 = tpu.matmul %21, %26, %cst_23 {dimension_numbers = #tpu.dot_dimension_numbers<[1], [0], [0], [1], [0, 0, 1, 1], [], []>} : vector<8x128xf32>, vector<128x512xf32>, vector<8x512xf32> -> vector<8x512xf32>
    %28 = arith.addf %25, %27 : vector<8x512xf32>
    %29 = vector.extract_strided_slice %28 {offsets = [0, 0], sizes = [8, 384], strides = [1, 1]} : vector<8x512xf32> to vector<8x384xf32>
    %30 = arith.negf %29 : vector<8x384xf32>
    %31 = math.exp %30 : vector<8x384xf32>
    %cst_24 = arith.constant 1.000000e+00 : f32
    %32 = vector.broadcast %cst_24 : f32 to vector<8x384xf32>
    %33 = arith.addf %32, %31 : vector<8x384xf32>
    %34 = arith.divf %32, %33 : vector<8x384xf32>
    %35 = vector.extract_strided_slice %28 {offsets = [0, 384], sizes = [8, 128], strides = [1, 1]} : vector<8x512xf32> to vector<8x128xf32>
    %36 = math.tanh %35 : vector<8x128xf32>
    %37 = vector.extract_strided_slice %34 {offsets = [0, 128], sizes = [8, 128], strides = [1, 1]} : vector<8x384xf32> to vector<8x128xf32>
    %38 = arith.mulf %37, %21 : vector<8x128xf32>
    %39 = vector.extract_strided_slice %34 {offsets = [0, 0], sizes = [8, 128], strides = [1, 1]} : vector<8x384xf32> to vector<8x128xf32>
    %40 = arith.mulf %39, %36 : vector<8x128xf32>
    %41 = arith.addf %38, %40 : vector<8x128xf32>
    %42 = vector.extract_strided_slice %34 {offsets = [0, 256], sizes = [8, 128], strides = [1, 1]} : vector<8x384xf32> to vector<8x128xf32>
    %43 = math.tanh %41 : vector<8x128xf32>
    %44 = arith.mulf %42, %43 : vector<8x128xf32>
    %c1_i32 = arith.constant 1 : i32
    %c8_i32_25 = arith.constant 8 : i32
    %45 = arith.muli %c1_i32, %c8_i32_25 : i32
    %46 = tpu.assume_multiple %45, 8 : i32
    %47 = arith.index_cast %46 : i32 to index
    %c0_26 = arith.constant 0 : index
    %48 = vector.load %arg14[%47, %c0_26] : memref<72x512xf32, #tpu.memory_space<vmem>>, vector<8x512xf32>
    %c0_27 = arith.constant 0 : index
    %c0_28 = arith.constant 0 : index
    %49 = vector.load %arg6[%c0_27, %c0_28] : memref<128x512xf32, #tpu.memory_space<vmem>>, vector<128x512xf32>
    %cst_29 = arith.constant dense<0.000000e+00> : vector<8x512xf32>
    %50 = tpu.matmul %44, %49, %cst_29 {dimension_numbers = #tpu.dot_dimension_numbers<[1], [0], [0], [1], [0, 0, 1, 1], [], []>} : vector<8x128xf32>, vector<128x512xf32>, vector<8x512xf32> -> vector<8x512xf32>
    %51 = arith.addf %48, %50 : vector<8x512xf32>
    %52 = vector.extract_strided_slice %51 {offsets = [0, 0], sizes = [8, 384], strides = [1, 1]} : vector<8x512xf32> to vector<8x384xf32>
    %53 = arith.negf %52 : vector<8x384xf32>
    %54 = math.exp %53 : vector<8x384xf32>
    %cst_30 = arith.constant 1.000000e+00 : f32
    %55 = vector.broadcast %cst_30 : f32 to vector<8x384xf32>
    %56 = arith.addf %55, %54 : vector<8x384xf32>
    %57 = arith.divf %55, %56 : vector<8x384xf32>
    %58 = vector.extract_strided_slice %51 {offsets = [0, 384], sizes = [8, 128], strides = [1, 1]} : vector<8x512xf32> to vector<8x128xf32>
    %59 = math.tanh %58 : vector<8x128xf32>
    %60 = vector.extract_strided_slice %57 {offsets = [0, 128], sizes = [8, 128], strides = [1, 1]} : vector<8x384xf32> to vector<8x128xf32>
    %61 = arith.mulf %60, %41 : vector<8x128xf32>
    %62 = vector.extract_strided_slice %57 {offsets = [0, 0], sizes = [8, 128], strides = [1, 1]} : vector<8x384xf32> to vector<8x128xf32>
    %63 = arith.mulf %62, %59 : vector<8x128xf32>
    %64 = arith.addf %61, %63 : vector<8x128xf32>
    %65 = vector.extract_strided_slice %57 {offsets = [0, 256], sizes = [8, 128], strides = [1, 1]} : vector<8x384xf32> to vector<8x128xf32>
    %66 = math.tanh %64 : vector<8x128xf32>
    %67 = arith.mulf %65, %66 : vector<8x128xf32>
    %c2_i32 = arith.constant 2 : i32
    %c8_i32_31 = arith.constant 8 : i32
    %68 = arith.muli %c2_i32, %c8_i32_31 : i32
    %69 = tpu.assume_multiple %68, 8 : i32
    %70 = arith.index_cast %69 : i32 to index
    %c0_32 = arith.constant 0 : index
    %71 = vector.load %arg14[%70, %c0_32] : memref<72x512xf32, #tpu.memory_space<vmem>>, vector<8x512xf32>
    %c0_33 = arith.constant 0 : index
    %c0_34 = arith.constant 0 : index
    %72 = vector.load %arg6[%c0_33, %c0_34] : memref<128x512xf32, #tpu.memory_space<vmem>>, vector<128x512xf32>
    %cst_35 = arith.constant dense<0.000000e+00> : vector<8x512xf32>
    %73 = tpu.matmul %67, %72, %cst_35 {dimension_numbers = #tpu.dot_dimension_numbers<[1], [0], [0], [1], [0, 0, 1, 1], [], []>} : vector<8x128xf32>, vector<128x512xf32>, vector<8x512xf32> -> vector<8x512xf32>
    %74 = arith.addf %71, %73 : vector<8x512xf32>
    %75 = vector.extract_strided_slice %74 {offsets = [0, 0], sizes = [8, 384], strides = [1, 1]} : vector<8x512xf32> to vector<8x384xf32>
    %76 = arith.negf %75 : vector<8x384xf32>
    %77 = math.exp %76 : vector<8x384xf32>
    %cst_36 = arith.constant 1.000000e+00 : f32
    %78 = vector.broadcast %cst_36 : f32 to vector<8x384xf32>
    %79 = arith.addf %78, %77 : vector<8x384xf32>
    %80 = arith.divf %78, %79 : vector<8x384xf32>
    %81 = vector.extract_strided_slice %74 {offsets = [0, 384], sizes = [8, 128], strides = [1, 1]} : vector<8x512xf32> to vector<8x128xf32>
    %82 = math.tanh %81 : vector<8x128xf32>
    %83 = vector.extract_strided_slice %80 {offsets = [0, 128], sizes = [8, 128], strides = [1, 1]} : vector<8x384xf32> to vector<8x128xf32>
    %84 = arith.mulf %83, %64 : vector<8x128xf32>
    %85 = vector.extract_strided_slice %80 {offsets = [0, 0], sizes = [8, 128], strides = [1, 1]} : vector<8x384xf32> to vector<8x128xf32>
    %86 = arith.mulf %85, %82 : vector<8x128xf32>
    %87 = arith.addf %84, %86 : vector<8x128xf32>
    %88 = vector.extract_strided_slice %80 {offsets = [0, 256], sizes = [8, 128], strides = [1, 1]} : vector<8x384xf32> to vector<8x128xf32>
    %89 = math.tanh %87 : vector<8x128xf32>
    %90 = arith.mulf %88, %89 : vector<8x128xf32>
    %c3_i32 = arith.constant 3 : i32
    %c8_i32_37 = arith.constant 8 : i32
    %91 = arith.muli %c3_i32, %c8_i32_37 : i32
    %92 = tpu.assume_multiple %91, 8 : i32
    %93 = arith.index_cast %92 : i32 to index
    %c0_38 = arith.constant 0 : index
    %94 = vector.load %arg14[%93, %c0_38] : memref<72x512xf32, #tpu.memory_space<vmem>>, vector<8x512xf32>
    %c0_39 = arith.constant 0 : index
    %c0_40 = arith.constant 0 : index
    %95 = vector.load %arg6[%c0_39, %c0_40] : memref<128x512xf32, #tpu.memory_space<vmem>>, vector<128x512xf32>
    %cst_41 = arith.constant dense<0.000000e+00> : vector<8x512xf32>
    %96 = tpu.matmul %90, %95, %cst_41 {dimension_numbers = #tpu.dot_dimension_numbers<[1], [0], [0], [1], [0, 0, 1, 1], [], []>} : vector<8x128xf32>, vector<128x512xf32>, vector<8x512xf32> -> vector<8x512xf32>
    %97 = arith.addf %94, %96 : vector<8x512xf32>
    %98 = vector.extract_strided_slice %97 {offsets = [0, 0], sizes = [8, 384], strides = [1, 1]} : vector<8x512xf32> to vector<8x384xf32>
    %99 = arith.negf %98 : vector<8x384xf32>
    %100 = math.exp %99 : vector<8x384xf32>
    %cst_42 = arith.constant 1.000000e+00 : f32
    %101 = vector.broadcast %cst_42 : f32 to vector<8x384xf32>
    %102 = arith.addf %101, %100 : vector<8x384xf32>
    %103 = arith.divf %101, %102 : vector<8x384xf32>
    %104 = vector.extract_strided_slice %97 {offsets = [0, 384], sizes = [8, 128], strides = [1, 1]} : vector<8x512xf32> to vector<8x128xf32>
    %105 = math.tanh %104 : vector<8x128xf32>
    %106 = vector.extract_strided_slice %103 {offsets = [0, 128], sizes = [8, 128], strides = [1, 1]} : vector<8x384xf32> to vector<8x128xf32>
    %107 = arith.mulf %106, %87 : vector<8x128xf32>
    %108 = vector.extract_strided_slice %103 {offsets = [0, 0], sizes = [8, 128], strides = [1, 1]} : vector<8x384xf32> to vector<8x128xf32>
    %109 = arith.mulf %108, %105 : vector<8x128xf32>
    %110 = arith.addf %107, %109 : vector<8x128xf32>
    %111 = vector.extract_strided_slice %103 {offsets = [0, 256], sizes = [8, 128], strides = [1, 1]} : vector<8x384xf32> to vector<8x128xf32>
    %112 = math.tanh %110 : vector<8x128xf32>
    %113 = arith.mulf %111, %112 : vector<8x128xf32>
    %c4_i32 = arith.constant 4 : i32
    %c8_i32_43 = arith.constant 8 : i32
    %114 = arith.muli %c4_i32, %c8_i32_43 : i32
    %115 = tpu.assume_multiple %114, 8 : i32
    %116 = arith.index_cast %115 : i32 to index
    %c0_44 = arith.constant 0 : index
    %117 = vector.load %arg14[%116, %c0_44] : memref<72x512xf32, #tpu.memory_space<vmem>>, vector<8x512xf32>
    %c0_45 = arith.constant 0 : index
    %c0_46 = arith.constant 0 : index
    %118 = vector.load %arg6[%c0_45, %c0_46] : memref<128x512xf32, #tpu.memory_space<vmem>>, vector<128x512xf32>
    %cst_47 = arith.constant dense<0.000000e+00> : vector<8x512xf32>
    %119 = tpu.matmul %113, %118, %cst_47 {dimension_numbers = #tpu.dot_dimension_numbers<[1], [0], [0], [1], [0, 0, 1, 1], [], []>} : vector<8x128xf32>, vector<128x512xf32>, vector<8x512xf32> -> vector<8x512xf32>
    %120 = arith.addf %117, %119 : vector<8x512xf32>
    %121 = vector.extract_strided_slice %120 {offsets = [0, 0], sizes = [8, 384], strides = [1, 1]} : vector<8x512xf32> to vector<8x384xf32>
    %122 = arith.negf %121 : vector<8x384xf32>
    %123 = math.exp %122 : vector<8x384xf32>
    %cst_48 = arith.constant 1.000000e+00 : f32
    %124 = vector.broadcast %cst_48 : f32 to vector<8x384xf32>
    %125 = arith.addf %124, %123 : vector<8x384xf32>
    %126 = arith.divf %124, %125 : vector<8x384xf32>
    %127 = vector.extract_strided_slice %120 {offsets = [0, 384], sizes = [8, 128], strides = [1, 1]} : vector<8x512xf32> to vector<8x128xf32>
    %128 = math.tanh %127 : vector<8x128xf32>
    %129 = vector.extract_strided_slice %126 {offsets = [0, 128], sizes = [8, 128], strides = [1, 1]} : vector<8x384xf32> to vector<8x128xf32>
    %130 = arith.mulf %129, %110 : vector<8x128xf32>
    %131 = vector.extract_strided_slice %126 {offsets = [0, 0], sizes = [8, 128], strides = [1, 1]} : vector<8x384xf32> to vector<8x128xf32>
    %132 = arith.mulf %131, %128 : vector<8x128xf32>
    %133 = arith.addf %130, %132 : vector<8x128xf32>
    %134 = vector.extract_strided_slice %126 {offsets = [0, 256], sizes = [8, 128], strides = [1, 1]} : vector<8x384xf32> to vector<8x128xf32>
    %135 = math.tanh %133 : vector<8x128xf32>
    %136 = arith.mulf %134, %135 : vector<8x128xf32>
    %c5_i32 = arith.constant 5 : i32
    %c8_i32_49 = arith.constant 8 : i32
    %137 = arith.muli %c5_i32, %c8_i32_49 : i32
    %138 = tpu.assume_multiple %137, 8 : i32
    %139 = arith.index_cast %138 : i32 to index
    %c0_50 = arith.constant 0 : index
    %140 = vector.load %arg14[%139, %c0_50] : memref<72x512xf32, #tpu.memory_space<vmem>>, vector<8x512xf32>
    %c0_51 = arith.constant 0 : index
    %c0_52 = arith.constant 0 : index
    %141 = vector.load %arg6[%c0_51, %c0_52] : memref<128x512xf32, #tpu.memory_space<vmem>>, vector<128x512xf32>
    %cst_53 = arith.constant dense<0.000000e+00> : vector<8x512xf32>
    %142 = tpu.matmul %136, %141, %cst_53 {dimension_numbers = #tpu.dot_dimension_numbers<[1], [0], [0], [1], [0, 0, 1, 1], [], []>} : vector<8x128xf32>, vector<128x512xf32>, vector<8x512xf32> -> vector<8x512xf32>
    %143 = arith.addf %140, %142 : vector<8x512xf32>
    %144 = vector.extract_strided_slice %143 {offsets = [0, 0], sizes = [8, 384], strides = [1, 1]} : vector<8x512xf32> to vector<8x384xf32>
    %145 = arith.negf %144 : vector<8x384xf32>
    %146 = math.exp %145 : vector<8x384xf32>
    %cst_54 = arith.constant 1.000000e+00 : f32
    %147 = vector.broadcast %cst_54 : f32 to vector<8x384xf32>
    %148 = arith.addf %147, %146 : vector<8x384xf32>
    %149 = arith.divf %147, %148 : vector<8x384xf32>
    %150 = vector.extract_strided_slice %143 {offsets = [0, 384], sizes = [8, 128], strides = [1, 1]} : vector<8x512xf32> to vector<8x128xf32>
    %151 = math.tanh %150 : vector<8x128xf32>
    %152 = vector.extract_strided_slice %149 {offsets = [0, 128], sizes = [8, 128], strides = [1, 1]} : vector<8x384xf32> to vector<8x128xf32>
    %153 = arith.mulf %152, %133 : vector<8x128xf32>
    %154 = vector.extract_strided_slice %149 {offsets = [0, 0], sizes = [8, 128], strides = [1, 1]} : vector<8x384xf32> to vector<8x128xf32>
    %155 = arith.mulf %154, %151 : vector<8x128xf32>
    %156 = arith.addf %153, %155 : vector<8x128xf32>
    %157 = vector.extract_strided_slice %149 {offsets = [0, 256], sizes = [8, 128], strides = [1, 1]} : vector<8x384xf32> to vector<8x128xf32>
    %158 = math.tanh %156 : vector<8x128xf32>
    %159 = arith.mulf %157, %158 : vector<8x128xf32>
    %c6_i32 = arith.constant 6 : i32
    %c8_i32_55 = arith.constant 8 : i32
    %160 = arith.muli %c6_i32, %c8_i32_55 : i32
    %161 = tpu.assume_multiple %160, 8 : i32
    %162 = arith.index_cast %161 : i32 to index
    %c0_56 = arith.constant 0 : index
    %163 = vector.load %arg14[%162, %c0_56] : memref<72x512xf32, #tpu.memory_space<vmem>>, vector<8x512xf32>
    %c0_57 = arith.constant 0 : index
    %c0_58 = arith.constant 0 : index
    %164 = vector.load %arg6[%c0_57, %c0_58] : memref<128x512xf32, #tpu.memory_space<vmem>>, vector<128x512xf32>
    %cst_59 = arith.constant dense<0.000000e+00> : vector<8x512xf32>
    %165 = tpu.matmul %159, %164, %cst_59 {dimension_numbers = #tpu.dot_dimension_numbers<[1], [0], [0], [1], [0, 0, 1, 1], [], []>} : vector<8x128xf32>, vector<128x512xf32>, vector<8x512xf32> -> vector<8x512xf32>
    %166 = arith.addf %163, %165 : vector<8x512xf32>
    %167 = vector.extract_strided_slice %166 {offsets = [0, 0], sizes = [8, 384], strides = [1, 1]} : vector<8x512xf32> to vector<8x384xf32>
    %168 = arith.negf %167 : vector<8x384xf32>
    %169 = math.exp %168 : vector<8x384xf32>
    %cst_60 = arith.constant 1.000000e+00 : f32
    %170 = vector.broadcast %cst_60 : f32 to vector<8x384xf32>
    %171 = arith.addf %170, %169 : vector<8x384xf32>
    %172 = arith.divf %170, %171 : vector<8x384xf32>
    %173 = vector.extract_strided_slice %166 {offsets = [0, 384], sizes = [8, 128], strides = [1, 1]} : vector<8x512xf32> to vector<8x128xf32>
    %174 = math.tanh %173 : vector<8x128xf32>
    %175 = vector.extract_strided_slice %172 {offsets = [0, 128], sizes = [8, 128], strides = [1, 1]} : vector<8x384xf32> to vector<8x128xf32>
    %176 = arith.mulf %175, %156 : vector<8x128xf32>
    %177 = vector.extract_strided_slice %172 {offsets = [0, 0], sizes = [8, 128], strides = [1, 1]} : vector<8x384xf32> to vector<8x128xf32>
    %178 = arith.mulf %177, %174 : vector<8x128xf32>
    %179 = arith.addf %176, %178 : vector<8x128xf32>
    %180 = vector.extract_strided_slice %172 {offsets = [0, 256], sizes = [8, 128], strides = [1, 1]} : vector<8x384xf32> to vector<8x128xf32>
    %181 = math.tanh %179 : vector<8x128xf32>
    %182 = arith.mulf %180, %181 : vector<8x128xf32>
    %c7_i32 = arith.constant 7 : i32
    %c8_i32_61 = arith.constant 8 : i32
    %183 = arith.muli %c7_i32, %c8_i32_61 : i32
    %184 = tpu.assume_multiple %183, 8 : i32
    %185 = arith.index_cast %184 : i32 to index
    %c0_62 = arith.constant 0 : index
    %186 = vector.load %arg14[%185, %c0_62] : memref<72x512xf32, #tpu.memory_space<vmem>>, vector<8x512xf32>
    %c0_63 = arith.constant 0 : index
    %c0_64 = arith.constant 0 : index
    %187 = vector.load %arg6[%c0_63, %c0_64] : memref<128x512xf32, #tpu.memory_space<vmem>>, vector<128x512xf32>
    %cst_65 = arith.constant dense<0.000000e+00> : vector<8x512xf32>
    %188 = tpu.matmul %182, %187, %cst_65 {dimension_numbers = #tpu.dot_dimension_numbers<[1], [0], [0], [1], [0, 0, 1, 1], [], []>} : vector<8x128xf32>, vector<128x512xf32>, vector<8x512xf32> -> vector<8x512xf32>
    %189 = arith.addf %186, %188 : vector<8x512xf32>
    %190 = vector.extract_strided_slice %189 {offsets = [0, 0], sizes = [8, 384], strides = [1, 1]} : vector<8x512xf32> to vector<8x384xf32>
    %191 = arith.negf %190 : vector<8x384xf32>
    %192 = math.exp %191 : vector<8x384xf32>
    %cst_66 = arith.constant 1.000000e+00 : f32
    %193 = vector.broadcast %cst_66 : f32 to vector<8x384xf32>
    %194 = arith.addf %193, %192 : vector<8x384xf32>
    %195 = arith.divf %193, %194 : vector<8x384xf32>
    %196 = vector.extract_strided_slice %189 {offsets = [0, 384], sizes = [8, 128], strides = [1, 1]} : vector<8x512xf32> to vector<8x128xf32>
    %197 = math.tanh %196 : vector<8x128xf32>
    %198 = vector.extract_strided_slice %195 {offsets = [0, 128], sizes = [8, 128], strides = [1, 1]} : vector<8x384xf32> to vector<8x128xf32>
    %199 = arith.mulf %198, %179 : vector<8x128xf32>
    %200 = vector.extract_strided_slice %195 {offsets = [0, 0], sizes = [8, 128], strides = [1, 1]} : vector<8x384xf32> to vector<8x128xf32>
    %201 = arith.mulf %200, %197 : vector<8x128xf32>
    %202 = arith.addf %199, %201 : vector<8x128xf32>
    %203 = vector.extract_strided_slice %195 {offsets = [0, 256], sizes = [8, 128], strides = [1, 1]} : vector<8x384xf32> to vector<8x128xf32>
    %204 = math.tanh %202 : vector<8x128xf32>
    %205 = arith.mulf %203, %204 : vector<8x128xf32>
    %c8_i32_67 = arith.constant 8 : i32
    %c8_i32_68 = arith.constant 8 : i32
    %206 = arith.muli %c8_i32_67, %c8_i32_68 : i32
    %207 = tpu.assume_multiple %206, 8 : i32
    %208 = arith.index_cast %207 : i32 to index
    %c0_69 = arith.constant 0 : index
    %209 = vector.load %arg14[%208, %c0_69] : memref<72x512xf32, #tpu.memory_space<vmem>>, vector<8x512xf32>
    %c0_70 = arith.constant 0 : index
    %c0_71 = arith.constant 0 : index
    %210 = vector.load %arg6[%c0_70, %c0_71] : memref<128x512xf32, #tpu.memory_space<vmem>>, vector<128x512xf32>
    %cst_72 = arith.constant dense<0.000000e+00> : vector<8x512xf32>
    %211 = tpu.matmul %205, %210, %cst_72 {dimension_numbers = #tpu.dot_dimension_numbers<[1], [0], [0], [1], [0, 0, 1, 1], [], []>} : vector<8x128xf32>, vector<128x512xf32>, vector<8x512xf32> -> vector<8x512xf32>
    %212 = arith.addf %209, %211 : vector<8x512xf32>
    %213 = vector.extract_strided_slice %212 {offsets = [0, 0], sizes = [8, 384], strides = [1, 1]} : vector<8x512xf32> to vector<8x384xf32>
    %214 = arith.negf %213 : vector<8x384xf32>
    %215 = math.exp %214 : vector<8x384xf32>
    %cst_73 = arith.constant 1.000000e+00 : f32
    %216 = vector.broadcast %cst_73 : f32 to vector<8x384xf32>
    %217 = arith.addf %216, %215 : vector<8x384xf32>
    %218 = arith.divf %216, %217 : vector<8x384xf32>
    %219 = vector.extract_strided_slice %212 {offsets = [0, 384], sizes = [8, 128], strides = [1, 1]} : vector<8x512xf32> to vector<8x128xf32>
    %220 = math.tanh %219 : vector<8x128xf32>
    %221 = vector.extract_strided_slice %218 {offsets = [0, 128], sizes = [8, 128], strides = [1, 1]} : vector<8x384xf32> to vector<8x128xf32>
    %222 = arith.mulf %221, %202 : vector<8x128xf32>
    %223 = vector.extract_strided_slice %218 {offsets = [0, 0], sizes = [8, 128], strides = [1, 1]} : vector<8x384xf32> to vector<8x128xf32>
    %224 = arith.mulf %223, %220 : vector<8x128xf32>
    %225 = arith.addf %222, %224 : vector<8x128xf32>
    %226 = vector.extract_strided_slice %218 {offsets = [0, 256], sizes = [8, 128], strides = [1, 1]} : vector<8x384xf32> to vector<8x128xf32>
    %227 = math.tanh %225 : vector<8x128xf32>
    %228 = arith.mulf %226, %227 : vector<8x128xf32>
    %c9_i32 = arith.constant 9 : i32
    %229 = vector.extract_strided_slice %228 {offsets = [0, 64], sizes = [8, 64], strides = [1, 1]} : vector<8x128xf32> to vector<8x64xf32>
    %c0_74 = arith.constant 0 : index
    %c0_75 = arith.constant 0 : index
    %230 = vector.load %arg7[%c0_74, %c0_75] : memref<64x64xf32, #tpu.memory_space<vmem>>, vector<64x64xf32>
    %cst_76 = arith.constant dense<0.000000e+00> : vector<8x64xf32>
    %231 = tpu.matmul %229, %230, %cst_76 {dimension_numbers = #tpu.dot_dimension_numbers<[1], [0], [0], [1], [0, 0, 1, 1], [], []>} : vector<8x64xf32>, vector<64x64xf32>, vector<8x64xf32> -> vector<8x64xf32>
    %c0_77 = arith.constant 0 : index
    %c0_78 = arith.constant 0 : index
    %232 = vector.load %arg8[%c0_77, %c0_78] : memref<1x64xf32, #tpu.memory_space<vmem>>, vector<1x64xf32>
    %233 = vector.broadcast %232 : vector<1x64xf32> to vector<8x64xf32>
    %234 = arith.addf %231, %233 : vector<8x64xf32>
    %cst_79 = arith.constant dense<0xFF800000> : vector<8xf32>
    %235 = vector.multi_reduction <maximumf>, %234, %cst_79 [1] : vector<8x64xf32> to vector<8xf32>
    %236 = vector.shape_cast %235 : vector<8xf32> to vector<8x1xf32>
    %237 = vector.broadcast %236 : vector<8x1xf32> to vector<8x64xf32>
    %238 = arith.subf %234, %237 : vector<8x64xf32>
    %239 = math.exp %238 : vector<8x64xf32>
    %cst_80 = arith.constant dense<0.000000e+00> : vector<8xf32>
    %240 = vector.multi_reduction <add>, %239, %cst_80 [1] : vector<8x64xf32> to vector<8xf32>
    %241 = vector.shape_cast %240 : vector<8xf32> to vector<8x1xf32>
    %242 = vector.broadcast %241 : vector<8x1xf32> to vector<8x64xf32>
    %243 = arith.divf %239, %242 : vector<8x64xf32>
    %244 = arith.mulf %243, %229 : vector<8x64xf32>
    %c0_81 = arith.constant 0 : index
    %c0_82 = arith.constant 0 : index
    %245 = vector.load %arg9[%c0_81, %c0_82] : memref<64x32xf32, #tpu.memory_space<vmem>>, vector<64x32xf32>
    %cst_83 = arith.constant dense<0.000000e+00> : vector<8x32xf32>
    %246 = tpu.matmul %244, %245, %cst_83 {dimension_numbers = #tpu.dot_dimension_numbers<[1], [0], [0], [1], [0, 0, 1, 1], [], []>} : vector<8x64xf32>, vector<64x32xf32>, vector<8x32xf32> -> vector<8x32xf32>
    %c0_84 = arith.constant 0 : index
    %c0_85 = arith.constant 0 : index
    %247 = vector.load %arg10[%c0_84, %c0_85] : memref<1x32xf32, #tpu.memory_space<vmem>>, vector<1x32xf32>
    %248 = vector.broadcast %247 : vector<1x32xf32> to vector<8x32xf32>
    %249 = arith.addf %246, %248 : vector<8x32xf32>
    %cst_86 = arith.constant 0.000000e+00 : f32
    %250 = vector.broadcast %cst_86 : f32 to vector<8x32xf32>
    %251 = arith.maximumf %249, %250 : vector<8x32xf32>
    %c0_87 = arith.constant 0 : index
    %c0_88 = arith.constant 0 : index
    %252 = vector.load %arg11[%c0_87, %c0_88] : memref<32x1xf32, #tpu.memory_space<vmem>>, vector<32x1xf32>
    %cst_89 = arith.constant dense<0.000000e+00> : vector<8x1xf32>
    %253 = tpu.matmul %251, %252, %cst_89 {dimension_numbers = #tpu.dot_dimension_numbers<[1], [0], [0], [1], [0, 0, 1, 1], [], []>} : vector<8x32xf32>, vector<32x1xf32>, vector<8x1xf32> -> vector<8x1xf32>
    %c0_90 = arith.constant 0 : index
    %c0_91 = arith.constant 0 : index
    %254 = vector.load %arg12[%c0_90, %c0_91] : memref<1x1xf32, #tpu.memory_space<vmem>>, vector<1x1xf32>
    %255 = vector.broadcast %254 : vector<1x1xf32> to vector<8x1xf32>
    %256 = arith.addf %253, %255 : vector<8x1xf32>
    %c0_92 = arith.constant 0 : index
    %c0_93 = arith.constant 0 : index
    %257 = vector.load %arg13[%c0_92, %c0_93] : memref<8x1xf32, #tpu.memory_space<vmem>>, vector<8x1xf32>
    tpu.vector_store %arg13[%c0_92, %c0_93], %256 {strides = array<i32>} : memref<8x1xf32, #tpu.memory_space<vmem>>, vector<8x1xf32>,
    return
  }
  func.func @transform_0(%arg0: i32) -> (i32, i32, i32) {
    %c0_i32 = arith.constant 0 : i32
    %c0_i32_0 = arith.constant 0 : i32
    %c0_i32_1 = arith.constant 0 : i32
    return %arg0, %c0_i32, %c0_i32_0 : i32, i32, i32
  }
  func.func @transform_1(%arg0: i32) -> (i32, i32) {
    %c0_i32 = arith.constant 0 : i32
    %c0_i32_0 = arith.constant 0 : i32
    %c0_i32_1 = arith.constant 0 : i32
    return %c0_i32, %c0_i32_0 : i32, i32
  }
  func.func @transform_2(%arg0: i32) -> (i32, i32) {
    %c0_i32 = arith.constant 0 : i32
    %c0_i32_0 = arith.constant 0 : i32
    %c0_i32_1 = arith.constant 0 : i32
    return %c0_i32, %c0_i32_0 : i32, i32
  }
  func.func @transform_3(%arg0: i32) -> (i32, i32) {
    %c0_i32 = arith.constant 0 : i32
    %c0_i32_0 = arith.constant 0 : i32
    %c0_i32_1 = arith.constant 0 : i32
    return %c0_i32, %c0_i32_0 : i32, i32
  }
  func.func @transform_4(%arg0: i32) -> (i32, i32) {
    %c0_i32 = arith.constant 0 : i32
    %c0_i32_0 = arith.constant 0 : i32
    %c0_i32_1 = arith.constant 0 : i32
    return %c0_i32, %c0_i32_0 : i32, i32
  }
  func.func @transform_5(%arg0: i32) -> (i32, i32) {
    %c0_i32 = arith.constant 0 : i32
    %c0_i32_0 = arith.constant 0 : i32
    %c0_i32_1 = arith.constant 0 : i32
    return %c0_i32, %c0_i32_0 : i32, i32
  }
  func.func @transform_6(%arg0: i32) -> (i32, i32) {
    %c0_i32 = arith.constant 0 : i32
    %c0_i32_0 = arith.constant 0 : i32
    %c0_i32_1 = arith.constant 0 : i32
    return %c0_i32, %c0_i32_0 : i32, i32
  }
  func.func @transform_7(%arg0: i32) -> (i32, i32) {
    %c0_i32 = arith.constant 0 : i32
    %c0_i32_0 = arith.constant 0 : i32
    %c0_i32_1 = arith.constant 0 : i32
    return %c0_i32, %c0_i32_0 : i32, i32
  }
  func.func @transform_8(%arg0: i32) -> (i32, i32) {
    %c0_i32 = arith.constant 0 : i32
    %c0_i32_0 = arith.constant 0 : i32
    %c0_i32_1 = arith.constant 0 : i32
    return %c0_i32, %c0_i32_0 : i32, i32
  }
  func.func @transform_9(%arg0: i32) -> (i32, i32) {
    %c0_i32 = arith.constant 0 : i32
    %c0_i32_0 = arith.constant 0 : i32
    %c0_i32_1 = arith.constant 0 : i32
    return %c0_i32, %c0_i32_0 : i32, i32
  }
  func.func @transform_10(%arg0: i32) -> (i32, i32) {
    %c0_i32 = arith.constant 0 : i32
    %c0_i32_0 = arith.constant 0 : i32
    %c0_i32_1 = arith.constant 0 : i32
    return %c0_i32, %c0_i32_0 : i32, i32
  }
  func.func @transform_11(%arg0: i32) -> (i32, i32) {
    %c0_i32 = arith.constant 0 : i32
    %c0_i32_0 = arith.constant 0 : i32
    %c0_i32_1 = arith.constant 0 : i32
    return %c0_i32, %c0_i32_0 : i32, i32
  }
  func.func @transform_12(%arg0: i32) -> (i32, i32) {
    %c0_i32 = arith.constant 0 : i32
    %c0_i32_0 = arith.constant 0 : i32
    return %arg0, %c0_i32 : i32, i32
  }
}

</mosaic_0001>

<llo_original>
// kernel: tpu_custom_call.1
$region0: #{tpu_custom_call.1}
  #allocation0 [shape = 'u32[]', space=smem, size = 0x4, offset = 0x4, fixed_abs, tag = 'smem constant byte address 0x4 - core index']
  #allocation1 [shape = 'u32[144,128]{1,0:T(1,128)}', space=vmem, size = 0x12000, scoped, tag = 'internal scratch']
  #allocation2 [shape = 'f32[72,512]{1,0:T(8,128)}', space=vmem, size = 0x24000, scoped, tag = 'scratch operand']
  #allocation3 [shape = 'f32[1,1]{1,0:T(1,128)S(1)}', space=vmem, size = 0x200, scoped, tag = 'scoped memory for tpu_custom_call.1']
  %s0 = inlined_call_operand.vmem [shape: f32[1,64,16], index: 0, kind: input, shape index: {}]
  %s1 = inlined_call_operand.vmem [shape: f32[16,128], index: 1, kind: input, shape index: {}]
  %s2 = inlined_call_operand.vmem [shape: f32[1,128], index: 2, kind: input, shape index: {}]
  %s3 = inlined_call_operand.hbm [shape: f32[128,512], index: 3, kind: input, shape index: {}]
  %s4 = inlined_call_operand.vmem [shape: f32[1,512], index: 4, kind: input, shape index: {}]
  %s5 = inlined_call_operand.hbm [shape: f32[128,512], index: 5, kind: input, shape index: {}]
  %s6 = inlined_call_operand.vmem [shape: f32[64,64], index: 6, kind: input, shape index: {}]
  %s7 = inlined_call_operand.vmem [shape: f32[1,64], index: 7, kind: input, shape index: {}]
  %s8 = inlined_call_operand.vmem [shape: f32[64,32], index: 8, kind: input, shape index: {}]
  %s9 = inlined_call_operand.vmem [shape: f32[1,32], index: 9, kind: input, shape index: {}]
  %s10 = inlined_call_operand.vmem [shape: f32[32,1], index: 10, kind: input, shape index: {}]
  %s11 = inlined_call_operand.<no memory space> [shape: f32[1,1], index: 11, kind: input, shape index: {}]
  %s12 = inlined_call_operand.vmem [shape: f32[8,1], index: 12, kind: output, shape index: {}]
  %s13 = sld [smem:[#allocation0]]
  $region66: #{tpu_custom_call.1} parent=0
    _
  %s15 = ssub.s32 1, %s13
  %s16 = scalar_select 0, %s15, %s13
  %v17 = vstv %s11
  %18 = vst [vmem:[#allocation3] sm:$0x1] %v17
  $region1: #{tpu_custom_call.1} parent=0
    #allocation4 [shape = 'u8[262144]{0}', space=vmem, size = 0x40000, scoped, tag = 'input window, operand 3, single buffered']
    #allocation5 [shape = 's32[1]{0}', space=sflag, size = 0x4, scoped, tag = 'scoped memory for tpu_custom_call.1']
    #allocation6 [shape = 'u8[262144]{0}', space=vmem, size = 0x40000, scoped, tag = 'input window, operand 5, single buffered']
    #allocation7 [shape = 's32[1]{0}', space=sflag, size = 0x4, scoped, tag = 'scoped memory for tpu_custom_call.1']
    %19 = vsyncpa [#allocation5], 0
    %20 = vsyncpa [#allocation7], 0
    // Predicated region
    $region2: #{tpu_custom_call.1} parent=1 // pred_check
      _
    $region3: #{tpu_custom_call.1} parent=1 // pred_check_branch
      %22 = sbr.rel (0) target = $region5
    $region4: #{tpu_custom_call.1} parent=1 // pred_region
      _
    $region5: #{tpu_custom_call.1} parent=1 // pred_fallthru
      _
    // Predicated region
    $region6: #{tpu_custom_call.1} parent=1 // pred_check
      _
    $region7: #{tpu_custom_call.1} parent=1 // pred_check_branch
      %24 = sbr.rel (0) target = $region9
    $region8: #{tpu_custom_call.1} parent=1 // pred_region
      _
    $region9: #{tpu_custom_call.1} parent=1 // pred_fallthru
      _
    // Predicated region
    $region10: #{tpu_custom_call.1} parent=1 // pred_check
      _
    $region11: #{tpu_custom_call.1} parent=1 // pred_check_branch
      %26 = sbr.rel (0) target = $region13
    $region12: #{tpu_custom_call.1} parent=1 // pred_region
      _
    $region13: #{tpu_custom_call.1} parent=1 // pred_fallthru
      _
    // Predicated region
    $region14: #{tpu_custom_call.1} parent=1 // pred_check
      _
    $region15: #{tpu_custom_call.1} parent=1 // pred_check_branch
      %28 = sbr.rel (0) target = $region17
    $region16: #{tpu_custom_call.1} parent=1 // pred_region
      %s30 = ssub.s32 8192, 8192
      %31 = vsyncadd [#allocation5], %s30
      %s32 = sshll.u32 [#allocation4], 4
      %s33 = int_to_ptr.vmem [resolvable:$true] %s32
      %38 = dma.hbm_to_vmem [thread:$0]  %s3, 8192, %s33, [#allocation5], 512, 512, 32
    $region17: #{tpu_custom_call.1} parent=1 // pred_fallthru
      _
    // Predicated region
    $region18: #{tpu_custom_call.1} parent=1 // pred_check
      _
    $region19: #{tpu_custom_call.1} parent=1 // pred_check_branch
      %40 = sbr.rel (0) target = $region21
    $region20: #{tpu_custom_call.1} parent=1 // pred_region
      _
    $region21: #{tpu_custom_call.1} parent=1 // pred_fallthru
      _
    // Predicated region
    $region22: #{tpu_custom_call.1} parent=1 // pred_check
      _
    $region23: #{tpu_custom_call.1} parent=1 // pred_check_branch
      %42 = sbr.rel (0) target = $region25
    $region24: #{tpu_custom_call.1} parent=1 // pred_region
      %s44 = ssub.s32 8192, 8192
      %45 = vsyncadd [#allocation7], %s44
      %s46 = sshll.u32 [#allocation6], 4
      %s47 = int_to_ptr.vmem [resolvable:$true] %s46
      %52 = dma.hbm_to_vmem [thread:$0]  %s5, 8192, %s47, [#allocation7], 512, 512, 32
    $region25: #{tpu_custom_call.1} parent=1 // pred_fallthru
      _
    // Predicated region
    $region26: #{tpu_custom_call.1} parent=1 // pred_check
      _
    $region27: #{tpu_custom_call.1} parent=1 // pred_check_branch
      %54 = sbr.rel (0) target = $region29
    $region28: #{tpu_custom_call.1} parent=1 // pred_region
      _
    $region29: #{tpu_custom_call.1} parent=1 // pred_fallthru
      _
    // Predicated region
    $region30: #{tpu_custom_call.1} parent=1 // pred_check
      _
    $region31: #{tpu_custom_call.1} parent=1 // pred_check_branch
      %56 = sbr.rel (0) target = $region33
    $region32: #{tpu_custom_call.1} parent=1 // pred_region
      _
    $region33: #{tpu_custom_call.1} parent=1 // pred_fallthru
      _
    // Predicated region
    $region34: #{tpu_custom_call.1} parent=1 // pred_check
      _
    $region35: #{tpu_custom_call.1} parent=1 // pred_check_branch
      %58 = sbr.rel (0) target = $region37
    $region36: #{tpu_custom_call.1} parent=1 // pred_region
      _
    $region37: #{tpu_custom_call.1} parent=1 // pred_fallthru
      _
    // Predicated region
    $region38: #{tpu_custom_call.1} parent=1 // pred_check
      _
    $region39: #{tpu_custom_call.1} parent=1 // pred_check_branch
      %60 = sbr.rel (0) target = $region41
    $region40: #{tpu_custom_call.1} parent=1 // pred_region
      _
    $region41: #{tpu_custom_call.1} parent=1 // pred_fallthru
      _
    // Predicated region
    $region42: #{tpu_custom_call.1} parent=1 // pred_check
      _
    $region43: #{tpu_custom_call.1} parent=1 // pred_check_branch
      %62 = sbr.rel (0) target = $region45
    $region44: #{tpu_custom_call.1} parent=1 // pred_region
      _
    $region45: #{tpu_custom_call.1} parent=1 // pred_fallthru
      _
    // Predicated region
    $region46: #{tpu_custom_call.1} parent=1 // pred_check
      _
    $region47: #{tpu_custom_call.1} parent=1 // pred_check_branch
      %64 = sbr.rel (0) target = $region49
    $region48: #{tpu_custom_call.1} parent=1 // pred_region
      _
    $region49: #{tpu_custom_call.1} parent=1 // pred_fallthru
      _
    // Predicated region
    $region50: #{tpu_custom_call.1} parent=1 // pred_check
      _
    $region51: #{tpu_custom_call.1} parent=1 // pred_check_branch
      %66 = sbr.rel (0) target = $region53
    $region52: #{tpu_custom_call.1} parent=1 // pred_region
      %67 = dma.done [#allocation5], 8192
    $region53: #{tpu_custom_call.1} parent=1 // pred_fallthru
      _
    // Predicated region
    $region54: #{tpu_custom_call.1} parent=1 // pred_check
      _
    $region55: #{tpu_custom_call.1} parent=1 // pred_check_branch
      %69 = sbr.rel (0) target = $region57
    $region56: #{tpu_custom_call.1} parent=1 // pred_region
      %70 = dma.done [#allocation7], 8192
    $region57: #{tpu_custom_call.1} parent=1 // pred_fallthru
      _
    %v71 = vld [vmem:[%s0] sm:$0xff]
    %v72 = vld [vmem:[%s0 + $0x8] sm:$0xff]
    %v73 = vld [vmem:[%s0 + $0x10] sm:$0xff]
    %v74 = vld [vmem:[%s0 + $0x18] sm:$0xff]
    %v75 = vld [vmem:[%s0 + $0x20] sm:$0xff]
    %v76 = vld [vmem:[%s0 + $0x28] sm:$0xff]
    %v77 = vld [vmem:[%s0 + $0x30] sm:$0xff]
    %v78 = vld [vmem:[%s0 + $0x38] sm:$0xff]
    %v79 = vld [vmem:[%s1] sm:$0xff]
    %v80 = vld [vmem:[%s1 + $0x8] sm:$0xff]
    %v81 = vld [vmem:[%s2] sm:$0x1]
    %v83 = vlaneseq
    %v84 = vshrl.u32 %v83, 7
    %v85 = vsub.s32 0, %v84
    %v86 = vrot.slane %v81, %v85
    %vm88 = vcmask 130048
    %v90 = vsel %vm88, %v71, 0
    %v93 = vsel %vm88, %v72, 0
    %v96 = vsel %vm88, %v73, 0
    %v99 = vsel %vm88, %v74, 0
    %v102 = vsel %vm88, %v75, 0
    %v105 = vsel %vm88, %v76, 0
    %v108 = vsel %vm88, %v77, 0
    %v111 = vsel %vm88, %v78, 0
    %113 = vmatprep.subr.mxu0 0.0
    %114 = vmatpush1.msra.mxu0 0.0
    %115 = vmatprep.subr.mxu0 0.0
    %116 = vmatpush1.msra.mxu0 0.0
    %117 = vmatprep.subr.mxu0 0.0
    %118 = vmatpush1.msra.mxu0 0.0
    %119 = vmatprep.subr.mxu0 0.0
    %120 = vmatpush1.msra.mxu0 0.0
    %121 = vmatprep.subr.mxu0 0.0
    %122 = vmatpush1.msra.mxu0 0.0
    %123 = vmatprep.subr.mxu0 0.0
    %124 = vmatpush1.msra.mxu0 0.0
    %125 = vmatprep.subr.mxu0 0.0
    %126 = vmatpush1.msra.mxu0 0.0
    %127 = vmatprep.subr.mxu0 0.0
    %128 = vmatpush1.msra.mxu0 0.0
    %129 = vmatprep.subr.mxu0 0.0
    %130 = vmatpush1.msra.mxu0 0.0
    %131 = vmatprep.subr.mxu0 0.0
    %132 = vmatpush1.msra.mxu0 0.0
    %133 = vmatprep.subr.mxu0 0.0
    %134 = vmatpush1.msra.mxu0 0.0
    %135 = vmatprep.subr.mxu0 0.0
    %136 = vmatpush1.msra.mxu0 0.0
    %137 = vmatprep.subr.mxu0 0.0
    %138 = vmatpush1.msra.mxu0 0.0
    %139 = vmatprep.subr.mxu0 0.0
    %140 = vmatpush1.msra.mxu0 0.0
    %141 = vmatprep.subr.mxu0 0.0
    %142 = vmatpush1.msra.mxu0 %v80
    %143 = vmatprep.subr.mxu0 0.0
    %144 = vmatpush1.msra.mxu0 %v79
    %145 = vmatprep.subr.mxu0 0.0
    %146 = vmatpush2.msra.mxu0 0.0
    %147 = vmatprep.subr.mxu0 0.0
    %148 = vmatpush2.msra.mxu0 0.0
    %149 = vmatprep.subr.mxu0 0.0
    %150 = vmatpush2.msra.mxu0 0.0
    %151 = vmatprep.subr.mxu0 0.0
    %152 = vmatpush2.msra.mxu0 0.0
    %153 = vmatprep.subr.mxu0 0.0
    %154 = vmatpush2.msra.mxu0 0.0
    %155 = vmatprep.subr.mxu0 0.0
    %156 = vmatpush2.msra.mxu0 0.0
    %157 = vmatprep.subr.mxu0 0.0
    %158 = vmatpush2.msra.mxu0 0.0
    %159 = vmatprep.subr.mxu0 0.0
    %160 = vmatpush2.msra.mxu0 0.0
    %161 = vmatprep.subr.mxu0 0.0
    %162 = vmatpush2.msra.mxu0 0.0
    %163 = vmatprep.subr.mxu0 0.0
    %164 = vmatpush2.msra.mxu0 0.0
    %165 = vmatprep.subr.mxu0 0.0
    %166 = vmatpush2.msra.mxu0 0.0
    %167 = vmatprep.subr.mxu0 0.0
    %168 = vmatpush2.msra.mxu0 0.0
    %169 = vmatprep.subr.mxu0 0.0
    %170 = vmatpush2.msra.mxu0 0.0
    %171 = vmatprep.subr.mxu0 0.0
    %172 = vmatpush2.msra.mxu0 0.0
    %173 = vmatprep.subr.mxu0 0.0
    %174 = vmatpush2.msra.mxu0 0.0
    %175 = vmatprep.subr.mxu0 0.0
    %176 = vmatpush2.msra.mxu0 0.0
    %177 = vmatprep.mubr.f32.mxu0 0.0
    %178 = vmatmul.mubr.f32.gmra.mxu0 %v90
    %v179 = vpop.f32.mrf.mxu0
    %v180 = vadd.f32 %v86, %v179
    %v181 = vpop.f32.mrf.mxu0
    %182 = vmatprep.mubr.f32.mxu0 0.0
    %183 = vmatmul.mubr.f32.gmra.mxu0 %v93
    %v184 = vpop.f32.mrf.mxu0
    %v185 = vadd.f32 %v86, %v184
    %v186 = vpop.f32.mrf.mxu0
    %187 = vmatprep.mubr.f32.mxu0 0.0
    %188 = vmatmul.mubr.f32.gmra.mxu0 %v96
    %v189 = vpop.f32.mrf.mxu0
    %v190 = vadd.f32 %v86, %v189
    %v191 = vpop.f32.mrf.mxu0
    %192 = vmatprep.mubr.f32.mxu0 0.0
    %193 = vmatmul.mubr.f32.gmra.mxu0 %v99
    %v194 = vpop.f32.mrf.mxu0
    %v195 = vadd.f32 %v86, %v194
    %v196 = vpop.f32.mrf.mxu0
    %197 = vmatprep.mubr.f32.mxu0 0.0
    %198 = vmatmul.mubr.f32.gmra.mxu0 %v102
    %v199 = vpop.f32.mrf.mxu0
    %v200 = vadd.f32 %v86, %v199
    %v201 = vpop.f32.mrf.mxu0
    %202 = vmatprep.mubr.f32.mxu0 0.0
    %203 = vmatmul.mubr.f32.gmra.mxu0 %v105
    %v204 = vpop.f32.mrf.mxu0
    %v205 = vadd.f32 %v86, %v204
    %v206 = vpop.f32.mrf.mxu0
    %207 = vmatprep.mubr.f32.mxu0 0.0
    %208 = vmatmul.mubr.f32.gmra.mxu0 %v108
    %v209 = vpop.f32.mrf.mxu0
    %v210 = vadd.f32 %v86, %v209
    %v211 = vpop.f32.mrf.mxu0
    %212 = vmatprep.mubr.f32.mxu0 0.0
    %213 = vmatmul.mubr.f32.gmra.mxu0 %v111
    %v214 = vpop.f32.mrf.mxu0
    %v215 = vadd.f32 %v86, %v214
    %v216 = vpop.f32.mrf.mxu0
    %217 = vdwg.mxu0
    %v218 = vmax.f32 %v180, 0.0
    %v219 = vmax.f32 %v185, 0.0
    %v220 = vmax.f32 %v190, 0.0
    %v221 = vmax.f32 %v195, 0.0
    %v222 = vmax.f32 %v200, 0.0
    %v223 = vmax.f32 %v205, 0.0
    %v224 = vmax.f32 %v210, 0.0
    %v225 = vmax.f32 %v215, 0.0
    %v226 = vld [vmem:[#allocation4] sm:$0xff]
    %v227 = vld [vmem:[#allocation4 + $0x8] sm:$0xff]
    %v228 = vld [vmem:[#allocation4 + $0x10] sm:$0xff]
    %v229 = vld [vmem:[#allocation4 + $0x18] sm:$0xff]
    %v230 = vld [vmem:[#allocation4 + $0x20] sm:$0xff]
    %v231 = vld [vmem:[#allocation4 + $0x28] sm:$0xff]
    %v232 = vld [vmem:[#allocation4 + $0x30] sm:$0xff]
    %v233 = vld [vmem:[#allocation4 + $0x38] sm:$0xff]
    %v234 = vld [vmem:[#allocation4 + $0x40] sm:$0xff]
    %v235 = vld [vmem:[#allocation4 + $0x48] sm:$0xff]
    %v236 = vld [vmem:[#allocation4 + $0x50] sm:$0xff]
    %v237 = vld [vmem:[#allocation4 + $0x58] sm:$0xff]
    %v238 = vld [vmem:[#allocation4 + $0x60] sm:$0xff]
    %v239 = vld [vmem:[#allocation4 + $0x68] sm:$0xff]
    %v240 = vld [vmem:[#allocation4 + $0x70] sm:$0xff]
    %v241 = vld [vmem:[#allocation4 + $0x78] sm:$0xff]
    %v242 = vld [vmem:[#allocation4 + $0x80] sm:$0xff]
    %v243 = vld [vmem:[#allocation4 + $0x88] sm:$0xff]
    %v244 = vld [vmem:[#allocation4 + $0x90] sm:$0xff]
    %v245 = vld [vmem:[#allocation4 + $0x98] sm:$0xff]
    %v246 = vld [vmem:[#allocation4 + $0xa0] sm:$0xff]
    %v247 = vld [vmem:[#allocation4 + $0xa8] sm:$0xff]
    %v248 = vld [vmem:[#allocation4 + $0xb0] sm:$0xff]
    %v249 = vld [vmem:[#allocation4 + $0xb8] sm:$0xff]
    %v250 = vld [vmem:[#allocation4 + $0xc0] sm:$0xff]
    %v251 = vld [vmem:[#allocation4 + $0xc8] sm:$0xff]
    %v252 = vld [vmem:[#allocation4 + $0xd0] sm:$0xff]
    %v253 = vld [vmem:[#allocation4 + $0xd8] sm:$0xff]
    %v254 = vld [vmem:[#allocation4 + $0xe0] sm:$0xff]
    %v255 = vld [vmem:[#allocation4 + $0xe8] sm:$0xff]
    %v256 = vld [vmem:[#allocation4 + $0xf0] sm:$0xff]
    %v257 = vld [vmem:[#allocation4 + $0xf8] sm:$0xff]
    %v258 = vld [vmem:[#allocation4 + $0x100] sm:$0xff]
    %v259 = vld [vmem:[#allocation4 + $0x108] sm:$0xff]
    %v260 = vld [vmem:[#allocation4 + $0x110] sm:$0xff]
    %v261 = vld [vmem:[#allocation4 + $0x118] sm:$0xff]
    %v262 = vld [vmem:[#allocation4 + $0x120] sm:$0xff]
    %v263 = vld [vmem:[#allocation4 + $0x128] sm:$0xff]
    %v264 = vld [vmem:[#allocation4 + $0x130] sm:$0xff]
    %v265 = vld [vmem:[#allocation4 + $0x138] sm:$0xff]
    %v266 = vld [vmem:[#allocation4 + $0x140] sm:$0xff]
    %v267 = vld [vmem:[#allocation4 + $0x148] sm:$0xff]
    %v268 = vld [vmem:[#allocation4 + $0x150] sm:$0xff]
    %v269 = vld [vmem:[#allocation4 + $0x158] sm:$0xff]
    %v270 = vld [vmem:[#allocation4 + $0x160] sm:$0xff]
    %v271 = vld [vmem:[#allocation4 + $0x168] sm:$0xff]
    %v272 = vld [vmem:[#allocation4 + $0x170] sm:$0xff]
    %v273 = vld [vmem:[#allocation4 + $0x178] sm:$0xff]
    %v274 = vld [vmem:[#allocation4 + $0x180] sm:$0xff]
    %v275 = vld [vmem:[#allocation4 + $0x188] sm:$0xff]
    %v276 = vld [vmem:[#allocation4 + $0x190] sm:$0xff]
    %v277 = vld [vmem:[#allocation4 + $0x198] sm:$0xff]
    %v278 = vld [vmem:[#allocation4 + $0x1a0] sm:$0xff]
    %v279 = vld [vmem:[#allocation4 + $0x1a8] sm:$0xff]
    %v280 = vld [vmem:[#allocation4 + $0x1b0] sm:$0xff]
    %v281 = vld [vmem:[#allocation4 + $0x1b8] sm:$0xff]
    %v282 = vld [vmem:[#allocation4 + $0x1c0] sm:$0xff]
    %v283 = vld [vmem:[#allocation4 + $0x1c8] sm:$0xff]
    %v284 = vld [vmem:[#allocation4 + $0x1d0] sm:$0xff]
    %v285 = vld [vmem:[#allocation4 + $0x1d8] sm:$0xff]
    %v286 = vld [vmem:[#allocation4 + $0x1e0] sm:$0xff]
    %v287 = vld [vmem:[#allocation4 + $0x1e8] sm:$0xff]
    %v288 = vld [vmem:[#allocation4 + $0x1f0] sm:$0xff]
    %v289 = vld [vmem:[#allocation4 + $0x1f8] sm:$0xff]
    %v290 = vld [vmem:[%s4] sm:$0xf]
    %v292 = vlaneseq
    %v293 = vshrl.u32 %v292, 7
    %v294 = vsub.s32 0, %v293
    %v295 = vrot.slane %v290, %v294
    %v296 = vlaneseq
    %v297 = vshrl.u32 %v296, 7
    %v298 = vsub.s32 1, %v297
    %v299 = vrot.slane %v290, %v298
    %v300 = vlaneseq
    %v301 = vshrl.u32 %v300, 7
    %v302 = vsub.s32 2, %v301
    %v303 = vrot.slane %v290, %v302
    %v304 = vlaneseq
    %v305 = vshrl.u32 %v304, 7
    %v306 = vsub.s32 3, %v305
    %v307 = vrot.slane %v290, %v306
    %312 = vmatprep.subr.mxu0 %v287
    %313 = vmatpush1.msra.mxu0 %v286
    %314 = vmatprep.subr.mxu0 %v283
    %315 = vmatpush1.msra.mxu0 %v282
    %316 = vmatprep.subr.mxu0 %v279
    %317 = vmatpush1.msra.mxu0 %v278
    %318 = vmatprep.subr.mxu0 %v275
    %319 = vmatpush1.msra.mxu0 %v274
    %320 = vmatprep.subr.mxu0 %v271
    %321 = vmatpush1.msra.mxu0 %v270
    %322 = vmatprep.subr.mxu0 %v267
    %323 = vmatpush1.msra.mxu0 %v266
    %324 = vmatprep.subr.mxu0 %v263
    %325 = vmatpush1.msra.mxu0 %v262
    %326 = vmatprep.subr.mxu0 %v259
    %327 = vmatpush1.msra.mxu0 %v258
    %328 = vmatprep.subr.mxu0 %v255
    %329 = vmatpush1.msra.mxu0 %v254
    %330 = vmatprep.subr.mxu0 %v251
    %331 = vmatpush1.msra.mxu0 %v250
    %332 = vmatprep.subr.mxu0 %v247
    %333 = vmatpush1.msra.mxu0 %v246
    %334 = vmatprep.subr.mxu0 %v243
    %335 = vmatpush1.msra.mxu0 %v242
    %336 = vmatprep.subr.mxu0 %v239
    %337 = vmatpush1.msra.mxu0 %v238
    %338 = vmatprep.subr.mxu0 %v235
    %339 = vmatpush1.msra.mxu0 %v234
    %340 = vmatprep.subr.mxu0 %v231
    %341 = vmatpush1.msra.mxu0 %v230
    %342 = vmatprep.subr.mxu0 %v227
    %343 = vmatpush1.msra.mxu0 %v226
    %344 = vmatprep.subr.mxu0 0.0
    %345 = vmatpush2.msra.mxu0 0.0
    %346 = vmatprep.subr.mxu0 0.0
    %347 = vmatpush2.msra.mxu0 0.0
    %348 = vmatprep.subr.mxu0 0.0
    %349 = vmatpush2.msra.mxu0 0.0
    %350 = vmatprep.subr.mxu0 0.0
    %351 = vmatpush2.msra.mxu0 0.0
    %352 = vmatprep.subr.mxu0 0.0
    %353 = vmatpush2.msra.mxu0 0.0
    %354 = vmatprep.subr.mxu0 0.0
    %355 = vmatpush2.msra.mxu0 0.0
    %356 = vmatprep.subr.mxu0 0.0
    %357 = vmatpush2.msra.mxu0 0.0
    %358 = vmatprep.subr.mxu0 0.0
    %359 = vmatpush2.msra.mxu0 0.0
    %360 = vmatprep.subr.mxu0 0.0
    %361 = vmatpush2.msra.mxu0 0.0
    %362 = vmatprep.subr.mxu0 0.0
    %363 = vmatpush2.msra.mxu0 0.0
    %364 = vmatprep.subr.mxu0 0.0
    %365 = vmatpush2.msra.mxu0 0.0
    %366 = vmatprep.subr.mxu0 0.0
    %367 = vmatpush2.msra.mxu0 0.0
    %368 = vmatprep.subr.mxu0 0.0
    %369 = vmatpush2.msra.mxu0 0.0
    %370 = vmatprep.subr.mxu0 0.0
    %371 = vmatpush2.msra.mxu0 0.0
    %372 = vmatprep.subr.mxu0 0.0
    %373 = vmatpush2.msra.mxu0 0.0
    %374 = vmatprep.subr.mxu0 0.0
    %375 = vmatpush2.msra.mxu0 0.0
    %376 = vmatprep.mubr.f32.mxu0 0.0
    %377 = vmatmul.mubr.f32.gmra.mxu0 %v218
    %v378 = vpop.f32.mrf.mxu0
    %v379 = vadd.f32 %v295, %v378
    %v380 = vpop.f32.mrf.mxu0
    %v381 = vadd.f32 %v299, %v380
    %382 = vmatprep.mubr.f32.mxu0 0.0
    %383 = vmatmul.mubr.f32.gmra.mxu0 %v219
    %v384 = vpop.f32.mrf.mxu0
    %v385 = vadd.f32 %v295, %v384
    %v386 = vpop.f32.mrf.mxu0
    %v387 = vadd.f32 %v299, %v386
    %388 = vmatprep.mubr.f32.mxu0 0.0
    %389 = vmatmul.mubr.f32.gmra.mxu0 %v220
    %v390 = vpop.f32.mrf.mxu0
    %v391 = vadd.f32 %v295, %v390
    %v392 = vpop.f32.mrf.mxu0
    %v393 = vadd.f32 %v299, %v392
    %394 = vmatprep.mubr.f32.mxu0 0.0
    %395 = vmatmul.mubr.f32.gmra.mxu0 %v221
    %v396 = vpop.f32.mrf.mxu0
    %v397 = vadd.f32 %v295, %v396
    %v398 = vpop.f32.mrf.mxu0
    %v399 = vadd.f32 %v299, %v398
    %400 = vmatprep.mubr.f32.mxu0 0.0
    %401 = vmatmul.mubr.f32.gmra.mxu0 %v222
    %v402 = vpop.f32.mrf.mxu0
    %v403 = vadd.f32 %v295, %v402
    %v404 = vpop.f32.mrf.mxu0
    %v405 = vadd.f32 %v299, %v404
    %406 = vmatprep.mubr.f32.mxu0 0.0
    %407 = vmatmul.mubr.f32.gmra.mxu0 %v223
    %v408 = vpop.f32.mrf.mxu0
    %v409 = vadd.f32 %v295, %v408
    %v410 = vpop.f32.mrf.mxu0
    %v411 = vadd.f32 %v299, %v410
    %412 = vmatprep.mubr.f32.mxu0 0.0
    %413 = vmatmul.mubr.f32.gmra.mxu0 %v224
    %v414 = vpop.f32.mrf.mxu0
    %v415 = vadd.f32 %v295, %v414
    %v416 = vpop.f32.mrf.mxu0
    %v417 = vadd.f32 %v299, %v416
    %418 = vmatprep.mubr.f32.mxu0 0.0
    %419 = vmatmul.mubr.f32.gmra.mxu0 %v225
    %v420 = vpop.f32.mrf.mxu0
    %v421 = vadd.f32 %v295, %v420
    %v422 = vpop.f32.mrf.mxu0
    %v423 = vadd.f32 %v299, %v422
    %424 = vdwg.mxu0
    %425 = vmatprep.subr.mxu0 %v289
    %426 = vmatpush1.msra.mxu0 %v288
    %427 = vmatprep.subr.mxu0 %v285
    %428 = vmatpush1.msra.mxu0 %v284
    %429 = vmatprep.subr.mxu0 %v281
    %430 = vmatpush1.msra.mxu0 %v280
    %431 = vmatprep.subr.mxu0 %v277
    %432 = vmatpush1.msra.mxu0 %v276
    %433 = vmatprep.subr.mxu0 %v273
    %434 = vmatpush1.msra.mxu0 %v272
    %435 = vmatprep.subr.mxu0 %v269
    %436 = vmatpush1.msra.mxu0 %v268
    %437 = vmatprep.subr.mxu0 %v265
    %438 = vmatpush1.msra.mxu0 %v264
    %439 = vmatprep.subr.mxu0 %v261
    %440 = vmatpush1.msra.mxu0 %v260
    %441 = vmatprep.subr.mxu0 %v257
    %442 = vmatpush1.msra.mxu0 %v256
    %443 = vmatprep.subr.mxu0 %v253
    %444 = vmatpush1.msra.mxu0 %v252
    %445 = vmatprep.subr.mxu0 %v249
    %446 = vmatpush1.msra.mxu0 %v248
    %447 = vmatprep.subr.mxu0 %v245
    %448 = vmatpush1.msra.mxu0 %v244
    %449 = vmatprep.subr.mxu0 %v241
    %450 = vmatpush1.msra.mxu0 %v240
    %451 = vmatprep.subr.mxu0 %v237
    %452 = vmatpush1.msra.mxu0 %v236
    %453 = vmatprep.subr.mxu0 %v233
    %454 = vmatpush1.msra.mxu0 %v232
    %455 = vmatprep.subr.mxu0 %v229
    %456 = vmatpush1.msra.mxu0 %v228
    %457 = vmatprep.subr.mxu0 0.0
    %458 = vmatpush2.msra.mxu0 0.0
    %459 = vmatprep.subr.mxu0 0.0
    %460 = vmatpush2.msra.mxu0 0.0
    %461 = vmatprep.subr.mxu0 0.0
    %462 = vmatpush2.msra.mxu0 0.0
    %463 = vmatprep.subr.mxu0 0.0
    %464 = vmatpush2.msra.mxu0 0.0
    %465 = vmatprep.subr.mxu0 0.0
    %466 = vmatpush2.msra.mxu0 0.0
    %467 = vmatprep.subr.mxu0 0.0
    %468 = vmatpush2.msra.mxu0 0.0
    %469 = vmatprep.subr.mxu0 0.0
    %470 = vmatpush2.msra.mxu0 0.0
    %471 = vmatprep.subr.mxu0 0.0
    %472 = vmatpush2.msra.mxu0 0.0
    %473 = vmatprep.subr.mxu0 0.0
    %474 = vmatpush2.msra.mxu0 0.0
    %475 = vmatprep.subr.mxu0 0.0
    %476 = vmatpush2.msra.mxu0 0.0
    %477 = vmatprep.subr.mxu0 0.0
    %478 = vmatpush2.msra.mxu0 0.0
    %479 = vmatprep.subr.mxu0 0.0
    %480 = vmatpush2.msra.mxu0 0.0
    %481 = vmatprep.subr.mxu0 0.0
    %482 = vmatpush2.msra.mxu0 0.0
    %483 = vmatprep.subr.mxu0 0.0
    %484 = vmatpush2.msra.mxu0 0.0
    %485 = vmatprep.subr.mxu0 0.0
    %486 = vmatpush2.msra.mxu0 0.0
    %487 = vmatprep.subr.mxu0 0.0
    %488 = vmatpush2.msra.mxu0 0.0
    %489 = vmatprep.mubr.f32.mxu0 0.0
    %490 = vmatmul.mubr.f32.gmra.mxu0 %v218
    %v491 = vpop.f32.mrf.mxu0
    %v492 = vadd.f32 %v303, %v491
    %v493 = vpop.f32.mrf.mxu0
    %v494 = vadd.f32 %v307, %v493
    %495 = vmatprep.mubr.f32.mxu0 0.0
    %496 = vmatmul.mubr.f32.gmra.mxu0 %v219
    %v497 = vpop.f32.mrf.mxu0
    %v498 = vadd.f32 %v303, %v497
    %v499 = vpop.f32.mrf.mxu0
    %v500 = vadd.f32 %v307, %v499
    %501 = vmatprep.mubr.f32.mxu0 0.0
    %502 = vmatmul.mubr.f32.gmra.mxu0 %v220
    %v503 = vpop.f32.mrf.mxu0
    %v504 = vadd.f32 %v303, %v503
    %v505 = vpop.f32.mrf.mxu0
    %v506 = vadd.f32 %v307, %v505
    %507 = vmatprep.mubr.f32.mxu0 0.0
    %508 = vmatmul.mubr.f32.gmra.mxu0 %v221
    %v509 = vpop.f32.mrf.mxu0
    %v510 = vadd.f32 %v303, %v509
    %v511 = vpop.f32.mrf.mxu0
    %v512 = vadd.f32 %v307, %v511
    %513 = vmatprep.mubr.f32.mxu0 0.0
    %514 = vmatmul.mubr.f32.gmra.mxu0 %v222
    %v515 = vpop.f32.mrf.mxu0
    %v516 = vadd.f32 %v303, %v515
    %v517 = vpop.f32.mrf.mxu0
    %v518 = vadd.f32 %v307, %v517
    %519 = vmatprep.mubr.f32.mxu0 0.0
    %520 = vmatmul.mubr.f32.gmra.mxu0 %v223
    %v521 = vpop.f32.mrf.mxu0
    %v522 = vadd.f32 %v303, %v521
    %v523 = vpop.f32.mrf.mxu0
    %v524 = vadd.f32 %v307, %v523
    %525 = vmatprep.mubr.f32.mxu0 0.0
    %526 = vmatmul.mubr.f32.gmra.mxu0 %v224
    %v527 = vpop.f32.mrf.mxu0
    %v528 = vadd.f32 %v303, %v527
    %v529 = vpop.f32.mrf.mxu0
    %v530 = vadd.f32 %v307, %v529
    %531 = vmatprep.mubr.f32.mxu0 0.0
    %532 = vmatmul.mubr.f32.gmra.mxu0 %v225
    %v533 = vpop.f32.mrf.mxu0
    %v534 = vadd.f32 %v303, %v533
    %v535 = vpop.f32.mrf.mxu0
    %v536 = vadd.f32 %v307, %v535
    %537 = vdwg.mxu0
    %538 = vst [vmem:[#allocation2] sm:$0xff] %v379
    %539 = vst [vmem:[#allocation2 + $0x8] sm:$0xff] %v381
    %540 = vst [vmem:[#allocation2 + $0x10] sm:$0xff] %v492
    %541 = vst [vmem:[#allocation2 + $0x18] sm:$0xff] %v494
    %542 = vst [vmem:[#allocation2 + $0x20] sm:$0xff] %v385
    %543 = vst [vmem:[#allocation2 + $0x28] sm:$0xff] %v387
    %544 = vst [vmem:[#allocation2 + $0x30] sm:$0xff] %v498
    %545 = vst [vmem:[#allocation2 + $0x38] sm:$0xff] %v500
    %546 = vst [vmem:[#allocation2 + $0x40] sm:$0xff] %v391
    %547 = vst [vmem:[#allocation2 + $0x48] sm:$0xff] %v393
    %548 = vst [vmem:[#allocation2 + $0x50] sm:$0xff] %v504
    %549 = vst [vmem:[#allocation2 + $0x58] sm:$0xff] %v506
    %550 = vst [vmem:[#allocation2 + $0x60] sm:$0xff] %v397
    %551 = vst [vmem:[#allocation2 + $0x68] sm:$0xff] %v399
    %552 = vst [vmem:[#allocation2 + $0x70] sm:$0xff] %v510
    %553 = vst [vmem:[#allocation2 + $0x78] sm:$0xff] %v512
    %554 = vst [vmem:[#allocation2 + $0x80] sm:$0xff] %v403
    %555 = vst [vmem:[#allocation2 + $0x88] sm:$0xff] %v405
    %556 = vst [vmem:[#allocation2 + $0x90] sm:$0xff] %v516
    %557 = vst [vmem:[#allocation2 + $0x98] sm:$0xff] %v518
    %558 = vst [vmem:[#allocation2 + $0xa0] sm:$0xff] %v409
    %559 = vst [vmem:[#allocation2 + $0xa8] sm:$0xff] %v411
    %560 = vst [vmem:[#allocation2 + $0xb0] sm:$0xff] %v522
    %561 = vst [vmem:[#allocation2 + $0xb8] sm:$0xff] %v524
    %562 = vst [vmem:[#allocation2 + $0xc0] sm:$0xff] %v415
    %563 = vst [vmem:[#allocation2 + $0xc8] sm:$0xff] %v417
    %564 = vst [vmem:[#allocation2 + $0xd0] sm:$0xff] %v528
    %565 = vst [vmem:[#allocation2 + $0xd8] sm:$0xff] %v530
    %566 = vst [vmem:[#allocation2 + $0xe0] sm:$0xff] %v421
    %567 = vst [vmem:[#allocation2 + $0xe8] sm:$0xff] %v423
    %568 = vst [vmem:[#allocation2 + $0xf0] sm:$0xff] %v534
    %569 = vst [vmem:[#allocation2 + $0xf8] sm:$0xff] %v536
    %v570 = vld [vmem:[%s4] sm:$0xf]
    %v572 = vlaneseq
    %v573 = vshrl.u32 %v572, 7
    %v574 = vsub.s32 0, %v573
    %v575 = vrot.slane %v570, %v574
    %v576 = vlaneseq
    %v577 = vshrl.u32 %v576, 7
    %v578 = vsub.s32 1, %v577
    %v579 = vrot.slane %v570, %v578
    %v580 = vlaneseq
    %v581 = vshrl.u32 %v580, 7
    %v582 = vsub.s32 2, %v581
    %v583 = vrot.slane %v570, %v582
    %v584 = vlaneseq
    %v585 = vshrl.u32 %v584, 7
    %v586 = vsub.s32 3, %v585
    %v587 = vrot.slane %v570, %v586
    %592 = vst [vmem:[#allocation2 + $0x100] sm:$0xff] %v575
    %593 = vst [vmem:[#allocation2 + $0x108] sm:$0xff] %v579
    %594 = vst [vmem:[#allocation2 + $0x110] sm:$0xff] %v583
    %595 = vst [vmem:[#allocation2 + $0x118] sm:$0xff] %v587
    %vm596 = vcmask 1048064
    %597 = vst.msk [vmem:[#allocation2 + $0x18] sm:$0xff] %vm596, 0.0
    %s598 = smul.u32 0, 4
    %s599 = smul.addr %s598, 8
    %s600 = scalar_lea.vmem [#allocation2], %s599
    %v601 = vld [vmem:[%s600] sm:$0xff]
    %v602 = vld [vmem:[%s600 + $0x8] sm:$0xff]
    %v603 = vld [vmem:[%s600 + $0x10] sm:$0xff]
    %v604 = vld [vmem:[%s600 + $0x18] sm:$0xff]
    %v605 = vld [vmem:[#allocation6] sm:$0xff]
    %v606 = vld [vmem:[#allocation6 + $0x8] sm:$0xff]
    %v607 = vld [vmem:[#allocation6 + $0x10] sm:$0xff]
    %v608 = vld [vmem:[#allocation6 + $0x18] sm:$0xff]
    %v609 = vld [vmem:[#allocation6 + $0x20] sm:$0xff]
    %v610 = vld [vmem:[#allocation6 + $0x28] sm:$0xff]
    %v611 = vld [vmem:[#allocation6 + $0x30] sm:$0xff]
    %v612 = vld [vmem:[#allocation6 + $0x38] sm:$0xff]
    %v613 = vld [vmem:[#allocation6 + $0x40] sm:$0xff]
    %v614 = vld [vmem:[#allocation6 + $0x48] sm:$0xff]
    %v615 = vld [vmem:[#allocation6 + $0x50] sm:$0xff]
    %v616 = vld [vmem:[#allocation6 + $0x58] sm:$0xff]
    %v617 = vld [vmem:[#allocation6 + $0x60] sm:$0xff]
    %v618 = vld [vmem:[#allocation6 + $0x68] sm:$0xff]
    %v619 = vld [vmem:[#allocation6 + $0x70] sm:$0xff]
    %v620 = vld [vmem:[#allocation6 + $0x78] sm:$0xff]
    %v621 = vld [vmem:[#allocation6 + $0x80] sm:$0xff]
    %v622 = vld [vmem:[#allocation6 + $0x88] sm:$0xff]
    %v623 = vld [vmem:[#allocation6 + $0x90] sm:$0xff]
    %v624 = vld [vmem:[#allocation6 + $0x98] sm:$0xff]
    %v625 = vld [vmem:[#allocation6 + $0xa0] sm:$0xff]
    %v626 = vld [vmem:[#allocation6 + $0xa8] sm:$0xff]
    %v627 = vld [vmem:[#allocation6 + $0xb0] sm:$0xff]
    %v628 = vld [vmem:[#allocation6 + $0xb8] sm:$0xff]
    %v629 = vld [vmem:[#allocation6 + $0xc0] sm:$0xff]
    %v630 = vld [vmem:[#allocation6 + $0xc8] sm:$0xff]
    %v631 = vld [vmem:[#allocation6 + $0xd0] sm:$0xff]
    %v632 = vld [vmem:[#allocation6 + $0xd8] sm:$0xff]
    %v633 = vld [vmem:[#allocation6 + $0xe0] sm:$0xff]
    %v634 = vld [vmem:[#allocation6 + $0xe8] sm:$0xff]
    %v635 = vld [vmem:[#allocation6 + $0xf0] sm:$0xff]
    %v636 = vld [vmem:[#allocation6 + $0xf8] sm:$0xff]
    %v637 = vld [vmem:[#allocation6 + $0x100] sm:$0xff]
    %v638 = vld [vmem:[#allocation6 + $0x108] sm:$0xff]
    %v639 = vld [vmem:[#allocation6 + $0x110] sm:$0xff]
    %v640 = vld [vmem:[#allocation6 + $0x118] sm:$0xff]
    %v641 = vld [vmem:[#allocation6 + $0x120] sm:$0xff]
    %v642 = vld [vmem:[#allocation6 + $0x128] sm:$0xff]
    %v643 = vld [vmem:[#allocation6 + $0x130] sm:$0xff]
    %v644 = vld [vmem:[#allocation6 + $0x138] sm:$0xff]
    %v645 = vld [vmem:[#allocation6 + $0x140] sm:$0xff]
    %v646 = vld [vmem:[#allocation6 + $0x148] sm:$0xff]
    %v647 = vld [vmem:[#allocation6 + $0x150] sm:$0xff]
    %v648 = vld [vmem:[#allocation6 + $0x158] sm:$0xff]
    %v649 = vld [vmem:[#allocation6 + $0x160] sm:$0xff]
    %v650 = vld [vmem:[#allocation6 + $0x168] sm:$0xff]
    %v651 = vld [vmem:[#allocation6 + $0x170] sm:$0xff]
    %v652 = vld [vmem:[#allocation6 + $0x178] sm:$0xff]
    %v653 = vld [vmem:[#allocation6 + $0x180] sm:$0xff]
    %v654 = vld [vmem:[#allocation6 + $0x188] sm:$0xff]
    %v655 = vld [vmem:[#allocation6 + $0x190] sm:$0xff]
    %v656 = vld [vmem:[#allocation6 + $0x198] sm:$0xff]
    %v657 = vld [vmem:[#allocation6 + $0x1a0] sm:$0xff]
    %v658 = vld [vmem:[#allocation6 + $0x1a8] sm:$0xff]
    %v659 = vld [vmem:[#allocation6 + $0x1b0] sm:$0xff]
    %v660 = vld [vmem:[#allocation6 + $0x1b8] sm:$0xff]
    %v661 = vld [vmem:[#allocation6 + $0x1c0] sm:$0xff]
    %v662 = vld [vmem:[#allocation6 + $0x1c8] sm:$0xff]
    %v663 = vld [vmem:[#allocation6 + $0x1d0] sm:$0xff]
    %v664 = vld [vmem:[#allocation6 + $0x1d8] sm:$0xff]
    %v665 = vld [vmem:[#allocation6 + $0x1e0] sm:$0xff]
    %v666 = vld [vmem:[#allocation6 + $0x1e8] sm:$0xff]
    %v667 = vld [vmem:[#allocation6 + $0x1f0] sm:$0xff]
    %v668 = vld [vmem:[#allocation6 + $0x1f8] sm:$0xff]
    %669 = vmatprep.subr.mxu0 %v666
    %670 = vmatpush1.msra.mxu0 %v665
    %671 = vmatprep.subr.mxu0 %v662
    %672 = vmatpush1.msra.mxu0 %v661
    %673 = vmatprep.subr.mxu0 %v658
    %674 = vmatpush1.msra.mxu0 %v657
    %675 = vmatprep.subr.mxu0 %v654
    %676 = vmatpush1.msra.mxu0 %v653
    %677 = vmatprep.subr.mxu0 %v650
    %678 = vmatpush1.msra.mxu0 %v649
    %679 = vmatprep.subr.mxu0 %v646
    %680 = vmatpush1.msra.mxu0 %v645
    %681 = vmatprep.subr.mxu0 %v642
    %682 = vmatpush1.msra.mxu0 %v641
    %683 = vmatprep.subr.mxu0 %v638
    %684 = vmatpush1.msra.mxu0 %v637
    %685 = vmatprep.subr.mxu0 %v634
    %686 = vmatpush1.msra.mxu0 %v633
    %687 = vmatprep.subr.mxu0 %v630
    %688 = vmatpush1.msra.mxu0 %v629
    %689 = vmatprep.subr.mxu0 %v626
    %690 = vmatpush1.msra.mxu0 %v625
    %691 = vmatprep.subr.mxu0 %v622
    %692 = vmatpush1.msra.mxu0 %v621
    %693 = vmatprep.subr.mxu0 %v618
    %694 = vmatpush1.msra.mxu0 %v617
    %695 = vmatprep.subr.mxu0 %v614
    %696 = vmatpush1.msra.mxu0 %v613
    %697 = vmatprep.subr.mxu0 %v610
    %698 = vmatpush1.msra.mxu0 %v609
    %699 = vmatprep.subr.mxu0 %v606
    %700 = vmatpush1.msra.mxu0 %v605
    %701 = vmatprep.subr.mxu0 0.0
    %702 = vmatpush2.msra.mxu0 0.0
    %703 = vmatprep.subr.mxu0 0.0
    %704 = vmatpush2.msra.mxu0 0.0
    %705 = vmatprep.subr.mxu0 0.0
    %706 = vmatpush2.msra.mxu0 0.0
    %707 = vmatprep.subr.mxu0 0.0
    %708 = vmatpush2.msra.mxu0 0.0
    %709 = vmatprep.subr.mxu0 0.0
    %710 = vmatpush2.msra.mxu0 0.0
    %711 = vmatprep.subr.mxu0 0.0
    %712 = vmatpush2.msra.mxu0 0.0
    %713 = vmatprep.subr.mxu0 0.0
    %714 = vmatpush2.msra.mxu0 0.0
    %715 = vmatprep.subr.mxu0 0.0
    %716 = vmatpush2.msra.mxu0 0.0
    %717 = vmatprep.subr.mxu0 0.0
    %718 = vmatpush2.msra.mxu0 0.0
    %719 = vmatprep.subr.mxu0 0.0
    %720 = vmatpush2.msra.mxu0 0.0
    %721 = vmatprep.subr.mxu0 0.0
    %722 = vmatpush2.msra.mxu0 0.0
    %723 = vmatprep.subr.mxu0 0.0
    %724 = vmatpush2.msra.mxu0 0.0
    %725 = vmatprep.subr.mxu0 0.0
    %726 = vmatpush2.msra.mxu0 0.0
    %727 = vmatprep.subr.mxu0 0.0
    %728 = vmatpush2.msra.mxu0 0.0
    %729 = vmatprep.subr.mxu0 0.0
    %730 = vmatpush2.msra.mxu0 0.0
    %731 = vmatprep.subr.mxu0 0.0
    %732 = vmatpush2.msra.mxu0 0.0
    %733 = vmatprep.mubr.f32.mxu0 0.0
    %734 = vmatmul.mubr.f32.gmra.mxu0 0.0
    %v735 = vpop.f32.mrf.mxu0
    %v736 = vadd.f32 0.0, %v735
    %v737 = vpop.f32.mrf.mxu0
    %v738 = vadd.f32 0.0, %v737
    %739 = vdwg.mxu0
    %740 = vmatprep.subr.mxu0 %v668
    %741 = vmatpush1.msra.mxu0 %v667
    %742 = vmatprep.subr.mxu0 %v664
    %743 = vmatpush1.msra.mxu0 %v663
    %744 = vmatprep.subr.mxu0 %v660
    %745 = vmatpush1.msra.mxu0 %v659
    %746 = vmatprep.subr.mxu0 %v656
    %747 = vmatpush1.msra.mxu0 %v655
    %748 = vmatprep.subr.mxu0 %v652
    %749 = vmatpush1.msra.mxu0 %v651
    %750 = vmatprep.subr.mxu0 %v648
    %751 = vmatpush1.msra.mxu0 %v647
    %752 = vmatprep.subr.mxu0 %v644
    %753 = vmatpush1.msra.mxu0 %v643
    %754 = vmatprep.subr.mxu0 %v640
    %755 = vmatpush1.msra.mxu0 %v639
    %756 = vmatprep.subr.mxu0 %v636
    %757 = vmatpush1.msra.mxu0 %v635
    %758 = vmatprep.subr.mxu0 %v632
    %759 = vmatpush1.msra.mxu0 %v631
    %760 = vmatprep.subr.mxu0 %v628
    %761 = vmatpush1.msra.mxu0 %v627
    %762 = vmatprep.subr.mxu0 %v624
    %763 = vmatpush1.msra.mxu0 %v623
    %764 = vmatprep.subr.mxu0 %v620
    %765 = vmatpush1.msra.mxu0 %v619
    %766 = vmatprep.subr.mxu0 %v616
    %767 = vmatpush1.msra.mxu0 %v615
    %768 = vmatprep.subr.mxu0 %v612
    %769 = vmatpush1.msra.mxu0 %v611
    %770 = vmatprep.subr.mxu0 %v608
    %771 = vmatpush1.msra.mxu0 %v607
    %772 = vmatprep.subr.mxu0 0.0
    %773 = vmatpush2.msra.mxu0 0.0
    %774 = vmatprep.subr.mxu0 0.0
    %775 = vmatpush2.msra.mxu0 0.0
    %776 = vmatprep.subr.mxu0 0.0
    %777 = vmatpush2.msra.mxu0 0.0
    %778 = vmatprep.subr.mxu0 0.0
    %779 = vmatpush2.msra.mxu0 0.0
    %780 = vmatprep.subr.mxu0 0.0
    %781 = vmatpush2.msra.mxu0 0.0
    %782 = vmatprep.subr.mxu0 0.0
    %783 = vmatpush2.msra.mxu0 0.0
    %784 = vmatprep.subr.mxu0 0.0
    %785 = vmatpush2.msra.mxu0 0.0
    %786 = vmatprep.subr.mxu0 0.0
    %787 = vmatpush2.msra.mxu0 0.0
    %788 = vmatprep.subr.mxu0 0.0
    %789 = vmatpush2.msra.mxu0 0.0
    %790 = vmatprep.subr.mxu0 0.0
    %791 = vmatpush2.msra.mxu0 0.0
    %792 = vmatprep.subr.mxu0 0.0
    %793 = vmatpush2.msra.mxu0 0.0
    %794 = vmatprep.subr.mxu0 0.0
    %795 = vmatpush2.msra.mxu0 0.0
    %796 = vmatprep.subr.mxu0 0.0
    %797 = vmatpush2.msra.mxu0 0.0
    %798 = vmatprep.subr.mxu0 0.0
    %799 = vmatpush2.msra.mxu0 0.0
    %800 = vmatprep.subr.mxu0 0.0
    %801 = vmatpush2.msra.mxu0 0.0
    %802 = vmatprep.subr.mxu0 0.0
    %803 = vmatpush2.msra.mxu0 0.0
    %804 = vmatprep.mubr.f32.mxu0 0.0
    %805 = vmatmul.mubr.f32.gmra.mxu0 0.0
    %v806 = vpop.f32.mrf.mxu0
    %v807 = vadd.f32 0.0, %v806
    %v808 = vpop.f32.mrf.mxu0
    %v809 = vadd.f32 0.0, %v808
    %810 = vdwg.mxu0
    %v811 = vadd.f32 %v601, %v736
    %v812 = vadd.f32 %v602, %v738
    %v813 = vadd.f32 %v603, %v807
    %v814 = vadd.f32 %v604, %v809
    %v815 = vxor.u32 %v811, 2147483648
    %v816 = vxor.u32 %v812, 2147483648
    %v817 = vxor.u32 %v813, 2147483648
    %v818 = vmul.f32 %v815, 1.442695
    %v819 = vpow.pop %v818
    %v820 = vmul.f32 %v816, 1.442695
    %v821 = vpow.pop %v820
    %v822 = vmul.f32 %v817, 1.442695
    %v823 = vpow.pop %v822
    %v824 = vadd.f32 %v819, 1.0
    %v825 = vadd.f32 %v821, 1.0
    %v826 = vadd.f32 %v823, 1.0
    %v827 = vrcp.pop %v824
    %v828 = vmul.f32 1.0, %v827
    %v829 = vrcp.pop %v825
    %v830 = vmul.f32 1.0, %v829
    %v831 = vrcp.pop %v826
    %v832 = vmul.f32 1.0, %v831
    %v833 = vtanh.pop %v814
    %v834 = vmul.f32 %v830, 0.0
    %v835 = vmul.f32 %v828, %v833
    %v836 = vadd.f32 %v834, %v835
    %v837 = vtanh.pop %v836
    %v838 = vmul.f32 %v832, %v837
    %s839 = smul.u32 1, 4
    %s840 = smul.addr %s839, 8
    %s841 = scalar_lea.vmem [#allocation2], %s840
    %v842 = vld [vmem:[%s841] sm:$0xff]
    %v843 = vld [vmem:[%s841 + $0x8] sm:$0xff]
    %v844 = vld [vmem:[%s841 + $0x10] sm:$0xff]
    %v845 = vld [vmem:[%s841 + $0x18] sm:$0xff]
    %846 = vmatprep.subr.mxu0 %v666
    %847 = vmatpush1.msra.mxu0 %v665
    %848 = vmatprep.subr.mxu0 %v662
    %849 = vmatpush1.msra.mxu0 %v661
    %850 = vmatprep.subr.mxu0 %v658
    %851 = vmatpush1.msra.mxu0 %v657
    %852 = vmatprep.subr.mxu0 %v654
    %853 = vmatpush1.msra.mxu0 %v653
    %854 = vmatprep.subr.mxu0 %v650
    %855 = vmatpush1.msra.mxu0 %v649
    %856 = vmatprep.subr.mxu0 %v646
    %857 = vmatpush1.msra.mxu0 %v645
    %858 = vmatprep.subr.mxu0 %v642
    %859 = vmatpush1.msra.mxu0 %v641
    %860 = vmatprep.subr.mxu0 %v638
    %861 = vmatpush1.msra.mxu0 %v637
    %862 = vmatprep.subr.mxu0 %v634
    %863 = vmatpush1.msra.mxu0 %v633
    %864 = vmatprep.subr.mxu0 %v630
    %865 = vmatpush1.msra.mxu0 %v629
    %866 = vmatprep.subr.mxu0 %v626
    %867 = vmatpush1.msra.mxu0 %v625
    %868 = vmatprep.subr.mxu0 %v622
    %869 = vmatpush1.msra.mxu0 %v621
    %870 = vmatprep.subr.mxu0 %v618
    %871 = vmatpush1.msra.mxu0 %v617
    %872 = vmatprep.subr.mxu0 %v614
    %873 = vmatpush1.msra.mxu0 %v613
    %874 = vmatprep.subr.mxu0 %v610
    %875 = vmatpush1.msra.mxu0 %v609
    %876 = vmatprep.subr.mxu0 %v606
    %877 = vmatpush1.msra.mxu0 %v605
    %878 = vmatprep.subr.mxu0 0.0
    %879 = vmatpush2.msra.mxu0 0.0
    %880 = vmatprep.subr.mxu0 0.0
    %881 = vmatpush2.msra.mxu0 0.0
    %882 = vmatprep.subr.mxu0 0.0
    %883 = vmatpush2.msra.mxu0 0.0
    %884 = vmatprep.subr.mxu0 0.0
    %885 = vmatpush2.msra.mxu0 0.0
    %886 = vmatprep.subr.mxu0 0.0
    %887 = vmatpush2.msra.mxu0 0.0
    %888 = vmatprep.subr.mxu0 0.0
    %889 = vmatpush2.msra.mxu0 0.0
    %890 = vmatprep.subr.mxu0 0.0
    %891 = vmatpush2.msra.mxu0 0.0
    %892 = vmatprep.subr.mxu0 0.0
    %893 = vmatpush2.msra.mxu0 0.0
    %894 = vmatprep.subr.mxu0 0.0
    %895 = vmatpush2.msra.mxu0 0.0
    %896 = vmatprep.subr.mxu0 0.0
    %897 = vmatpush2.msra.mxu0 0.0
    %898 = vmatprep.subr.mxu0 0.0
    %899 = vmatpush2.msra.mxu0 0.0
    %900 = vmatprep.subr.mxu0 0.0
    %901 = vmatpush2.msra.mxu0 0.0
    %902 = vmatprep.subr.mxu0 0.0
    %903 = vmatpush2.msra.mxu0 0.0
    %904 = vmatprep.subr.mxu0 0.0
    %905 = vmatpush2.msra.mxu0 0.0
    %906 = vmatprep.subr.mxu0 0.0
    %907 = vmatpush2.msra.mxu0 0.0
    %908 = vmatprep.subr.mxu0 0.0
    %909 = vmatpush2.msra.mxu0 0.0
    %910 = vmatprep.mubr.f32.mxu0 0.0
    %911 = vmatmul.mubr.f32.gmra.mxu0 %v838
    %v912 = vpop.f32.mrf.mxu0
    %v913 = vadd.f32 0.0, %v912
    %v914 = vpop.f32.mrf.mxu0
    %v915 = vadd.f32 0.0, %v914
    %916 = vdwg.mxu0
    %917 = vmatprep.subr.mxu0 %v668
    %918 = vmatpush1.msra.mxu0 %v667
    %919 = vmatprep.subr.mxu0 %v664
    %920 = vmatpush1.msra.mxu0 %v663
    %921 = vmatprep.subr.mxu0 %v660
    %922 = vmatpush1.msra.mxu0 %v659
    %923 = vmatprep.subr.mxu0 %v656
    %924 = vmatpush1.msra.mxu0 %v655
    %925 = vmatprep.subr.mxu0 %v652
    %926 = vmatpush1.msra.mxu0 %v651
    %927 = vmatprep.subr.mxu0 %v648
    %928 = vmatpush1.msra.mxu0 %v647
    %929 = vmatprep.subr.mxu0 %v644
    %930 = vmatpush1.msra.mxu0 %v643
    %931 = vmatprep.subr.mxu0 %v640
    %932 = vmatpush1.msra.mxu0 %v639
    %933 = vmatprep.subr.mxu0 %v636
    %934 = vmatpush1.msra.mxu0 %v635
    %935 = vmatprep.subr.mxu0 %v632
    %936 = vmatpush1.msra.mxu0 %v631
    %937 = vmatprep.subr.mxu0 %v628
    %938 = vmatpush1.msra.mxu0 %v627
    %939 = vmatprep.subr.mxu0 %v624
    %940 = vmatpush1.msra.mxu0 %v623
    %941 = vmatprep.subr.mxu0 %v620
    %942 = vmatpush1.msra.mxu0 %v619
    %943 = vmatprep.subr.mxu0 %v616
    %944 = vmatpush1.msra.mxu0 %v615
    %945 = vmatprep.subr.mxu0 %v612
    %946 = vmatpush1.msra.mxu0 %v611
    %947 = vmatprep.subr.mxu0 %v608
    %948 = vmatpush1.msra.mxu0 %v607
    %949 = vmatprep.subr.mxu0 0.0
    %950 = vmatpush2.msra.mxu0 0.0
    %951 = vmatprep.subr.mxu0 0.0
    %952 = vmatpush2.msra.mxu0 0.0
    %953 = vmatprep.subr.mxu0 0.0
    %954 = vmatpush2.msra.mxu0 0.0
    %955 = vmatprep.subr.mxu0 0.0
    %956 = vmatpush2.msra.mxu0 0.0
    %957 = vmatprep.subr.mxu0 0.0
    %958 = vmatpush2.msra.mxu0 0.0
    %959 = vmatprep.subr.mxu0 0.0
    %960 = vmatpush2.msra.mxu0 0.0
    %961 = vmatprep.subr.mxu0 0.0
    %962 = vmatpush2.msra.mxu0 0.0
    %963 = vmatprep.subr.mxu0 0.0
    %964 = vmatpush2.msra.mxu0 0.0
    %965 = vmatprep.subr.mxu0 0.0
    %966 = vmatpush2.msra.mxu0 0.0
    %967 = vmatprep.subr.mxu0 0.0
    %968 = vmatpush2.msra.mxu0 0.0
    %969 = vmatprep.subr.mxu0 0.0
    %970 = vmatpush2.msra.mxu0 0.0
    %971 = vmatprep.subr.mxu0 0.0
    %972 = vmatpush2.msra.mxu0 0.0
    %973 = vmatprep.subr.mxu0 0.0
    %974 = vmatpush2.msra.mxu0 0.0
    %975 = vmatprep.subr.mxu0 0.0
    %976 = vmatpush2.msra.mxu0 0.0
    %977 = vmatprep.subr.mxu0 0.0
    %978 = vmatpush2.msra.mxu0 0.0
    %979 = vmatprep.subr.mxu0 0.0
    %980 = vmatpush2.msra.mxu0 0.0
    %981 = vmatprep.mubr.f32.mxu0 0.0
    %982 = vmatmul.mubr.f32.gmra.mxu0 %v838
    %v983 = vpop.f32.mrf.mxu0
    %v984 = vadd.f32 0.0, %v983
    %v985 = vpop.f32.mrf.mxu0
    %v986 = vadd.f32 0.0, %v985
    %987 = vdwg.mxu0
    %v988 = vadd.f32 %v842, %v913
    %v989 = vadd.f32 %v843, %v915
    %v990 = vadd.f32 %v844, %v984
    %v991 = vadd.f32 %v845, %v986
    %v992 = vxor.u32 %v988, 2147483648
    %v993 = vxor.u32 %v989, 2147483648
    %v994 = vxor.u32 %v990, 2147483648
    %v995 = vmul.f32 %v992, 1.442695
    %v996 = vpow.pop %v995
    %v997 = vmul.f32 %v993, 1.442695
    %v998 = vpow.pop %v997
    %v999 = vmul.f32 %v994, 1.442695
    %v1000 = vpow.pop %v999
    %v1001 = vadd.f32 %v996, 1.0
    %v1002 = vadd.f32 %v998, 1.0
    %v1003 = vadd.f32 %v1000, 1.0
    %v1004 = vrcp.pop %v1001
    %v1005 = vmul.f32 1.0, %v1004
    %v1006 = vrcp.pop %v1002
    %v1007 = vmul.f32 1.0, %v1006
    %v1008 = vrcp.pop %v1003
    %v1009 = vmul.f32 1.0, %v1008
    %v1010 = vtanh.pop %v991
    %v1011 = vmul.f32 %v1007, %v836
    %v1012 = vmul.f32 %v1005, %v1010
    %v1013 = vadd.f32 %v1011, %v1012
    %v1014 = vtanh.pop %v1013
    %v1015 = vmul.f32 %v1009, %v1014
    %s1016 = smul.u32 2, 4
    %s1017 = smul.addr %s1016, 8
    %s1018 = scalar_lea.vmem [#allocation2], %s1017
    %v1019 = vld [vmem:[%s1018] sm:$0xff]
    %v1020 = vld [vmem:[%s1018 + $0x8] sm:$0xff]
    %v1021 = vld [vmem:[%s1018 + $0x10] sm:$0xff]
    %v1022 = vld [vmem:[%s1018 + $0x18] sm:$0xff]
    %1023 = vmatprep.subr.mxu0 %v666
    %1024 = vmatpush1.msra.mxu0 %v665
    %1025 = vmatprep.subr.mxu0 %v662
    %1026 = vmatpush1.msra.mxu0 %v661
    %1027 = vmatprep.subr.mxu0 %v658
    %1028 = vmatpush1.msra.mxu0 %v657
    %1029 = vmatprep.subr.mxu0 %v654
    %1030 = vmatpush1.msra.mxu0 %v653
    %1031 = vmatprep.subr.mxu0 %v650
    %1032 = vmatpush1.msra.mxu0 %v649
    %1033 = vmatprep.subr.mxu0 %v646
    %1034 = vmatpush1.msra.mxu0 %v645
    %1035 = vmatprep.subr.mxu0 %v642
    %1036 = vmatpush1.msra.mxu0 %v641
    %1037 = vmatprep.subr.mxu0 %v638
    %1038 = vmatpush1.msra.mxu0 %v637
    %1039 = vmatprep.subr.mxu0 %v634
    %1040 = vmatpush1.msra.mxu0 %v633
    %1041 = vmatprep.subr.mxu0 %v630
    %1042 = vmatpush1.msra.mxu0 %v629
    %1043 = vmatprep.subr.mxu0 %v626
    %1044 = vmatpush1.msra.mxu0 %v625
    %1045 = vmatprep.subr.mxu0 %v622
    %1046 = vmatpush1.msra.mxu0 %v621
    %1047 = vmatprep.subr.mxu0 %v618
    %1048 = vmatpush1.msra.mxu0 %v617
    %1049 = vmatprep.subr.mxu0 %v614
    %1050 = vmatpush1.msra.mxu0 %v613
    %1051 = vmatprep.subr.mxu0 %v610
    %1052 = vmatpush1.msra.mxu0 %v609
    %1053 = vmatprep.subr.mxu0 %v606
    %1054 = vmatpush1.msra.mxu0 %v605
    %1055 = vmatprep.subr.mxu0 0.0
    %1056 = vmatpush2.msra.mxu0 0.0
    %1057 = vmatprep.subr.mxu0 0.0
    %1058 = vmatpush2.msra.mxu0 0.0
    %1059 = vmatprep.subr.mxu0 0.0
    %1060 = vmatpush2.msra.mxu0 0.0
    %1061 = vmatprep.subr.mxu0 0.0
    %1062 = vmatpush2.msra.mxu0 0.0
    %1063 = vmatprep.subr.mxu0 0.0
    %1064 = vmatpush2.msra.mxu0 0.0
    %1065 = vmatprep.subr.mxu0 0.0
    %1066 = vmatpush2.msra.mxu0 0.0
    %1067 = vmatprep.subr.mxu0 0.0
    %1068 = vmatpush2.msra.mxu0 0.0
    %1069 = vmatprep.subr.mxu0 0.0
    %1070 = vmatpush2.msra.mxu0 0.0
    %1071 = vmatprep.subr.mxu0 0.0
    %1072 = vmatpush2.msra.mxu0 0.0
    %1073 = vmatprep.subr.mxu0 0.0
    %1074 = vmatpush2.msra.mxu0 0.0
    %1075 = vmatprep.subr.mxu0 0.0
    %1076 = vmatpush2.msra.mxu0 0.0
    %1077 = vmatprep.subr.mxu0 0.0
    %1078 = vmatpush2.msra.mxu0 0.0
    %1079 = vmatprep.subr.mxu0 0.0
    %1080 = vmatpush2.msra.mxu0 0.0
    %1081 = vmatprep.subr.mxu0 0.0
    %1082 = vmatpush2.msra.mxu0 0.0
    %1083 = vmatprep.subr.mxu0 0.0
    %1084 = vmatpush2.msra.mxu0 0.0
    %1085 = vmatprep.subr.mxu0 0.0
    %1086 = vmatpush2.msra.mxu0 0.0
    %1087 = vmatprep.mubr.f32.mxu0 0.0
    %1088 = vmatmul.mubr.f32.gmra.mxu0 %v1015
    %v1089 = vpop.f32.mrf.mxu0
    %v1090 = vadd.f32 0.0, %v1089
    %v1091 = vpop.f32.mrf.mxu0
    %v1092 = vadd.f32 0.0, %v1091
    %1093 = vdwg.mxu0
    %1094 = vmatprep.subr.mxu0 %v668
    %1095 = vmatpush1.msra.mxu0 %v667
    %1096 = vmatprep.subr.mxu0 %v664
    %1097 = vmatpush1.msra.mxu0 %v663
    %1098 = vmatprep.subr.mxu0 %v660
    %1099 = vmatpush1.msra.mxu0 %v659
    %1100 = vmatprep.subr.mxu0 %v656
    %1101 = vmatpush1.msra.mxu0 %v655
    %1102 = vmatprep.subr.mxu0 %v652
    %1103 = vmatpush1.msra.mxu0 %v651
    %1104 = vmatprep.subr.mxu0 %v648
    %1105 = vmatpush1.msra.mxu0 %v647
    %1106 = vmatprep.subr.mxu0 %v644
    %1107 = vmatpush1.msra.mxu0 %v643
    %1108 = vmatprep.subr.mxu0 %v640
    %1109 = vmatpush1.msra.mxu0 %v639
    %1110 = vmatprep.subr.mxu0 %v636
    %1111 = vmatpush1.msra.mxu0 %v635
    %1112 = vmatprep.subr.mxu0 %v632
    %1113 = vmatpush1.msra.mxu0 %v631
    %1114 = vmatprep.subr.mxu0 %v628
    %1115 = vmatpush1.msra.mxu0 %v627
    %1116 = vmatprep.subr.mxu0 %v624
    %1117 = vmatpush1.msra.mxu0 %v623
    %1118 = vmatprep.subr.mxu0 %v620
    %1119 = vmatpush1.msra.mxu0 %v619
    %1120 = vmatprep.subr.mxu0 %v616
    %1121 = vmatpush1.msra.mxu0 %v615
    %1122 = vmatprep.subr.mxu0 %v612
    %1123 = vmatpush1.msra.mxu0 %v611
    %1124 = vmatprep.subr.mxu0 %v608
    %1125 = vmatpush1.msra.mxu0 %v607
    %1126 = vmatprep.subr.mxu0 0.0
    %1127 = vmatpush2.msra.mxu0 0.0
    %1128 = vmatprep.subr.mxu0 0.0
    %1129 = vmatpush2.msra.mxu0 0.0
    %1130 = vmatprep.subr.mxu0 0.0
    %1131 = vmatpush2.msra.mxu0 0.0
    %1132 = vmatprep.subr.mxu0 0.0
    %1133 = vmatpush2.msra.mxu0 0.0
    %1134 = vmatprep.subr.mxu0 0.0
    %1135 = vmatpush2.msra.mxu0 0.0
    %1136 = vmatprep.subr.mxu0 0.0
    %1137 = vmatpush2.msra.mxu0 0.0
    %1138 = vmatprep.subr.mxu0 0.0
    %1139 = vmatpush2.msra.mxu0 0.0
    %1140 = vmatprep.subr.mxu0 0.0
    %1141 = vmatpush2.msra.mxu0 0.0
    %1142 = vmatprep.subr.mxu0 0.0
    %1143 = vmatpush2.msra.mxu0 0.0
    %1144 = vmatprep.subr.mxu0 0.0
    %1145 = vmatpush2.msra.mxu0 0.0
    %1146 = vmatprep.subr.mxu0 0.0
    %1147 = vmatpush2.msra.mxu0 0.0
    %1148 = vmatprep.subr.mxu0 0.0
    %1149 = vmatpush2.msra.mxu0 0.0
    %1150 = vmatprep.subr.mxu0 0.0
    %1151 = vmatpush2.msra.mxu0 0.0
    %1152 = vmatprep.subr.mxu0 0.0
    %1153 = vmatpush2.msra.mxu0 0.0
    %1154 = vmatprep.subr.mxu0 0.0
    %1155 = vmatpush2.msra.mxu0 0.0
    %1156 = vmatprep.subr.mxu0 0.0
    %1157 = vmatpush2.msra.mxu0 0.0
    %1158 = vmatprep.mubr.f32.mxu0 0.0
    %1159 = vmatmul.mubr.f32.gmra.mxu0 %v1015
    %v1160 = vpop.f32.mrf.mxu0
    %v1161 = vadd.f32 0.0, %v1160
    %v1162 = vpop.f32.mrf.mxu0
    %v1163 = vadd.f32 0.0, %v1162
    %1164 = vdwg.mxu0
    %v1165 = vadd.f32 %v1019, %v1090
    %v1166 = vadd.f32 %v1020, %v1092
    %v1167 = vadd.f32 %v1021, %v1161
    %v1168 = vadd.f32 %v1022, %v1163
    %v1169 = vxor.u32 %v1165, 2147483648
    %v1170 = vxor.u32 %v1166, 2147483648
    %v1171 = vxor.u32 %v1167, 2147483648
    %v1172 = vmul.f32 %v1169, 1.442695
    %v1173 = vpow.pop %v1172
    %v1174 = vmul.f32 %v1170, 1.442695
    %v1175 = vpow.pop %v1174
    %v1176 = vmul.f32 %v1171, 1.442695
    %v1177 = vpow.pop %v1176
    %v1178 = vadd.f32 %v1173, 1.0
    %v1179 = vadd.f32 %v1175, 1.0
    %v1180 = vadd.f32 %v1177, 1.0
    %v1181 = vrcp.pop %v1178
    %v1182 = vmul.f32 1.0, %v1181
    %v1183 = vrcp.pop %v1179
    %v1184 = vmul.f32 1.0, %v1183
    %v1185 = vrcp.pop %v1180
    %v1186 = vmul.f32 1.0, %v1185
    %v1187 = vtanh.pop %v1168
    %v1188 = vmul.f32 %v1184, %v1013
    %v1189 = vmul.f32 %v1182, %v1187
    %v1190 = vadd.f32 %v1188, %v1189
    %v1191 = vtanh.pop %v1190
    %v1192 = vmul.f32 %v1186, %v1191
    %s1193 = smul.u32 3, 4
    %s1194 = smul.addr %s1193, 8
    %s1195 = scalar_lea.vmem [#allocation2], %s1194
    %v1196 = vld [vmem:[%s1195] sm:$0xff]
    %v1197 = vld [vmem:[%s1195 + $0x8] sm:$0xff]
    %v1198 = vld [vmem:[%s1195 + $0x10] sm:$0xff]
    %v1199 = vld [vmem:[%s1195 + $0x18] sm:$0xff]
    %1200 = vmatprep.subr.mxu0 %v666
    %1201 = vmatpush1.msra.mxu0 %v665
    %1202 = vmatprep.subr.mxu0 %v662
    %1203 = vmatpush1.msra.mxu0 %v661
    %1204 = vmatprep.subr.mxu0 %v658
    %1205 = vmatpush1.msra.mxu0 %v657
    %1206 = vmatprep.subr.mxu0 %v654
    %1207 = vmatpush1.msra.mxu0 %v653
    %1208 = vmatprep.subr.mxu0 %v650
    %1209 = vmatpush1.msra.mxu0 %v649
    %1210 = vmatprep.subr.mxu0 %v646
    %1211 = vmatpush1.msra.mxu0 %v645
    %1212 = vmatprep.subr.mxu0 %v642
    %1213 = vmatpush1.msra.mxu0 %v641
    %1214 = vmatprep.subr.mxu0 %v638
    %1215 = vmatpush1.msra.mxu0 %v637
    %1216 = vmatprep.subr.mxu0 %v634
    %1217 = vmatpush1.msra.mxu0 %v633
    %1218 = vmatprep.subr.mxu0 %v630
    %1219 = vmatpush1.msra.mxu0 %v629
    %1220 = vmatprep.subr.mxu0 %v626
    %1221 = vmatpush1.msra.mxu0 %v625
    %1222 = vmatprep.subr.mxu0 %v622
    %1223 = vmatpush1.msra.mxu0 %v621
    %1224 = vmatprep.subr.mxu0 %v618
    %1225 = vmatpush1.msra.mxu0 %v617
    %1226 = vmatprep.subr.mxu0 %v614
    %1227 = vmatpush1.msra.mxu0 %v613
    %1228 = vmatprep.subr.mxu0 %v610
    %1229 = vmatpush1.msra.mxu0 %v609
    %1230 = vmatprep.subr.mxu0 %v606
    %1231 = vmatpush1.msra.mxu0 %v605
    %1232 = vmatprep.subr.mxu0 0.0
    %1233 = vmatpush2.msra.mxu0 0.0
    %1234 = vmatprep.subr.mxu0 0.0
    %1235 = vmatpush2.msra.mxu0 0.0
    %1236 = vmatprep.subr.mxu0 0.0
    %1237 = vmatpush2.msra.mxu0 0.0
    %1238 = vmatprep.subr.mxu0 0.0
    %1239 = vmatpush2.msra.mxu0 0.0
    %1240 = vmatprep.subr.mxu0 0.0
    %1241 = vmatpush2.msra.mxu0 0.0
    %1242 = vmatprep.subr.mxu0 0.0
    %1243 = vmatpush2.msra.mxu0 0.0
    %1244 = vmatprep.subr.mxu0 0.0
    %1245 = vmatpush2.msra.mxu0 0.0
    %1246 = vmatprep.subr.mxu0 0.0
    %1247 = vmatpush2.msra.mxu0 0.0
    %1248 = vmatprep.subr.mxu0 0.0
    %1249 = vmatpush2.msra.mxu0 0.0
    %1250 = vmatprep.subr.mxu0 0.0
    %1251 = vmatpush2.msra.mxu0 0.0
    %1252 = vmatprep.subr.mxu0 0.0
    %1253 = vmatpush2.msra.mxu0 0.0
    %1254 = vmatprep.subr.mxu0 0.0
    %1255 = vmatpush2.msra.mxu0 0.0
    %1256 = vmatprep.subr.mxu0 0.0
    %1257 = vmatpush2.msra.mxu0 0.0
    %1258 = vmatprep.subr.mxu0 0.0
    %1259 = vmatpush2.msra.mxu0 0.0
    %1260 = vmatprep.subr.mxu0 0.0
    %1261 = vmatpush2.msra.mxu0 0.0
    %1262 = vmatprep.subr.mxu0 0.0
    %1263 = vmatpush2.msra.mxu0 0.0
    %1264 = vmatprep.mubr.f32.mxu0 0.0
    %1265 = vmatmul.mubr.f32.gmra.mxu0 %v1192
    %v1266 = vpop.f32.mrf.mxu0
    %v1267 = vadd.f32 0.0, %v1266
    %v1268 = vpop.f32.mrf.mxu0
    %v1269 = vadd.f32 0.0, %v1268
    %1270 = vdwg.mxu0
    %1271 = vmatprep.subr.mxu0 %v668
    %1272 = vmatpush1.msra.mxu0 %v667
    %1273 = vmatprep.subr.mxu0 %v664
    %1274 = vmatpush1.msra.mxu0 %v663
    %1275 = vmatprep.subr.mxu0 %v660
    %1276 = vmatpush1.msra.mxu0 %v659
    %1277 = vmatprep.subr.mxu0 %v656
    %1278 = vmatpush1.msra.mxu0 %v655
    %1279 = vmatprep.subr.mxu0 %v652
    %1280 = vmatpush1.msra.mxu0 %v651
    %1281 = vmatprep.subr.mxu0 %v648
    %1282 = vmatpush1.msra.mxu0 %v647
    %1283 = vmatprep.subr.mxu0 %v644
    %1284 = vmatpush1.msra.mxu0 %v643
    %1285 = vmatprep.subr.mxu0 %v640
    %1286 = vmatpush1.msra.mxu0 %v639
    %1287 = vmatprep.subr.mxu0 %v636
    %1288 = vmatpush1.msra.mxu0 %v635
    %1289 = vmatprep.subr.mxu0 %v632
    %1290 = vmatpush1.msra.mxu0 %v631
    %1291 = vmatprep.subr.mxu0 %v628
    %1292 = vmatpush1.msra.mxu0 %v627
    %1293 = vmatprep.subr.mxu0 %v624
    %1294 = vmatpush1.msra.mxu0 %v623
    %1295 = vmatprep.subr.mxu0 %v620
    %1296 = vmatpush1.msra.mxu0 %v619
    %1297 = vmatprep.subr.mxu0 %v616
    %1298 = vmatpush1.msra.mxu0 %v615
    %1299 = vmatprep.subr.mxu0 %v612
    %1300 = vmatpush1.msra.mxu0 %v611
    %1301 = vmatprep.subr.mxu0 %v608
    %1302 = vmatpush1.msra.mxu0 %v607
    %1303 = vmatprep.subr.mxu0 0.0
    %1304 = vmatpush2.msra.mxu0 0.0
    %1305 = vmatprep.subr.mxu0 0.0
    %1306 = vmatpush2.msra.mxu0 0.0
    %1307 = vmatprep.subr.mxu0 0.0
    %1308 = vmatpush2.msra.mxu0 0.0
    %1309 = vmatprep.subr.mxu0 0.0
    %1310 = vmatpush2.msra.mxu0 0.0
    %1311 = vmatprep.subr.mxu0 0.0
    %1312 = vmatpush2.msra.mxu0 0.0
    %1313 = vmatprep.subr.mxu0 0.0
    %1314 = vmatpush2.msra.mxu0 0.0
    %1315 = vmatprep.subr.mxu0 0.0
    %1316 = vmatpush2.msra.mxu0 0.0
    %1317 = vmatprep.subr.mxu0 0.0
    %1318 = vmatpush2.msra.mxu0 0.0
    %1319 = vmatprep.subr.mxu0 0.0
    %1320 = vmatpush2.msra.mxu0 0.0
    %1321 = vmatprep.subr.mxu0 0.0
    %1322 = vmatpush2.msra.mxu0 0.0
    %1323 = vmatprep.subr.mxu0 0.0
    %1324 = vmatpush2.msra.mxu0 0.0
    %1325 = vmatprep.subr.mxu0 0.0
    %1326 = vmatpush2.msra.mxu0 0.0
    %1327 = vmatprep.subr.mxu0 0.0
    %1328 = vmatpush2.msra.mxu0 0.0
    %1329 = vmatprep.subr.mxu0 0.0
    %1330 = vmatpush2.msra.mxu0 0.0
    %1331 = vmatprep.subr.mxu0 0.0
    %1332 = vmatpush2.msra.mxu0 0.0
    %1333 = vmatprep.subr.mxu0 0.0
    %1334 = vmatpush2.msra.mxu0 0.0
    %1335 = vmatprep.mubr.f32.mxu0 0.0
    %1336 = vmatmul.mubr.f32.gmra.mxu0 %v1192
    %v1337 = vpop.f32.mrf.mxu0
    %v1338 = vadd.f32 0.0, %v1337
    %v1339 = vpop.f32.mrf.mxu0
    %v1340 = vadd.f32 0.0, %v1339
    %1341 = vdwg.mxu0
    %v1342 = vadd.f32 %v1196, %v1267
    %v1343 = vadd.f32 %v1197, %v1269
    %v1344 = vadd.f32 %v1198, %v1338
    %v1345 = vadd.f32 %v1199, %v1340
    %v1346 = vxor.u32 %v1342, 2147483648
    %v1347 = vxor.u32 %v1343, 2147483648
    %v1348 = vxor.u32 %v1344, 2147483648
    %v1349 = vmul.f32 %v1346, 1.442695
    %v1350 = vpow.pop %v1349
    %v1351 = vmul.f32 %v1347, 1.442695
    %v1352 = vpow.pop %v1351
    %v1353 = vmul.f32 %v1348, 1.442695
    %v1354 = vpow.pop %v1353
    %v1355 = vadd.f32 %v1350, 1.0
    %v1356 = vadd.f32 %v1352, 1.0
    %v1357 = vadd.f32 %v1354, 1.0
    %v1358 = vrcp.pop %v1355
    %v1359 = vmul.f32 1.0, %v1358
    %v1360 = vrcp.pop %v1356
    %v1361 = vmul.f32 1.0, %v1360
    %v1362 = vrcp.pop %v1357
    %v1363 = vmul.f32 1.0, %v1362
    %v1364 = vtanh.pop %v1345
    %v1365 = vmul.f32 %v1361, %v1190
    %v1366 = vmul.f32 %v1359, %v1364
    %v1367 = vadd.f32 %v1365, %v1366
    %v1368 = vtanh.pop %v1367
    %v1369 = vmul.f32 %v1363, %v1368
    %s1370 = smul.u32 4, 4
    %s1371 = smul.addr %s1370, 8
    %s1372 = scalar_lea.vmem [#allocation2], %s1371
    %v1373 = vld [vmem:[%s1372] sm:$0xff]
    %v1374 = vld [vmem:[%s1372 + $0x8] sm:$0xff]
    %v1375 = vld [vmem:[%s1372 + $0x10] sm:$0xff]
    %v1376 = vld [vmem:[%s1372 + $0x18] sm:$0xff]
    %1377 = vmatprep.subr.mxu0 %v666
    %1378 = vmatpush1.msra.mxu0 %v665
    %1379 = vmatprep.subr.mxu0 %v662
    %1380 = vmatpush1.msra.mxu0 %v661
    %1381 = vmatprep.subr.mxu0 %v658
    %1382 = vmatpush1.msra.mxu0 %v657
    %1383 = vmatprep.subr.mxu0 %v654
    %1384 = vmatpush1.msra.mxu0 %v653
    %1385 = vmatprep.subr.mxu0 %v650
    %1386 = vmatpush1.msra.mxu0 %v649
    %1387 = vmatprep.subr.mxu0 %v646
    %1388 = vmatpush1.msra.mxu0 %v645
    %1389 = vmatprep.subr.mxu0 %v642
    %1390 = vmatpush1.msra.mxu0 %v641
    %1391 = vmatprep.subr.mxu0 %v638
    %1392 = vmatpush1.msra.mxu0 %v637
    %1393 = vmatprep.subr.mxu0 %v634
    %1394 = vmatpush1.msra.mxu0 %v633
    %1395 = vmatprep.subr.mxu0 %v630
    %1396 = vmatpush1.msra.mxu0 %v629
    %1397 = vmatprep.subr.mxu0 %v626
    %1398 = vmatpush1.msra.mxu0 %v625
    %1399 = vmatprep.subr.mxu0 %v622
    %1400 = vmatpush1.msra.mxu0 %v621
    %1401 = vmatprep.subr.mxu0 %v618
    %1402 = vmatpush1.msra.mxu0 %v617
    %1403 = vmatprep.subr.mxu0 %v614
    %1404 = vmatpush1.msra.mxu0 %v613
    %1405 = vmatprep.subr.mxu0 %v610
    %1406 = vmatpush1.msra.mxu0 %v609
    %1407 = vmatprep.subr.mxu0 %v606
    %1408 = vmatpush1.msra.mxu0 %v605
    %1409 = vmatprep.subr.mxu0 0.0
    %1410 = vmatpush2.msra.mxu0 0.0
    %1411 = vmatprep.subr.mxu0 0.0
    %1412 = vmatpush2.msra.mxu0 0.0
    %1413 = vmatprep.subr.mxu0 0.0
    %1414 = vmatpush2.msra.mxu0 0.0
    %1415 = vmatprep.subr.mxu0 0.0
    %1416 = vmatpush2.msra.mxu0 0.0
    %1417 = vmatprep.subr.mxu0 0.0
    %1418 = vmatpush2.msra.mxu0 0.0
    %1419 = vmatprep.subr.mxu0 0.0
    %1420 = vmatpush2.msra.mxu0 0.0
    %1421 = vmatprep.subr.mxu0 0.0
    %1422 = vmatpush2.msra.mxu0 0.0
    %1423 = vmatprep.subr.mxu0 0.0
    %1424 = vmatpush2.msra.mxu0 0.0
    %1425 = vmatprep.subr.mxu0 0.0
    %1426 = vmatpush2.msra.mxu0 0.0
    %1427 = vmatprep.subr.mxu0 0.0
    %1428 = vmatpush2.msra.mxu0 0.0
    %1429 = vmatprep.subr.mxu0 0.0
    %1430 = vmatpush2.msra.mxu0 0.0
    %1431 = vmatprep.subr.mxu0 0.0
    %1432 = vmatpush2.msra.mxu0 0.0
    %1433 = vmatprep.subr.mxu0 0.0
    %1434 = vmatpush2.msra.mxu0 0.0
    %1435 = vmatprep.subr.mxu0 0.0
    %1436 = vmatpush2.msra.mxu0 0.0
    %1437 = vmatprep.subr.mxu0 0.0
    %1438 = vmatpush2.msra.mxu0 0.0
    %1439 = vmatprep.subr.mxu0 0.0
    %1440 = vmatpush2.msra.mxu0 0.0
    %1441 = vmatprep.mubr.f32.mxu0 0.0
    %1442 = vmatmul.mubr.f32.gmra.mxu0 %v1369
    %v1443 = vpop.f32.mrf.mxu0
    %v1444 = vadd.f32 0.0, %v1443
    %v1445 = vpop.f32.mrf.mxu0
    %v1446 = vadd.f32 0.0, %v1445
    %1447 = vdwg.mxu0
    %1448 = vmatprep.subr.mxu0 %v668
    %1449 = vmatpush1.msra.mxu0 %v667
    %1450 = vmatprep.subr.mxu0 %v664
    %1451 = vmatpush1.msra.mxu0 %v663
    %1452 = vmatprep.subr.mxu0 %v660
    %1453 = vmatpush1.msra.mxu0 %v659
    %1454 = vmatprep.subr.mxu0 %v656
    %1455 = vmatpush1.msra.mxu0 %v655
    %1456 = vmatprep.subr.mxu0 %v652
    %1457 = vmatpush1.msra.mxu0 %v651
    %1458 = vmatprep.subr.mxu0 %v648
    %1459 = vmatpush1.msra.mxu0 %v647
    %1460 = vmatprep.subr.mxu0 %v644
    %1461 = vmatpush1.msra.mxu0 %v643
    %1462 = vmatprep.subr.mxu0 %v640
    %1463 = vmatpush1.msra.mxu0 %v639
    %1464 = vmatprep.subr.mxu0 %v636
    %1465 = vmatpush1.msra.mxu0 %v635
    %1466 = vmatprep.subr.mxu0 %v632
    %1467 = vmatpush1.msra.mxu0 %v631
    %1468 = vmatprep.subr.mxu0 %v628
    %1469 = vmatpush1.msra.mxu0 %v627
    %1470 = vmatprep.subr.mxu0 %v624
    %1471 = vmatpush1.msra.mxu0 %v623
    %1472 = vmatprep.subr.mxu0 %v620
    %1473 = vmatpush1.msra.mxu0 %v619
    %1474 = vmatprep.subr.mxu0 %v616
    %1475 = vmatpush1.msra.mxu0 %v615
    %1476 = vmatprep.subr.mxu0 %v612
    %1477 = vmatpush1.msra.mxu0 %v611
    %1478 = vmatprep.subr.mxu0 %v608
    %1479 = vmatpush1.msra.mxu0 %v607
    %1480 = vmatprep.subr.mxu0 0.0
    %1481 = vmatpush2.msra.mxu0 0.0
    %1482 = vmatprep.subr.mxu0 0.0
    %1483 = vmatpush2.msra.mxu0 0.0
    %1484 = vmatprep.subr.mxu0 0.0
    %1485 = vmatpush2.msra.mxu0 0.0
    %1486 = vmatprep.subr.mxu0 0.0
    %1487 = vmatpush2.msra.mxu0 0.0
    %1488 = vmatprep.subr.mxu0 0.0
    %1489 = vmatpush2.msra.mxu0 0.0
    %1490 = vmatprep.subr.mxu0 0.0
    %1491 = vmatpush2.msra.mxu0 0.0
    %1492 = vmatprep.subr.mxu0 0.0
    %1493 = vmatpush2.msra.mxu0 0.0
    %1494 = vmatprep.subr.mxu0 0.0
    %1495 = vmatpush2.msra.mxu0 0.0
    %1496 = vmatprep.subr.mxu0 0.0
    %1497 = vmatpush2.msra.mxu0 0.0
    %1498 = vmatprep.subr.mxu0 0.0
    %1499 = vmatpush2.msra.mxu0 0.0
    %1500 = vmatprep.subr.mxu0 0.0
    %1501 = vmatpush2.msra.mxu0 0.0
    %1502 = vmatprep.subr.mxu0 0.0
    %1503 = vmatpush2.msra.mxu0 0.0
    %1504 = vmatprep.subr.mxu0 0.0
    %1505 = vmatpush2.msra.mxu0 0.0
    %1506 = vmatprep.subr.mxu0 0.0
    %1507 = vmatpush2.msra.mxu0 0.0
    %1508 = vmatprep.subr.mxu0 0.0
    %1509 = vmatpush2.msra.mxu0 0.0
    %1510 = vmatprep.subr.mxu0 0.0
    %1511 = vmatpush2.msra.mxu0 0.0
    %1512 = vmatprep.mubr.f32.mxu0 0.0
    %1513 = vmatmul.mubr.f32.gmra.mxu0 %v1369
    %v1514 = vpop.f32.mrf.mxu0
    %v1515 = vadd.f32 0.0, %v1514
    %v1516 = vpop.f32.mrf.mxu0
    %v1517 = vadd.f32 0.0, %v1516
    %1518 = vdwg.mxu0
    %v1519 = vadd.f32 %v1373, %v1444
    %v1520 = vadd.f32 %v1374, %v1446
    %v1521 = vadd.f32 %v1375, %v1515
    %v1522 = vadd.f32 %v1376, %v1517
    %v1523 = vxor.u32 %v1519, 2147483648
    %v1524 = vxor.u32 %v1520, 2147483648
    %v1525 = vxor.u32 %v1521, 2147483648
    %v1526 = vmul.f32 %v1523, 1.442695
    %v1527 = vpow.pop %v1526
    %v1528 = vmul.f32 %v1524, 1.442695
    %v1529 = vpow.pop %v1528
    %v1530 = vmul.f32 %v1525, 1.442695
    %v1531 = vpow.pop %v1530
    %v1532 = vadd.f32 %v1527, 1.0
    %v1533 = vadd.f32 %v1529, 1.0
    %v1534 = vadd.f32 %v1531, 1.0
    %v1535 = vrcp.pop %v1532
    %v1536 = vmul.f32 1.0, %v1535
    %v1537 = vrcp.pop %v1533
    %v1538 = vmul.f32 1.0, %v1537
    %v1539 = vrcp.pop %v1534
    %v1540 = vmul.f32 1.0, %v1539
    %v1541 = vtanh.pop %v1522
    %v1542 = vmul.f32 %v1538, %v1367
    %v1543 = vmul.f32 %v1536, %v1541
    %v1544 = vadd.f32 %v1542, %v1543
    %v1545 = vtanh.pop %v1544
    %v1546 = vmul.f32 %v1540, %v1545
    %s1547 = smul.u32 5, 4
    %s1548 = smul.addr %s1547, 8
    %s1549 = scalar_lea.vmem [#allocation2], %s1548
    %v1550 = vld [vmem:[%s1549] sm:$0xff]
    %v1551 = vld [vmem:[%s1549 + $0x8] sm:$0xff]
    %v1552 = vld [vmem:[%s1549 + $0x10] sm:$0xff]
    %v1553 = vld [vmem:[%s1549 + $0x18] sm:$0xff]
    %1554 = vmatprep.subr.mxu0 %v666
    %1555 = vmatpush1.msra.mxu0 %v665
    %1556 = vmatprep.subr.mxu0 %v662
    %1557 = vmatpush1.msra.mxu0 %v661
    %1558 = vmatprep.subr.mxu0 %v658
    %1559 = vmatpush1.msra.mxu0 %v657
    %1560 = vmatprep.subr.mxu0 %v654
    %1561 = vmatpush1.msra.mxu0 %v653
    %1562 = vmatprep.subr.mxu0 %v650
    %1563 = vmatpush1.msra.mxu0 %v649
    %1564 = vmatprep.subr.mxu0 %v646
    %1565 = vmatpush1.msra.mxu0 %v645
    %1566 = vmatprep.subr.mxu0 %v642
    %1567 = vmatpush1.msra.mxu0 %v641
    %1568 = vmatprep.subr.mxu0 %v638
    %1569 = vmatpush1.msra.mxu0 %v637
    %1570 = vmatprep.subr.mxu0 %v634
    %1571 = vmatpush1.msra.mxu0 %v633
    %1572 = vmatprep.subr.mxu0 %v630
    %1573 = vmatpush1.msra.mxu0 %v629
    %1574 = vmatprep.subr.mxu0 %v626
    %1575 = vmatpush1.msra.mxu0 %v625
    %1576 = vmatprep.subr.mxu0 %v622
    %1577 = vmatpush1.msra.mxu0 %v621
    %1578 = vmatprep.subr.mxu0 %v618
    %1579 = vmatpush1.msra.mxu0 %v617
    %1580 = vmatprep.subr.mxu0 %v614
    %1581 = vmatpush1.msra.mxu0 %v613
    %1582 = vmatprep.subr.mxu0 %v610
    %1583 = vmatpush1.msra.mxu0 %v609
    %1584 = vmatprep.subr.mxu0 %v606
    %1585 = vmatpush1.msra.mxu0 %v605
    %1586 = vmatprep.subr.mxu0 0.0
    %1587 = vmatpush2.msra.mxu0 0.0
    %1588 = vmatprep.subr.mxu0 0.0
    %1589 = vmatpush2.msra.mxu0 0.0
    %1590 = vmatprep.subr.mxu0 0.0
    %1591 = vmatpush2.msra.mxu0 0.0
    %1592 = vmatprep.subr.mxu0 0.0
    %1593 = vmatpush2.msra.mxu0 0.0
    %1594 = vmatprep.subr.mxu0 0.0
    %1595 = vmatpush2.msra.mxu0 0.0
    %1596 = vmatprep.subr.mxu0 0.0
    %1597 = vmatpush2.msra.mxu0 0.0
    %1598 = vmatprep.subr.mxu0 0.0
    %1599 = vmatpush2.msra.mxu0 0.0
    %1600 = vmatprep.subr.mxu0 0.0
    %1601 = vmatpush2.msra.mxu0 0.0
    %1602 = vmatprep.subr.mxu0 0.0
    %1603 = vmatpush2.msra.mxu0 0.0
    %1604 = vmatprep.subr.mxu0 0.0
    %1605 = vmatpush2.msra.mxu0 0.0
    %1606 = vmatprep.subr.mxu0 0.0
    %1607 = vmatpush2.msra.mxu0 0.0
    %1608 = vmatprep.subr.mxu0 0.0
    %1609 = vmatpush2.msra.mxu0 0.0
    %1610 = vmatprep.subr.mxu0 0.0
    %1611 = vmatpush2.msra.mxu0 0.0
    %1612 = vmatprep.subr.mxu0 0.0
    %1613 = vmatpush2.msra.mxu0 0.0
    %1614 = vmatprep.subr.mxu0 0.0
    %1615 = vmatpush2.msra.mxu0 0.0
    %1616 = vmatprep.subr.mxu0 0.0
    %1617 = vmatpush2.msra.mxu0 0.0
    %1618 = vmatprep.mubr.f32.mxu0 0.0
    %1619 = vmatmul.mubr.f32.gmra.mxu0 %v1546
    %v1620 = vpop.f32.mrf.mxu0
    %v1621 = vadd.f32 0.0, %v1620
    %v1622 = vpop.f32.mrf.mxu0
    %v1623 = vadd.f32 0.0, %v1622
    %1624 = vdwg.mxu0
    %1625 = vmatprep.subr.mxu0 %v668
    %1626 = vmatpush1.msra.mxu0 %v667
    %1627 = vmatprep.subr.mxu0 %v664
    %1628 = vmatpush1.msra.mxu0 %v663
    %1629 = vmatprep.subr.mxu0 %v660
    %1630 = vmatpush1.msra.mxu0 %v659
    %1631 = vmatprep.subr.mxu0 %v656
    %1632 = vmatpush1.msra.mxu0 %v655
    %1633 = vmatprep.subr.mxu0 %v652
    %1634 = vmatpush1.msra.mxu0 %v651
    %1635 = vmatprep.subr.mxu0 %v648
    %1636 = vmatpush1.msra.mxu0 %v647
    %1637 = vmatprep.subr.mxu0 %v644
    %1638 = vmatpush1.msra.mxu0 %v643
    %1639 = vmatprep.subr.mxu0 %v640
    %1640 = vmatpush1.msra.mxu0 %v639
    %1641 = vmatprep.subr.mxu0 %v636
    %1642 = vmatpush1.msra.mxu0 %v635
    %1643 = vmatprep.subr.mxu0 %v632
    %1644 = vmatpush1.msra.mxu0 %v631
    %1645 = vmatprep.subr.mxu0 %v628
    %1646 = vmatpush1.msra.mxu0 %v627
    %1647 = vmatprep.subr.mxu0 %v624
    %1648 = vmatpush1.msra.mxu0 %v623
    %1649 = vmatprep.subr.mxu0 %v620
    %1650 = vmatpush1.msra.mxu0 %v619
    %1651 = vmatprep.subr.mxu0 %v616
    %1652 = vmatpush1.msra.mxu0 %v615
    %1653 = vmatprep.subr.mxu0 %v612
    %1654 = vmatpush1.msra.mxu0 %v611
    %1655 = vmatprep.subr.mxu0 %v608
    %1656 = vmatpush1.msra.mxu0 %v607
    %1657 = vmatprep.subr.mxu0 0.0
    %1658 = vmatpush2.msra.mxu0 0.0
    %1659 = vmatprep.subr.mxu0 0.0
    %1660 = vmatpush2.msra.mxu0 0.0
    %1661 = vmatprep.subr.mxu0 0.0
    %1662 = vmatpush2.msra.mxu0 0.0
    %1663 = vmatprep.subr.mxu0 0.0
    %1664 = vmatpush2.msra.mxu0 0.0
    %1665 = vmatprep.subr.mxu0 0.0
    %1666 = vmatpush2.msra.mxu0 0.0
    %1667 = vmatprep.subr.mxu0 0.0
    %1668 = vmatpush2.msra.mxu0 0.0
    %1669 = vmatprep.subr.mxu0 0.0
    %1670 = vmatpush2.msra.mxu0 0.0
    %1671 = vmatprep.subr.mxu0 0.0
    %1672 = vmatpush2.msra.mxu0 0.0
    %1673 = vmatprep.subr.mxu0 0.0
    %1674 = vmatpush2.msra.mxu0 0.0
    %1675 = vmatprep.subr.mxu0 0.0
    %1676 = vmatpush2.msra.mxu0 0.0
    %1677 = vmatprep.subr.mxu0 0.0
    %1678 = vmatpush2.msra.mxu0 0.0
    %1679 = vmatprep.subr.mxu0 0.0
    %1680 = vmatpush2.msra.mxu0 0.0
    %1681 = vmatprep.subr.mxu0 0.0
    %1682 = vmatpush2.msra.mxu0 0.0
    %1683 = vmatprep.subr.mxu0 0.0
    %1684 = vmatpush2.msra.mxu0 0.0
    %1685 = vmatprep.subr.mxu0 0.0
    %1686 = vmatpush2.msra.mxu0 0.0
    %1687 = vmatprep.subr.mxu0 0.0
    %1688 = vmatpush2.msra.mxu0 0.0
    %1689 = vmatprep.mubr.f32.mxu0 0.0
    %1690 = vmatmul.mubr.f32.gmra.mxu0 %v1546
    %v1691 = vpop.f32.mrf.mxu0
    %v1692 = vadd.f32 0.0, %v1691
    %v1693 = vpop.f32.mrf.mxu0
    %v1694 = vadd.f32 0.0, %v1693
    %1695 = vdwg.mxu0
    %v1696 = vadd.f32 %v1550, %v1621
    %v1697 = vadd.f32 %v1551, %v1623
    %v1698 = vadd.f32 %v1552, %v1692
    %v1699 = vadd.f32 %v1553, %v1694
    %v1700 = vxor.u32 %v1696, 2147483648
    %v1701 = vxor.u32 %v1697, 2147483648
    %v1702 = vxor.u32 %v1698, 2147483648
    %v1703 = vmul.f32 %v1700, 1.442695
    %v1704 = vpow.pop %v1703
    %v1705 = vmul.f32 %v1701, 1.442695
    %v1706 = vpow.pop %v1705
    %v1707 = vmul.f32 %v1702, 1.442695
    %v1708 = vpow.pop %v1707
    %v1709 = vadd.f32 %v1704, 1.0
    %v1710 = vadd.f32 %v1706, 1.0
    %v1711 = vadd.f32 %v1708, 1.0
    %v1712 = vrcp.pop %v1709
    %v1713 = vmul.f32 1.0, %v1712
    %v1714 = vrcp.pop %v1710
    %v1715 = vmul.f32 1.0, %v1714
    %v1716 = vrcp.pop %v1711
    %v1717 = vmul.f32 1.0, %v1716
    %v1718 = vtanh.pop %v1699
    %v1719 = vmul.f32 %v1715, %v1544
    %v1720 = vmul.f32 %v1713, %v1718
    %v1721 = vadd.f32 %v1719, %v1720
    %v1722 = vtanh.pop %v1721
    %v1723 = vmul.f32 %v1717, %v1722
    %s1724 = smul.u32 6, 4
    %s1725 = smul.addr %s1724, 8
    %s1726 = scalar_lea.vmem [#allocation2], %s1725
    %v1727 = vld [vmem:[%s1726] sm:$0xff]
    %v1728 = vld [vmem:[%s1726 + $0x8] sm:$0xff]
    %v1729 = vld [vmem:[%s1726 + $0x10] sm:$0xff]
    %v1730 = vld [vmem:[%s1726 + $0x18] sm:$0xff]
    %1731 = vmatprep.subr.mxu0 %v666
    %1732 = vmatpush1.msra.mxu0 %v665
    %1733 = vmatprep.subr.mxu0 %v662
    %1734 = vmatpush1.msra.mxu0 %v661
    %1735 = vmatprep.subr.mxu0 %v658
    %1736 = vmatpush1.msra.mxu0 %v657
    %1737 = vmatprep.subr.mxu0 %v654
    %1738 = vmatpush1.msra.mxu0 %v653
    %1739 = vmatprep.subr.mxu0 %v650
    %1740 = vmatpush1.msra.mxu0 %v649
    %1741 = vmatprep.subr.mxu0 %v646
    %1742 = vmatpush1.msra.mxu0 %v645
    %1743 = vmatprep.subr.mxu0 %v642
    %1744 = vmatpush1.msra.mxu0 %v641
    %1745 = vmatprep.subr.mxu0 %v638
    %1746 = vmatpush1.msra.mxu0 %v637
    %1747 = vmatprep.subr.mxu0 %v634
    %1748 = vmatpush1.msra.mxu0 %v633
    %1749 = vmatprep.subr.mxu0 %v630
    %1750 = vmatpush1.msra.mxu0 %v629
    %1751 = vmatprep.subr.mxu0 %v626
    %1752 = vmatpush1.msra.mxu0 %v625
    %1753 = vmatprep.subr.mxu0 %v622
    %1754 = vmatpush1.msra.mxu0 %v621
    %1755 = vmatprep.subr.mxu0 %v618
    %1756 = vmatpush1.msra.mxu0 %v617
    %1757 = vmatprep.subr.mxu0 %v614
    %1758 = vmatpush1.msra.mxu0 %v613
    %1759 = vmatprep.subr.mxu0 %v610
    %1760 = vmatpush1.msra.mxu0 %v609
    %1761 = vmatprep.subr.mxu0 %v606
    %1762 = vmatpush1.msra.mxu0 %v605
    %1763 = vmatprep.subr.mxu0 0.0
    %1764 = vmatpush2.msra.mxu0 0.0
    %1765 = vmatprep.subr.mxu0 0.0
    %1766 = vmatpush2.msra.mxu0 0.0
    %1767 = vmatprep.subr.mxu0 0.0
    %1768 = vmatpush2.msra.mxu0 0.0
    %1769 = vmatprep.subr.mxu0 0.0
    %1770 = vmatpush2.msra.mxu0 0.0
    %1771 = vmatprep.subr.mxu0 0.0
    %1772 = vmatpush2.msra.mxu0 0.0
    %1773 = vmatprep.subr.mxu0 0.0
    %1774 = vmatpush2.msra.mxu0 0.0
    %1775 = vmatprep.subr.mxu0 0.0
    %1776 = vmatpush2.msra.mxu0 0.0
    %1777 = vmatprep.subr.mxu0 0.0
    %1778 = vmatpush2.msra.mxu0 0.0
    %1779 = vmatprep.subr.mxu0 0.0
    %1780 = vmatpush2.msra.mxu0 0.0
    %1781 = vmatprep.subr.mxu0 0.0
    %1782 = vmatpush2.msra.mxu0 0.0
    %1783 = vmatprep.subr.mxu0 0.0
    %1784 = vmatpush2.msra.mxu0 0.0
    %1785 = vmatprep.subr.mxu0 0.0
    %1786 = vmatpush2.msra.mxu0 0.0
    %1787 = vmatprep.subr.mxu0 0.0
    %1788 = vmatpush2.msra.mxu0 0.0
    %1789 = vmatprep.subr.mxu0 0.0
    %1790 = vmatpush2.msra.mxu0 0.0
    %1791 = vmatprep.subr.mxu0 0.0
    %1792 = vmatpush2.msra.mxu0 0.0
    %1793 = vmatprep.subr.mxu0 0.0
    %1794 = vmatpush2.msra.mxu0 0.0
    %1795 = vmatprep.mubr.f32.mxu0 0.0
    %1796 = vmatmul.mubr.f32.gmra.mxu0 %v1723
    %v1797 = vpop.f32.mrf.mxu0
    %v1798 = vadd.f32 0.0, %v1797
    %v1799 = vpop.f32.mrf.mxu0
    %v1800 = vadd.f32 0.0, %v1799
    %1801 = vdwg.mxu0
    %1802 = vmatprep.subr.mxu0 %v668
    %1803 = vmatpush1.msra.mxu0 %v667
    %1804 = vmatprep.subr.mxu0 %v664
    %1805 = vmatpush1.msra.mxu0 %v663
    %1806 = vmatprep.subr.mxu0 %v660
    %1807 = vmatpush1.msra.mxu0 %v659
    %1808 = vmatprep.subr.mxu0 %v656
    %1809 = vmatpush1.msra.mxu0 %v655
    %1810 = vmatprep.subr.mxu0 %v652
    %1811 = vmatpush1.msra.mxu0 %v651
    %1812 = vmatprep.subr.mxu0 %v648
    %1813 = vmatpush1.msra.mxu0 %v647
    %1814 = vmatprep.subr.mxu0 %v644
    %1815 = vmatpush1.msra.mxu0 %v643
    %1816 = vmatprep.subr.mxu0 %v640
    %1817 = vmatpush1.msra.mxu0 %v639
    %1818 = vmatprep.subr.mxu0 %v636
    %1819 = vmatpush1.msra.mxu0 %v635
    %1820 = vmatprep.subr.mxu0 %v632
    %1821 = vmatpush1.msra.mxu0 %v631
    %1822 = vmatprep.subr.mxu0 %v628
    %1823 = vmatpush1.msra.mxu0 %v627
    %1824 = vmatprep.subr.mxu0 %v624
    %1825 = vmatpush1.msra.mxu0 %v623
    %1826 = vmatprep.subr.mxu0 %v620
    %1827 = vmatpush1.msra.mxu0 %v619
    %1828 = vmatprep.subr.mxu0 %v616
    %1829 = vmatpush1.msra.mxu0 %v615
    %1830 = vmatprep.subr.mxu0 %v612
    %1831 = vmatpush1.msra.mxu0 %v611
    %1832 = vmatprep.subr.mxu0 %v608
    %1833 = vmatpush1.msra.mxu0 %v607
    %1834 = vmatprep.subr.mxu0 0.0
    %1835 = vmatpush2.msra.mxu0 0.0
    %1836 = vmatprep.subr.mxu0 0.0
    %1837 = vmatpush2.msra.mxu0 0.0
    %1838 = vmatprep.subr.mxu0 0.0
    %1839 = vmatpush2.msra.mxu0 0.0
    %1840 = vmatprep.subr.mxu0 0.0
    %1841 = vmatpush2.msra.mxu0 0.0
    %1842 = vmatprep.subr.mxu0 0.0
    %1843 = vmatpush2.msra.mxu0 0.0
    %1844 = vmatprep.subr.mxu0 0.0
    %1845 = vmatpush2.msra.mxu0 0.0
    %1846 = vmatprep.subr.mxu0 0.0
    %1847 = vmatpush2.msra.mxu0 0.0
    %1848 = vmatprep.subr.mxu0 0.0
    %1849 = vmatpush2.msra.mxu0 0.0
    %1850 = vmatprep.subr.mxu0 0.0
    %1851 = vmatpush2.msra.mxu0 0.0
    %1852 = vmatprep.subr.mxu0 0.0
    %1853 = vmatpush2.msra.mxu0 0.0
    %1854 = vmatprep.subr.mxu0 0.0
    %1855 = vmatpush2.msra.mxu0 0.0
    %1856 = vmatprep.subr.mxu0 0.0
    %1857 = vmatpush2.msra.mxu0 0.0
    %1858 = vmatprep.subr.mxu0 0.0
    %1859 = vmatpush2.msra.mxu0 0.0
    %1860 = vmatprep.subr.mxu0 0.0
    %1861 = vmatpush2.msra.mxu0 0.0
    %1862 = vmatprep.subr.mxu0 0.0
    %1863 = vmatpush2.msra.mxu0 0.0
    %1864 = vmatprep.subr.mxu0 0.0
    %1865 = vmatpush2.msra.mxu0 0.0
    %1866 = vmatprep.mubr.f32.mxu0 0.0
    %1867 = vmatmul.mubr.f32.gmra.mxu0 %v1723
    %v1868 = vpop.f32.mrf.mxu0
    %v1869 = vadd.f32 0.0, %v1868
    %v1870 = vpop.f32.mrf.mxu0
    %v1871 = vadd.f32 0.0, %v1870
    %1872 = vdwg.mxu0
    %v1873 = vadd.f32 %v1727, %v1798
    %v1874 = vadd.f32 %v1728, %v1800
    %v1875 = vadd.f32 %v1729, %v1869
    %v1876 = vadd.f32 %v1730, %v1871
    %v1877 = vxor.u32 %v1873, 2147483648
    %v1878 = vxor.u32 %v1874, 2147483648
    %v1879 = vxor.u32 %v1875, 2147483648
    %v1880 = vmul.f32 %v1877, 1.442695
    %v1881 = vpow.pop %v1880
    %v1882 = vmul.f32 %v1878, 1.442695
    %v1883 = vpow.pop %v1882
    %v1884 = vmul.f32 %v1879, 1.442695
    %v1885 = vpow.pop %v1884
    %v1886 = vadd.f32 %v1881, 1.0
    %v1887 = vadd.f32 %v1883, 1.0
    %v1888 = vadd.f32 %v1885, 1.0
    %v1889 = vrcp.pop %v1886
    %v1890 = vmul.f32 1.0, %v1889
    %v1891 = vrcp.pop %v1887
    %v1892 = vmul.f32 1.0, %v1891
    %v1893 = vrcp.pop %v1888
    %v1894 = vmul.f32 1.0, %v1893
    %v1895 = vtanh.pop %v1876
    %v1896 = vmul.f32 %v1892, %v1721
    %v1897 = vmul.f32 %v1890, %v1895
    %v1898 = vadd.f32 %v1896, %v1897
    %v1899 = vtanh.pop %v1898
    %v1900 = vmul.f32 %v1894, %v1899
    %s1901 = smul.u32 7, 4
    %s1902 = smul.addr %s1901, 8
    %s1903 = scalar_lea.vmem [#allocation2], %s1902
    %v1904 = vld [vmem:[%s1903] sm:$0xff]
    %v1905 = vld [vmem:[%s1903 + $0x8] sm:$0xff]
    %v1906 = vld [vmem:[%s1903 + $0x10] sm:$0xff]
    %v1907 = vld [vmem:[%s1903 + $0x18] sm:$0xff]
    %1908 = vmatprep.subr.mxu0 %v666
    %1909 = vmatpush1.msra.mxu0 %v665
    %1910 = vmatprep.subr.mxu0 %v662
    %1911 = vmatpush1.msra.mxu0 %v661
    %1912 = vmatprep.subr.mxu0 %v658
    %1913 = vmatpush1.msra.mxu0 %v657
    %1914 = vmatprep.subr.mxu0 %v654
    %1915 = vmatpush1.msra.mxu0 %v653
    %1916 = vmatprep.subr.mxu0 %v650
    %1917 = vmatpush1.msra.mxu0 %v649
    %1918 = vmatprep.subr.mxu0 %v646
    %1919 = vmatpush1.msra.mxu0 %v645
    %1920 = vmatprep.subr.mxu0 %v642
    %1921 = vmatpush1.msra.mxu0 %v641
    %1922 = vmatprep.subr.mxu0 %v638
    %1923 = vmatpush1.msra.mxu0 %v637
    %1924 = vmatprep.subr.mxu0 %v634
    %1925 = vmatpush1.msra.mxu0 %v633
    %1926 = vmatprep.subr.mxu0 %v630
    %1927 = vmatpush1.msra.mxu0 %v629
    %1928 = vmatprep.subr.mxu0 %v626
    %1929 = vmatpush1.msra.mxu0 %v625
    %1930 = vmatprep.subr.mxu0 %v622
    %1931 = vmatpush1.msra.mxu0 %v621
    %1932 = vmatprep.subr.mxu0 %v618
    %1933 = vmatpush1.msra.mxu0 %v617
    %1934 = vmatprep.subr.mxu0 %v614
    %1935 = vmatpush1.msra.mxu0 %v613
    %1936 = vmatprep.subr.mxu0 %v610
    %1937 = vmatpush1.msra.mxu0 %v609
    %1938 = vmatprep.subr.mxu0 %v606
    %1939 = vmatpush1.msra.mxu0 %v605
    %1940 = vmatprep.subr.mxu0 0.0
    %1941 = vmatpush2.msra.mxu0 0.0
    %1942 = vmatprep.subr.mxu0 0.0
    %1943 = vmatpush2.msra.mxu0 0.0
    %1944 = vmatprep.subr.mxu0 0.0
    %1945 = vmatpush2.msra.mxu0 0.0
    %1946 = vmatprep.subr.mxu0 0.0
    %1947 = vmatpush2.msra.mxu0 0.0
    %1948 = vmatprep.subr.mxu0 0.0
    %1949 = vmatpush2.msra.mxu0 0.0
    %1950 = vmatprep.subr.mxu0 0.0
    %1951 = vmatpush2.msra.mxu0 0.0
    %1952 = vmatprep.subr.mxu0 0.0
    %1953 = vmatpush2.msra.mxu0 0.0
    %1954 = vmatprep.subr.mxu0 0.0
    %1955 = vmatpush2.msra.mxu0 0.0
    %1956 = vmatprep.subr.mxu0 0.0
    %1957 = vmatpush2.msra.mxu0 0.0
    %1958 = vmatprep.subr.mxu0 0.0
    %1959 = vmatpush2.msra.mxu0 0.0
    %1960 = vmatprep.subr.mxu0 0.0
    %1961 = vmatpush2.msra.mxu0 0.0
    %1962 = vmatprep.subr.mxu0 0.0
    %1963 = vmatpush2.msra.mxu0 0.0
    %1964 = vmatprep.subr.mxu0 0.0
    %1965 = vmatpush2.msra.mxu0 0.0
    %1966 = vmatprep.subr.mxu0 0.0
    %1967 = vmatpush2.msra.mxu0 0.0
    %1968 = vmatprep.subr.mxu0 0.0
    %1969 = vmatpush2.msra.mxu0 0.0
    %1970 = vmatprep.subr.mxu0 0.0
    %1971 = vmatpush2.msra.mxu0 0.0
    %1972 = vmatprep.mubr.f32.mxu0 0.0
    %1973 = vmatmul.mubr.f32.gmra.mxu0 %v1900
    %v1974 = vpop.f32.mrf.mxu0
    %v1975 = vadd.f32 0.0, %v1974
    %v1976 = vpop.f32.mrf.mxu0
    %v1977 = vadd.f32 0.0, %v1976
    %1978 = vdwg.mxu0
    %1979 = vmatprep.subr.mxu0 %v668
    %1980 = vmatpush1.msra.mxu0 %v667
    %1981 = vmatprep.subr.mxu0 %v664
    %1982 = vmatpush1.msra.mxu0 %v663
    %1983 = vmatprep.subr.mxu0 %v660
    %1984 = vmatpush1.msra.mxu0 %v659
    %1985 = vmatprep.subr.mxu0 %v656
    %1986 = vmatpush1.msra.mxu0 %v655
    %1987 = vmatprep.subr.mxu0 %v652
    %1988 = vmatpush1.msra.mxu0 %v651
    %1989 = vmatprep.subr.mxu0 %v648
    %1990 = vmatpush1.msra.mxu0 %v647
    %1991 = vmatprep.subr.mxu0 %v644
    %1992 = vmatpush1.msra.mxu0 %v643
    %1993 = vmatprep.subr.mxu0 %v640
    %1994 = vmatpush1.msra.mxu0 %v639
    %1995 = vmatprep.subr.mxu0 %v636
    %1996 = vmatpush1.msra.mxu0 %v635
    %1997 = vmatprep.subr.mxu0 %v632
    %1998 = vmatpush1.msra.mxu0 %v631
    %1999 = vmatprep.subr.mxu0 %v628
    %2000 = vmatpush1.msra.mxu0 %v627
    %2001 = vmatprep.subr.mxu0 %v624
    %2002 = vmatpush1.msra.mxu0 %v623
    %2003 = vmatprep.subr.mxu0 %v620
    %2004 = vmatpush1.msra.mxu0 %v619
    %2005 = vmatprep.subr.mxu0 %v616
    %2006 = vmatpush1.msra.mxu0 %v615
    %2007 = vmatprep.subr.mxu0 %v612
    %2008 = vmatpush1.msra.mxu0 %v611
    %2009 = vmatprep.subr.mxu0 %v608
    %2010 = vmatpush1.msra.mxu0 %v607
    %2011 = vmatprep.subr.mxu0 0.0
    %2012 = vmatpush2.msra.mxu0 0.0
    %2013 = vmatprep.subr.mxu0 0.0
    %2014 = vmatpush2.msra.mxu0 0.0
    %2015 = vmatprep.subr.mxu0 0.0
    %2016 = vmatpush2.msra.mxu0 0.0
    %2017 = vmatprep.subr.mxu0 0.0
    %2018 = vmatpush2.msra.mxu0 0.0
    %2019 = vmatprep.subr.mxu0 0.0
    %2020 = vmatpush2.msra.mxu0 0.0
    %2021 = vmatprep.subr.mxu0 0.0
    %2022 = vmatpush2.msra.mxu0 0.0
    %2023 = vmatprep.subr.mxu0 0.0
    %2024 = vmatpush2.msra.mxu0 0.0
    %2025 = vmatprep.subr.mxu0 0.0
    %2026 = vmatpush2.msra.mxu0 0.0
    %2027 = vmatprep.subr.mxu0 0.0
    %2028 = vmatpush2.msra.mxu0 0.0
    %2029 = vmatprep.subr.mxu0 0.0
    %2030 = vmatpush2.msra.mxu0 0.0
    %2031 = vmatprep.subr.mxu0 0.0
    %2032 = vmatpush2.msra.mxu0 0.0
    %2033 = vmatprep.subr.mxu0 0.0
    %2034 = vmatpush2.msra.mxu0 0.0
    %2035 = vmatprep.subr.mxu0 0.0
    %2036 = vmatpush2.msra.mxu0 0.0
    %2037 = vmatprep.subr.mxu0 0.0
    %2038 = vmatpush2.msra.mxu0 0.0
    %2039 = vmatprep.subr.mxu0 0.0
    %2040 = vmatpush2.msra.mxu0 0.0
    %2041 = vmatprep.subr.mxu0 0.0
    %2042 = vmatpush2.msra.mxu0 0.0
    %2043 = vmatprep.mubr.f32.mxu0 0.0
    %2044 = vmatmul.mubr.f32.gmra.mxu0 %v1900
    %v2045 = vpop.f32.mrf.mxu0
    %v2046 = vadd.f32 0.0, %v2045
    %v2047 = vpop.f32.mrf.mxu0
    %v2048 = vadd.f32 0.0, %v2047
    %2049 = vdwg.mxu0
    %v2050 = vadd.f32 %v1904, %v1975
    %v2051 = vadd.f32 %v1905, %v1977
    %v2052 = vadd.f32 %v1906, %v2046
    %v2053 = vadd.f32 %v1907, %v2048
    %v2054 = vxor.u32 %v2050, 2147483648
    %v2055 = vxor.u32 %v2051, 2147483648
    %v2056 = vxor.u32 %v2052, 2147483648
    %v2057 = vmul.f32 %v2054, 1.442695
    %v2058 = vpow.pop %v2057
    %v2059 = vmul.f32 %v2055, 1.442695
    %v2060 = vpow.pop %v2059
    %v2061 = vmul.f32 %v2056, 1.442695
    %v2062 = vpow.pop %v2061
    %v2063 = vadd.f32 %v2058, 1.0
    %v2064 = vadd.f32 %v2060, 1.0
    %v2065 = vadd.f32 %v2062, 1.0
    %v2066 = vrcp.pop %v2063
    %v2067 = vmul.f32 1.0, %v2066
    %v2068 = vrcp.pop %v2064
    %v2069 = vmul.f32 1.0, %v2068
    %v2070 = vrcp.pop %v2065
    %v2071 = vmul.f32 1.0, %v2070
    %v2072 = vtanh.pop %v2053
    %v2073 = vmul.f32 %v2069, %v1898
    %v2074 = vmul.f32 %v2067, %v2072
    %v2075 = vadd.f32 %v2073, %v2074
    %v2076 = vtanh.pop %v2075
    %v2077 = vmul.f32 %v2071, %v2076
    %s2078 = smul.u32 8, 4
    %s2079 = smul.addr %s2078, 8
    %s2080 = scalar_lea.vmem [#allocation2], %s2079
    %v2081 = vld [vmem:[%s2080] sm:$0xff]
    %v2082 = vld [vmem:[%s2080 + $0x8] sm:$0xff]
    %v2083 = vld [vmem:[%s2080 + $0x10] sm:$0xff]
    %v2084 = vld [vmem:[%s2080 + $0x18] sm:$0xff]
    %2085 = vmatprep.subr.mxu0 %v666
    %2086 = vmatpush1.msra.mxu0 %v665
    %2087 = vmatprep.subr.mxu0 %v662
    %2088 = vmatpush1.msra.mxu0 %v661
    %2089 = vmatprep.subr.mxu0 %v658
    %2090 = vmatpush1.msra.mxu0 %v657
    %2091 = vmatprep.subr.mxu0 %v654
    %2092 = vmatpush1.msra.mxu0 %v653
    %2093 = vmatprep.subr.mxu0 %v650
    %2094 = vmatpush1.msra.mxu0 %v649
    %2095 = vmatprep.subr.mxu0 %v646
    %2096 = vmatpush1.msra.mxu0 %v645
    %2097 = vmatprep.subr.mxu0 %v642
    %2098 = vmatpush1.msra.mxu0 %v641
    %2099 = vmatprep.subr.mxu0 %v638
    %2100 = vmatpush1.msra.mxu0 %v637
    %2101 = vmatprep.subr.mxu0 %v634
    %2102 = vmatpush1.msra.mxu0 %v633
    %2103 = vmatprep.subr.mxu0 %v630
    %2104 = vmatpush1.msra.mxu0 %v629
    %2105 = vmatprep.subr.mxu0 %v626
    %2106 = vmatpush1.msra.mxu0 %v625
    %2107 = vmatprep.subr.mxu0 %v622
    %2108 = vmatpush1.msra.mxu0 %v621
    %2109 = vmatprep.subr.mxu0 %v618
    %2110 = vmatpush1.msra.mxu0 %v617
    %2111 = vmatprep.subr.mxu0 %v614
    %2112 = vmatpush1.msra.mxu0 %v613
    %2113 = vmatprep.subr.mxu0 %v610
    %2114 = vmatpush1.msra.mxu0 %v609
    %2115 = vmatprep.subr.mxu0 %v606
    %2116 = vmatpush1.msra.mxu0 %v605
    %2117 = vmatprep.subr.mxu0 0.0
    %2118 = vmatpush2.msra.mxu0 0.0
    %2119 = vmatprep.subr.mxu0 0.0
    %2120 = vmatpush2.msra.mxu0 0.0
    %2121 = vmatprep.subr.mxu0 0.0
    %2122 = vmatpush2.msra.mxu0 0.0
    %2123 = vmatprep.subr.mxu0 0.0
    %2124 = vmatpush2.msra.mxu0 0.0
    %2125 = vmatprep.subr.mxu0 0.0
    %2126 = vmatpush2.msra.mxu0 0.0
    %2127 = vmatprep.subr.mxu0 0.0
    %2128 = vmatpush2.msra.mxu0 0.0
    %2129 = vmatprep.subr.mxu0 0.0
    %2130 = vmatpush2.msra.mxu0 0.0
    %2131 = vmatprep.subr.mxu0 0.0
    %2132 = vmatpush2.msra.mxu0 0.0
    %2133 = vmatprep.subr.mxu0 0.0
    %2134 = vmatpush2.msra.mxu0 0.0
    %2135 = vmatprep.subr.mxu0 0.0
    %2136 = vmatpush2.msra.mxu0 0.0
    %2137 = vmatprep.subr.mxu0 0.0
    %2138 = vmatpush2.msra.mxu0 0.0
    %2139 = vmatprep.subr.mxu0 0.0
    %2140 = vmatpush2.msra.mxu0 0.0
    %2141 = vmatprep.subr.mxu0 0.0
    %2142 = vmatpush2.msra.mxu0 0.0
    %2143 = vmatprep.subr.mxu0 0.0
    %2144 = vmatpush2.msra.mxu0 0.0
    %2145 = vmatprep.subr.mxu0 0.0
    %2146 = vmatpush2.msra.mxu0 0.0
    %2147 = vmatprep.subr.mxu0 0.0
    %2148 = vmatpush2.msra.mxu0 0.0
    %2149 = vmatprep.mubr.f32.mxu0 0.0
    %2150 = vmatmul.mubr.f32.gmra.mxu0 %v2077
    %v2151 = vpop.f32.mrf.mxu0
    %v2152 = vadd.f32 0.0, %v2151
    %v2153 = vpop.f32.mrf.mxu0
    %v2154 = vadd.f32 0.0, %v2153
    %2155 = vdwg.mxu0
    %2156 = vmatprep.subr.mxu0 %v668
    %2157 = vmatpush1.msra.mxu0 %v667
    %2158 = vmatprep.subr.mxu0 %v664
    %2159 = vmatpush1.msra.mxu0 %v663
    %2160 = vmatprep.subr.mxu0 %v660
    %2161 = vmatpush1.msra.mxu0 %v659
    %2162 = vmatprep.subr.mxu0 %v656
    %2163 = vmatpush1.msra.mxu0 %v655
    %2164 = vmatprep.subr.mxu0 %v652
    %2165 = vmatpush1.msra.mxu0 %v651
    %2166 = vmatprep.subr.mxu0 %v648
    %2167 = vmatpush1.msra.mxu0 %v647
    %2168 = vmatprep.subr.mxu0 %v644
    %2169 = vmatpush1.msra.mxu0 %v643
    %2170 = vmatprep.subr.mxu0 %v640
    %2171 = vmatpush1.msra.mxu0 %v639
    %2172 = vmatprep.subr.mxu0 %v636
    %2173 = vmatpush1.msra.mxu0 %v635
    %2174 = vmatprep.subr.mxu0 %v632
    %2175 = vmatpush1.msra.mxu0 %v631
    %2176 = vmatprep.subr.mxu0 %v628
    %2177 = vmatpush1.msra.mxu0 %v627
    %2178 = vmatprep.subr.mxu0 %v624
    %2179 = vmatpush1.msra.mxu0 %v623
    %2180 = vmatprep.subr.mxu0 %v620
    %2181 = vmatpush1.msra.mxu0 %v619
    %2182 = vmatprep.subr.mxu0 %v616
    %2183 = vmatpush1.msra.mxu0 %v615
    %2184 = vmatprep.subr.mxu0 %v612
    %2185 = vmatpush1.msra.mxu0 %v611
    %2186 = vmatprep.subr.mxu0 %v608
    %2187 = vmatpush1.msra.mxu0 %v607
    %2188 = vmatprep.subr.mxu0 0.0
    %2189 = vmatpush2.msra.mxu0 0.0
    %2190 = vmatprep.subr.mxu0 0.0
    %2191 = vmatpush2.msra.mxu0 0.0
    %2192 = vmatprep.subr.mxu0 0.0
    %2193 = vmatpush2.msra.mxu0 0.0
    %2194 = vmatprep.subr.mxu0 0.0
    %2195 = vmatpush2.msra.mxu0 0.0
    %2196 = vmatprep.subr.mxu0 0.0
    %2197 = vmatpush2.msra.mxu0 0.0
    %2198 = vmatprep.subr.mxu0 0.0
    %2199 = vmatpush2.msra.mxu0 0.0
    %2200 = vmatprep.subr.mxu0 0.0
    %2201 = vmatpush2.msra.mxu0 0.0
    %2202 = vmatprep.subr.mxu0 0.0
    %2203 = vmatpush2.msra.mxu0 0.0
    %2204 = vmatprep.subr.mxu0 0.0
    %2205 = vmatpush2.msra.mxu0 0.0
    %2206 = vmatprep.subr.mxu0 0.0
    %2207 = vmatpush2.msra.mxu0 0.0
    %2208 = vmatprep.subr.mxu0 0.0
    %2209 = vmatpush2.msra.mxu0 0.0
    %2210 = vmatprep.subr.mxu0 0.0
    %2211 = vmatpush2.msra.mxu0 0.0
    %2212 = vmatprep.subr.mxu0 0.0
    %2213 = vmatpush2.msra.mxu0 0.0
    %2214 = vmatprep.subr.mxu0 0.0
    %2215 = vmatpush2.msra.mxu0 0.0
    %2216 = vmatprep.subr.mxu0 0.0
    %2217 = vmatpush2.msra.mxu0 0.0
    %2218 = vmatprep.subr.mxu0 0.0
    %2219 = vmatpush2.msra.mxu0 0.0
    %2220 = vmatprep.mubr.f32.mxu0 0.0
    %2221 = vmatmul.mubr.f32.gmra.mxu0 %v2077
    %v2222 = vpop.f32.mrf.mxu0
    %v2223 = vadd.f32 0.0, %v2222
    %v2224 = vpop.f32.mrf.mxu0
    %v2225 = vadd.f32 0.0, %v2224
    %2226 = vdwg.mxu0
    %v2227 = vadd.f32 %v2081, %v2152
    %v2228 = vadd.f32 %v2082, %v2154
    %v2229 = vadd.f32 %v2083, %v2223
    %v2230 = vadd.f32 %v2084, %v2225
    %v2231 = vxor.u32 %v2227, 2147483648
    %v2232 = vxor.u32 %v2228, 2147483648
    %v2233 = vxor.u32 %v2229, 2147483648
    %v2234 = vmul.f32 %v2231, 1.442695
    %v2235 = vpow.pop %v2234
    %v2236 = vmul.f32 %v2232, 1.442695
    %v2237 = vpow.pop %v2236
    %v2238 = vmul.f32 %v2233, 1.442695
    %v2239 = vpow.pop %v2238
    %v2240 = vadd.f32 %v2235, 1.0
    %v2241 = vadd.f32 %v2237, 1.0
    %v2242 = vadd.f32 %v2239, 1.0
    %v2243 = vrcp.pop %v2240
    %v2244 = vmul.f32 1.0, %v2243
    %v2245 = vrcp.pop %v2241
    %v2246 = vmul.f32 1.0, %v2245
    %v2247 = vrcp.pop %v2242
    %v2248 = vmul.f32 1.0, %v2247
    %v2249 = vtanh.pop %v2230
    %v2250 = vmul.f32 %v2246, %v2075
    %v2251 = vmul.f32 %v2244, %v2249
    %v2252 = vadd.f32 %v2250, %v2251
    %v2253 = vtanh.pop %v2252
    %v2254 = vmul.f32 %v2248, %v2253
    %v2255 = vld [vmem:[%s6] sm:$0xff]
    %v2256 = vld [vmem:[%s6 + $0x8] sm:$0xff]
    %v2257 = vld [vmem:[%s6 + $0x10] sm:$0xff]
    %v2258 = vld [vmem:[%s6 + $0x18] sm:$0xff]
    %v2259 = vld [vmem:[%s6 + $0x20] sm:$0xff]
    %v2260 = vld [vmem:[%s6 + $0x28] sm:$0xff]
    %v2261 = vld [vmem:[%s6 + $0x30] sm:$0xff]
    %v2262 = vld [vmem:[%s6 + $0x38] sm:$0xff]
    %v2263 = vld [vmem:[%s7] sm:$0x1]
    %v2265 = vlaneseq
    %v2266 = vshrl.u32 %v2265, 7
    %v2267 = vsub.s32 0, %v2266
    %v2268 = vrot.slane %v2263, %v2267
    %2271 = vrot.lane.b32.xlu0 %v2254, 64
    %v2272 = vpop.permute.xlu0 %2271
    %vm2273 = vcmask 523264
    %v2274 = vsel %vm2273, %v2272, 0
    %2276 = vmatprep.subr.mxu0 0.0
    %2277 = vmatpush1.msra.mxu0 0.0
    %2278 = vmatprep.subr.mxu0 0.0
    %2279 = vmatpush1.msra.mxu0 0.0
    %2280 = vmatprep.subr.mxu0 0.0
    %2281 = vmatpush1.msra.mxu0 0.0
    %2282 = vmatprep.subr.mxu0 0.0
    %2283 = vmatpush1.msra.mxu0 0.0
    %2284 = vmatprep.subr.mxu0 0.0
    %2285 = vmatpush1.msra.mxu0 0.0
    %2286 = vmatprep.subr.mxu0 0.0
    %2287 = vmatpush1.msra.mxu0 0.0
    %2288 = vmatprep.subr.mxu0 0.0
    %2289 = vmatpush1.msra.mxu0 0.0
    %2290 = vmatprep.subr.mxu0 0.0
    %2291 = vmatpush1.msra.mxu0 0.0
    %2292 = vmatprep.subr.mxu0 0.0
    %2293 = vmatpush1.msra.mxu0 %v2262
    %2294 = vmatprep.subr.mxu0 0.0
    %2295 = vmatpush1.msra.mxu0 %v2261
    %2296 = vmatprep.subr.mxu0 0.0
    %2297 = vmatpush1.msra.mxu0 %v2260
    %2298 = vmatprep.subr.mxu0 0.0
    %2299 = vmatpush1.msra.mxu0 %v2259
    %2300 = vmatprep.subr.mxu0 0.0
    %2301 = vmatpush1.msra.mxu0 %v2258
    %2302 = vmatprep.subr.mxu0 0.0
    %2303 = vmatpush1.msra.mxu0 %v2257
    %2304 = vmatprep.subr.mxu0 0.0
    %2305 = vmatpush1.msra.mxu0 %v2256
    %2306 = vmatprep.subr.mxu0 0.0
    %2307 = vmatpush1.msra.mxu0 %v2255
    %2308 = vmatprep.subr.mxu0 0.0
    %2309 = vmatpush2.msra.mxu0 0.0
    %2310 = vmatprep.subr.mxu0 0.0
    %2311 = vmatpush2.msra.mxu0 0.0
    %2312 = vmatprep.subr.mxu0 0.0
    %2313 = vmatpush2.msra.mxu0 0.0
    %2314 = vmatprep.subr.mxu0 0.0
    %2315 = vmatpush2.msra.mxu0 0.0
    %2316 = vmatprep.subr.mxu0 0.0
    %2317 = vmatpush2.msra.mxu0 0.0
    %2318 = vmatprep.subr.mxu0 0.0
    %2319 = vmatpush2.msra.mxu0 0.0
    %2320 = vmatprep.subr.mxu0 0.0
    %2321 = vmatpush2.msra.mxu0 0.0
    %2322 = vmatprep.subr.mxu0 0.0
    %2323 = vmatpush2.msra.mxu0 0.0
    %2324 = vmatprep.subr.mxu0 0.0
    %2325 = vmatpush2.msra.mxu0 0.0
    %2326 = vmatprep.subr.mxu0 0.0
    %2327 = vmatpush2.msra.mxu0 0.0
    %2328 = vmatprep.subr.mxu0 0.0
    %2329 = vmatpush2.msra.mxu0 0.0
    %2330 = vmatprep.subr.mxu0 0.0
    %2331 = vmatpush2.msra.mxu0 0.0
    %2332 = vmatprep.subr.mxu0 0.0
    %2333 = vmatpush2.msra.mxu0 0.0
    %2334 = vmatprep.subr.mxu0 0.0
    %2335 = vmatpush2.msra.mxu0 0.0
    %2336 = vmatprep.subr.mxu0 0.0
    %2337 = vmatpush2.msra.mxu0 0.0
    %2338 = vmatprep.subr.mxu0 0.0
    %2339 = vmatpush2.msra.mxu0 0.0
    %2340 = vmatprep.mubr.f32.mxu0 0.0
    %2341 = vmatmul.mubr.f32.gmra.mxu0 %v2274
    %v2342 = vpop.f32.mrf.mxu0
    %v2343 = vadd.f32 %v2268, %v2342
    %v2344 = vpop.f32.mrf.mxu0
    %2345 = vdwg.mxu0
    %v2346 = vsel %vm2273, %v2343, -inf
    %2347 = vmax.xlane.f32.xlu0 %v2346
    %v2348 = vpop.xlane.xlu0 %2347
    %v2349 = vsub.f32 %v2343, %v2348
    %v2350 = vmul.f32 %v2349, 1.442695
    %v2351 = vpow.pop %v2350
    %v2352 = vsel %vm2273, %v2351, 0.0
    %2353 = vadd.xlane.f32.xlu0 %v2352
    %v2354 = vpop.xlane.xlu0 %2353
    %v2355 = vrcp.pop %v2354
    %v2356 = vmul.f32 %v2351, %v2355
    %v2358 = vmul.f32 %v2356, %v2272
    %v2359 = vld [vmem:[%s8] sm:$0xff]
    %v2360 = vld [vmem:[%s8 + $0x8] sm:$0xff]
    %v2361 = vld [vmem:[%s8 + $0x10] sm:$0xff]
    %v2362 = vld [vmem:[%s8 + $0x18] sm:$0xff]
    %v2363 = vld [vmem:[%s8 + $0x20] sm:$0xff]
    %v2364 = vld [vmem:[%s8 + $0x28] sm:$0xff]
    %v2365 = vld [vmem:[%s8 + $0x30] sm:$0xff]
    %v2366 = vld [vmem:[%s8 + $0x38] sm:$0xff]
    %v2367 = vld [vmem:[%s9] sm:$0x1]
    %v2369 = vlaneseq
    %v2370 = vshrl.u32 %v2369, 7
    %v2371 = vsub.s32 0, %v2370
    %v2372 = vrot.slane %v2367, %v2371
    %v2375 = vsel %vm2273, %v2358, 0
    %2377 = vmatprep.subr.mxu0 0.0
    %2378 = vmatpush1.msra.mxu0 0.0
    %2379 = vmatprep.subr.mxu0 0.0
    %2380 = vmatpush1.msra.mxu0 0.0
    %2381 = vmatprep.subr.mxu0 0.0
    %2382 = vmatpush1.msra.mxu0 0.0
    %2383 = vmatprep.subr.mxu0 0.0
    %2384 = vmatpush1.msra.mxu0 0.0
    %2385 = vmatprep.subr.mxu0 0.0
    %2386 = vmatpush1.msra.mxu0 0.0
    %2387 = vmatprep.subr.mxu0 0.0
    %2388 = vmatpush1.msra.mxu0 0.0
    %2389 = vmatprep.subr.mxu0 0.0
    %2390 = vmatpush1.msra.mxu0 0.0
    %2391 = vmatprep.subr.mxu0 0.0
    %2392 = vmatpush1.msra.mxu0 0.0
    %2393 = vmatprep.subr.mxu0 0.0
    %2394 = vmatpush1.msra.mxu0 %v2366
    %2395 = vmatprep.subr.mxu0 0.0
    %2396 = vmatpush1.msra.mxu0 %v2365
    %2397 = vmatprep.subr.mxu0 0.0
    %2398 = vmatpush1.msra.mxu0 %v2364
    %2399 = vmatprep.subr.mxu0 0.0
    %2400 = vmatpush1.msra.mxu0 %v2363
    %2401 = vmatprep.subr.mxu0 0.0
    %2402 = vmatpush1.msra.mxu0 %v2362
    %2403 = vmatprep.subr.mxu0 0.0
    %2404 = vmatpush1.msra.mxu0 %v2361
    %2405 = vmatprep.subr.mxu0 0.0
    %2406 = vmatpush1.msra.mxu0 %v2360
    %2407 = vmatprep.subr.mxu0 0.0
    %2408 = vmatpush1.msra.mxu0 %v2359
    %2409 = vmatprep.subr.mxu0 0.0
    %2410 = vmatpush2.msra.mxu0 0.0
    %2411 = vmatprep.subr.mxu0 0.0
    %2412 = vmatpush2.msra.mxu0 0.0
    %2413 = vmatprep.subr.mxu0 0.0
    %2414 = vmatpush2.msra.mxu0 0.0
    %2415 = vmatprep.subr.mxu0 0.0
    %2416 = vmatpush2.msra.mxu0 0.0
    %2417 = vmatprep.subr.mxu0 0.0
    %2418 = vmatpush2.msra.mxu0 0.0
    %2419 = vmatprep.subr.mxu0 0.0
    %2420 = vmatpush2.msra.mxu0 0.0
    %2421 = vmatprep.subr.mxu0 0.0
    %2422 = vmatpush2.msra.mxu0 0.0
    %2423 = vmatprep.subr.mxu0 0.0
    %2424 = vmatpush2.msra.mxu0 0.0
    %2425 = vmatprep.subr.mxu0 0.0
    %2426 = vmatpush2.msra.mxu0 0.0
    %2427 = vmatprep.subr.mxu0 0.0
    %2428 = vmatpush2.msra.mxu0 0.0
    %2429 = vmatprep.subr.mxu0 0.0
    %2430 = vmatpush2.msra.mxu0 0.0
    %2431 = vmatprep.subr.mxu0 0.0
    %2432 = vmatpush2.msra.mxu0 0.0
    %2433 = vmatprep.subr.mxu0 0.0
    %2434 = vmatpush2.msra.mxu0 0.0
    %2435 = vmatprep.subr.mxu0 0.0
    %2436 = vmatpush2.msra.mxu0 0.0
    %2437 = vmatprep.subr.mxu0 0.0
    %2438 = vmatpush2.msra.mxu0 0.0
    %2439 = vmatprep.subr.mxu0 0.0
    %2440 = vmatpush2.msra.mxu0 0.0
    %2441 = vmatprep.mubr.f32.mxu0 0.0
    %2442 = vmatmul.mubr.f32.gmra.mxu0 %v2375
    %v2443 = vpop.f32.mrf.mxu0
    %v2444 = vadd.f32 %v2372, %v2443
    %v2445 = vpop.f32.mrf.mxu0
    %2446 = vdwg.mxu0
    %v2447 = vmax.f32 %v2444, 0.0
    %v2448 = vld [vmem:[%s10] sm:$0xff]
    %v2449 = vld [vmem:[%s10 + $0x8] sm:$0xff]
    %v2450 = vld [vmem:[%s10 + $0x10] sm:$0xff]
    %v2451 = vld [vmem:[%s10 + $0x18] sm:$0xff]
    %v2452 = vld [vmem:[#allocation3] sm:$0x1]
    %v2454 = vlaneseq
    %v2455 = vshrl.u32 %v2454, 7
    %v2456 = vsub.s32 0, %v2455
    %v2457 = vrot.slane %v2452, %v2456
    %vm2459 = vcmask 261120
    %v2461 = vsel %vm2459, %v2447, 0
    %2463 = vmatprep.subr.mxu0 0.0
    %2464 = vmatpush1.msra.mxu0 0.0
    %2465 = vmatprep.subr.mxu0 0.0
    %2466 = vmatpush1.msra.mxu0 0.0
    %2467 = vmatprep.subr.mxu0 0.0
    %2468 = vmatpush1.msra.mxu0 0.0
    %2469 = vmatprep.subr.mxu0 0.0
    %2470 = vmatpush1.msra.mxu0 0.0
    %2471 = vmatprep.subr.mxu0 0.0
    %2472 = vmatpush1.msra.mxu0 0.0
    %2473 = vmatprep.subr.mxu0 0.0
    %2474 = vmatpush1.msra.mxu0 0.0
    %2475 = vmatprep.subr.mxu0 0.0
    %2476 = vmatpush1.msra.mxu0 0.0
    %2477 = vmatprep.subr.mxu0 0.0
    %2478 = vmatpush1.msra.mxu0 0.0
    %2479 = vmatprep.subr.mxu0 0.0
    %2480 = vmatpush1.msra.mxu0 0.0
    %2481 = vmatprep.subr.mxu0 0.0
    %2482 = vmatpush1.msra.mxu0 0.0
    %2483 = vmatprep.subr.mxu0 0.0
    %2484 = vmatpush1.msra.mxu0 0.0
    %2485 = vmatprep.subr.mxu0 0.0
    %2486 = vmatpush1.msra.mxu0 0.0
    %2487 = vmatprep.subr.mxu0 0.0
    %2488 = vmatpush1.msra.mxu0 %v2451
    %2489 = vmatprep.subr.mxu0 0.0
    %2490 = vmatpush1.msra.mxu0 %v2450
    %2491 = vmatprep.subr.mxu0 0.0
    %2492 = vmatpush1.msra.mxu0 %v2449
    %2493 = vmatprep.subr.mxu0 0.0
    %2494 = vmatpush1.msra.mxu0 %v2448
    %2495 = vmatprep.subr.mxu0 0.0
    %2496 = vmatpush2.msra.mxu0 0.0
    %2497 = vmatprep.subr.mxu0 0.0
    %2498 = vmatpush2.msra.mxu0 0.0
    %2499 = vmatprep.subr.mxu0 0.0
    %2500 = vmatpush2.msra.mxu0 0.0
    %2501 = vmatprep.subr.mxu0 0.0
    %2502 = vmatpush2.msra.mxu0 0.0
    %2503 = vmatprep.subr.mxu0 0.0
    %2504 = vmatpush2.msra.mxu0 0.0
    %2505 = vmatprep.subr.mxu0 0.0
    %2506 = vmatpush2.msra.mxu0 0.0
    %2507 = vmatprep.subr.mxu0 0.0
    %2508 = vmatpush2.msra.mxu0 0.0
    %2509 = vmatprep.subr.mxu0 0.0
    %2510 = vmatpush2.msra.mxu0 0.0
    %2511 = vmatprep.subr.mxu0 0.0
    %2512 = vmatpush2.msra.mxu0 0.0
    %2513 = vmatprep.subr.mxu0 0.0
    %2514 = vmatpush2.msra.mxu0 0.0
    %2515 = vmatprep.subr.mxu0 0.0
    %2516 = vmatpush2.msra.mxu0 0.0
    %2517 = vmatprep.subr.mxu0 0.0
    %2518 = vmatpush2.msra.mxu0 0.0
    %2519 = vmatprep.subr.mxu0 0.0
    %2520 = vmatpush2.msra.mxu0 0.0
    %2521 = vmatprep.subr.mxu0 0.0
    %2522 = vmatpush2.msra.mxu0 0.0
    %2523 = vmatprep.subr.mxu0 0.0
    %2524 = vmatpush2.msra.mxu0 0.0
    %2525 = vmatprep.subr.mxu0 0.0
    %2526 = vmatpush2.msra.mxu0 0.0
    %2527 = vmatprep.mubr.f32.mxu0 0.0
    %2528 = vmatmul.mubr.f32.gmra.mxu0 %v2461
    %v2529 = vpop.f32.mrf.mxu0
    %v2530 = vadd.f32 %v2457, %v2529
    %v2531 = vpop.f32.mrf.mxu0
    %2532 = vdwg.mxu0
    %vm2533 = vcmask 7168
    %2534 = vst.msk [vmem:[%s12] sm:$0xff] %vm2533, %v2530
    // Predicated region
    $region58: #{tpu_custom_call.1} parent=1 // pred_check
      _
    $region59: #{tpu_custom_call.1} parent=1 // pred_check_branch
      %2536 = sbr.rel (0) target = $region61
    $region60: #{tpu_custom_call.1} parent=1 // pred_region
      _
    $region61: #{tpu_custom_call.1} parent=1 // pred_fallthru
      _
    // Predicated region
    $region62: #{tpu_custom_call.1} parent=1 // pred_check
      _
    $region63: #{tpu_custom_call.1} parent=1 // pred_check_branch
      %2538 = sbr.rel (0) target = $region65
    $region64: #{tpu_custom_call.1} parent=1 // pred_region
      _
    $region65: #{tpu_custom_call.1} parent=1 // pred_fallthru
      _
    %2539 = vsyncpa [#allocation5], 1
    %2540 = vsyncpa [#allocation7], 1

</llo_original>
